<compile_context>
chip_gen: v6e
topology: v6e:2x2x1
jax: 0.10.0
libtpu: 0.0.40
codegen_flags: <defaults>
</compile_context>

<pallas_src>
import functools

import numpy as np
import jax
import jax.numpy as jnp
from jax import lax
from jax.experimental import pallas as pl
from jax.experimental.pallas import tpu as pltpu

_EPS = 1e-12           # F.normalize eps
_EPS2 = _EPS * _EPS    # max(||x||, eps) == sqrt(max(||x||^2, eps^2))


# ----------------------------------------------------------------------------
# Kernel 1: fused text-normalize + aux linear + both cosine score maps
# ----------------------------------------------------------------------------
def _fused_scores_kernel(te_ref, td_ref, gamma_ref, vc_ref, aw_ref, ab_ref,
                         dec_ref, low_ref, high_ref):
    f32 = jnp.float32

    # ---- text prompt: t = te + gamma * td, L2-normalize over C (fp32) ----
    t = te_ref[0] + gamma_ref[...] * td_ref[0]                          # (K, C)
    t_inv = lax.rsqrt(jnp.maximum(jnp.sum(t * t, axis=-1, keepdims=True), _EPS2))
    t_n = t * t_inv                                                     # (K, C)
    tT = t_n.T                                                          # (C, K) tiny transpose

    # ---- aux path: v_low = vc @ W + b, natural (P, C) orientation ----
    v_low = jnp.dot(vc_ref[0], aw_ref[...],
                    preferred_element_type=f32) + ab_ref[...]           # (P, C)
    vl_inv = lax.rsqrt(
        jnp.maximum(jnp.sum(v_low * v_low, axis=-1, keepdims=True), _EPS2))  # (P, 1)
    low_pk = jnp.dot(v_low, tT, preferred_element_type=f32) * vl_inv    # (P, K)
    low_ref[0] = low_pk.T                                               # (K, P) lane-dense

    # ---- main path: decoder tokens, post-matmul normalization ----
    dec = dec_ref[0]                                                    # (P, C)
    d_inv = lax.rsqrt(
        jnp.maximum(jnp.sum(dec * dec, axis=-1, keepdims=True), _EPS2))      # (P, 1)
    high_pk = jnp.dot(dec, tT, preferred_element_type=f32) * d_inv      # (P, K)
    high_ref[0] = high_pk.T                                             # (K, P) lane-dense


# ----------------------------------------------------------------------------
# Kernel 2: separable bilinear x4 upsample (Ah @ S @ Aw^T per class map)
# ----------------------------------------------------------------------------
def _upsample_kernel(s_ref, ah_ref, awT_ref, o_ref):
    ah = ah_ref[...]                       # (4H, H)
    awT = awT_ref[...]                     # (W, 4W)
    K = s_ref.shape[1]                     # static
    for k in range(K):
        s = s_ref[0, k]                    # (H, W)
        t1 = jnp.dot(ah, s, preferred_element_type=jnp.float32)             # (4H, W)
        o_ref[0, k] = jnp.dot(t1, awT, preferred_element_type=jnp.float32)  # (4H, 4W)


# ----------------------------------------------------------------------------
# PyTorch-exact bilinear (align_corners=False) 1-D interpolation matrix
# ----------------------------------------------------------------------------
def _bilinear_matrix(in_size, scale):
    out_size = in_size * scale
    A = np.zeros((out_size, in_size), dtype=np.float32)
    for i in range(out_size):
        src = (i + 0.5) / scale - 0.5
        src = max(src, 0.0)
        i0 = min(int(np.floor(src)), in_size - 1)
        i1 = min(i0 + 1, in_size - 1)
        w1 = src - i0
        A[i, i0] += 1.0 - w1
        A[i, i1] += w1
    return A


# ----------------------------------------------------------------------------
# Full forward (PromptAuxSelfA.forward hot path)
# ----------------------------------------------------------------------------
@functools.partial(jax.jit, static_argnames=("H", "W"))
def prompt_aux_selfa_forward(visual_context, text_embeddings, text_diff, dec_out,
                             gamma, aux_w, aux_b, *, H, W):
    B, P, Cv = visual_context.shape
    _, K, C = text_embeddings.shape
    assert P == H * W

    gamma2d = jnp.reshape(gamma, (1, C)).astype(jnp.float32)             # (1, C)
    ab2d = jnp.reshape(aux_b, (1, C)).astype(jnp.float32)                # (1, C)

    low, high = pl.pallas_call(
        _fused_scores_kernel,
        out_shape=(jax.ShapeDtypeStruct((B, K, P), jnp.float32),
                   jax.ShapeDtypeStruct((B, K, P), jnp.float32)),
        grid=(B,),
        in_specs=[
            pl.BlockSpec((1, K, C), lambda b: (b, 0, 0)),    # text_embeddings
            pl.BlockSpec((1, K, C), lambda b: (b, 0, 0)),    # text_diff
            pl.BlockSpec((1, C), lambda b: (0, 0)),          # gamma
            pl.BlockSpec((1, P, Cv), lambda b: (b, 0, 0)),   # visual_context (natural layout)
            pl.BlockSpec((Cv, C), lambda b: (0, 0)),         # aux_w (effective (in, out))
            pl.BlockSpec((1, C), lambda b: (0, 0)),          # aux_b
            pl.BlockSpec((1, P, C), lambda b: (b, 0, 0)),    # dec_out (natural layout)
        ],
        out_specs=[pl.BlockSpec((1, K, P), lambda b: (b, 0, 0)),
                   pl.BlockSpec((1, K, P), lambda b: (b, 0, 0))],
        compiler_params=pltpu.CompilerParams(dimension_semantics=("parallel",)),
    )(text_embeddings, text_diff, gamma2d, visual_context, aux_w, ab2d, dec_out)

    low_score = low.reshape(B, K, H, W)     # free reshape, no transpose needed
    high_score = high.reshape(B, K, H, W)

    # Separable x4 bilinear weights, built once at trace time (O(H^2 + W^2) bytes).
    Ah = jnp.asarray(_bilinear_matrix(H, 4))        # (4H, H)
    AwT = jnp.asarray(_bilinear_matrix(W, 4).T)     # (W, 4W)

    up = pl.pallas_call(
        _upsample_kernel,
        out_shape=jax.ShapeDtypeStruct((B, K, 4 * H, 4 * W), jnp.float32),
        grid=(B,),
        in_specs=[
            pl.BlockSpec((1, K, H, W), lambda b: (b, 0, 0, 0)),
            pl.BlockSpec((4 * H, H), lambda b: (0, 0)),
            pl.BlockSpec((W, 4 * W), lambda b: (0, 0)),
        ],
        out_specs=pl.BlockSpec((1, K, 4 * H, 4 * W), lambda b: (b, 0, 0, 0)),
        compiler_params=pltpu.CompilerParams(dimension_semantics=("parallel",)),
    )(high_score, Ah, AwT)

    return dict(outputs=up, low_score_map=low_score)


# ----------------------------------------------------------------------------
# Pure-jnp fp32 reference for a correctness check
# ----------------------------------------------------------------------------
def _reference(visual_context, text_embeddings, text_diff, dec_out,
               gamma, aux_w, aux_b, H, W):
    B, P, _ = visual_context.shape
    K = text_embeddings.shape[1]
    t = text_embeddings + gamma * text_diff
    t_n = t / jnp.maximum(jnp.linalg.norm(t, axis=-1, keepdims=True), _EPS)
    v_low = jnp.einsum('bpc,cd->bpd', visual_context, aux_w) + aux_b
    v_low_n = v_low / jnp.maximum(jnp.linalg.norm(v_low, axis=-1, keepdims=True), _EPS)
    low = jnp.einsum('bpc,bkc->bkp', v_low_n, t_n).reshape(B, K, H, W)
    dec_n = dec_out / jnp.maximum(jnp.linalg.norm(dec_out, axis=-1, keepdims=True), _EPS)
    high = jnp.einsum('bpc,bkc->bkp', dec_n, t_n).reshape(B, K, H, W)
    Ah = jnp.asarray(_bilinear_matrix(H, 4))
    Aw = jnp.asarray(_bilinear_matrix(W, 4))
    up = jnp.einsum('ih,bkhw,jw->bkij', Ah, high, Aw)
    return low, up


if __name__ == "__main__":
    key = jax.random.PRNGKey(0)
    B, H, W = 2, 8, 8
    P = H * W
    K = 4            # num_classes (len(class_names))
    C_VIS = 384      # in_dims[-2]
    C_TXT = 512      # text_dim / aux_linear out_features / dec_dim

    k1, k2, k3, k4, k5, k6 = jax.random.split(key, 6)

    # TODO(synk): SwinTransformer vision encoder not implemented; v[2] synthesized.
    visual_context = jax.random.normal(k1, (B, P, C_VIS), jnp.float32)
    # TODO(synk): CLIPTextContextEncoder (frozen ViT-B-16) not implemented; output synthesized.
    text_embeddings = jax.random.normal(k2, (B, K, C_TXT), jnp.float32)
    # TODO(synk): ContextDecoder (text/visual cross-attention) not implemented; text_diff synthesized.
    text_diff = jax.random.normal(k3, (B, K, C_TXT), jnp.float32)
    # TODO(synk): HierarchicalSelfA vision decoder not implemented; its output synthesized.
    dec_out = jax.random.normal(k4, (B, P, C_TXT), jnp.float32)

    # deterministic parameters (matching module __init__ shapes)
    gamma = jnp.ones((C_TXT,), jnp.float32) * 1e-4
    aux_w = jax.random.normal(k5, (C_VIS, C_TXT), jnp.float32) * (1.0 / np.sqrt(C_VIS))
    aux_b = jax.random.normal(k6, (C_TXT,), jnp.float32) * 0.01

    res = prompt_aux_selfa_forward(visual_context, text_embeddings, text_diff,
                                   dec_out, gamma, aux_w, aux_b, H=H, W=W)
    jax.block_until_ready(res["outputs"])
    jax.block_until_ready(res["low_score_map"])

    assert res["outputs"].shape == (B, K, 4 * H, 4 * W)
    assert res["low_score_map"].shape == (B, K, H, W)

    low_ref, up_ref = _reference(visual_context, text_embeddings, text_diff,
                                 dec_out, gamma, aux_w, aux_b, H, W)
    np.testing.assert_allclose(np.asarray(res["low_score_map"]), np.asarray(low_ref),
                               atol=5e-2, rtol=0)
    np.testing.assert_allclose(np.asarray(res["outputs"]), np.asarray(up_ref),
                               atol=5e-2, rtol=0)

    print("KERNEL_OK")
</pallas_src>

<mosaic_0001>
module attributes {stable_mosaic.version = 11 : i64} {
  func.func @_fused_scores_kernel(%arg0: i32, %arg1: memref<1x4x512xf32, #tpu.memory_space<vmem>>, %arg2: memref<1x4x512xf32, #tpu.memory_space<vmem>>, %arg3: memref<1x512xf32, #tpu.memory_space<vmem>>, %arg4: memref<1x64x384xf32, #tpu.memory_space<vmem>>, %arg5: memref<384x512xf32, #tpu.memory_space<vmem>>, %arg6: memref<1x512xf32, #tpu.memory_space<vmem>>, %arg7: memref<1x64x512xf32, #tpu.memory_space<vmem>>, %arg8: memref<1x4x64xf32, #tpu.memory_space<vmem>>, %arg9: memref<1x4x64xf32, #tpu.memory_space<vmem>>) attributes {dimension_semantics = [#tpu.dimension_semantics<parallel>], iteration_bounds = array<i64: 2>, scalar_prefetch = 0 : i64, scratch_operands = 0 : i64, tpu.core_type = #tpu.core_type<tc>, window_params = [{transform_indices = @transform_0, window_bounds = array<i64: 1, 4, 512>}, {transform_indices = @transform_1, window_bounds = array<i64: 1, 4, 512>}, {pipeline_mode = #tpu.pipeline_mode<synchronous>, transform_indices = @transform_2, window_bounds = array<i64: 1, 512>}, {transform_indices = @transform_3, window_bounds = array<i64: 1, 64, 384>}, {pipeline_mode = #tpu.pipeline_mode<synchronous>, transform_indices = @transform_4, window_bounds = array<i64: 384, 512>}, {pipeline_mode = #tpu.pipeline_mode<synchronous>, transform_indices = @transform_5, window_bounds = array<i64: 1, 512>}, {transform_indices = @transform_6, window_bounds = array<i64: 1, 64, 512>}, {transform_indices = @transform_7, window_bounds = array<i64: 1, 4, 64>}, {transform_indices = @transform_8, window_bounds = array<i64: 1, 4, 64>}]} {
    %c0 = arith.constant 0 : index
    %c0_0 = arith.constant 0 : index
    %c0_1 = arith.constant 0 : index
    %0 = vector.load %arg1[%c0, %c0_0, %c0_1] : memref<1x4x512xf32, #tpu.memory_space<vmem>>, vector<1x4x512xf32>
    %1 = vector.shape_cast %0 : vector<1x4x512xf32> to vector<4x512xf32>
    %c0_2 = arith.constant 0 : index
    %c0_3 = arith.constant 0 : index
    %2 = vector.load %arg3[%c0_2, %c0_3] : memref<1x512xf32, #tpu.memory_space<vmem>>, vector<1x512xf32>
    %c0_4 = arith.constant 0 : index
    %c0_5 = arith.constant 0 : index
    %c0_6 = arith.constant 0 : index
    %3 = vector.load %arg2[%c0_4, %c0_5, %c0_6] : memref<1x4x512xf32, #tpu.memory_space<vmem>>, vector<1x4x512xf32>
    %4 = vector.shape_cast %3 : vector<1x4x512xf32> to vector<4x512xf32>
    %5 = vector.broadcast %2 : vector<1x512xf32> to vector<4x512xf32>
    %6 = arith.mulf %5, %4 : vector<4x512xf32>
    %7 = arith.addf %1, %6 : vector<4x512xf32>
    %8 = arith.mulf %7, %7 : vector<4x512xf32>
    %cst = arith.constant dense<0.000000e+00> : vector<4xf32>
    %9 = vector.multi_reduction <add>, %8, %cst [1] : vector<4x512xf32> to vector<4xf32>
    %10 = vector.shape_cast %9 : vector<4xf32> to vector<4x1xf32>
    %cst_7 = arith.constant 1.000000e-24 : f32
    %11 = vector.broadcast %cst_7 : f32 to vector<4x1xf32>
    %12 = arith.maximumf %10, %11 : vector<4x1xf32>
    %13 = math.rsqrt %12 : vector<4x1xf32>
    %14 = vector.broadcast %13 : vector<4x1xf32> to vector<4x512xf32>
    %15 = arith.mulf %7, %14 : vector<4x512xf32>
    %16 = tpu.transpose %15, [1, 0] : vector<4x512xf32> -> vector<512x4xf32>
    %c0_8 = arith.constant 0 : index
    %c0_9 = arith.constant 0 : index
    %c0_10 = arith.constant 0 : index
    %17 = vector.load %arg4[%c0_8, %c0_9, %c0_10] : memref<1x64x384xf32, #tpu.memory_space<vmem>>, vector<1x64x384xf32>
    %18 = vector.shape_cast %17 : vector<1x64x384xf32> to vector<64x384xf32>
    %c0_11 = arith.constant 0 : index
    %c0_12 = arith.constant 0 : index
    %19 = vector.load %arg5[%c0_11, %c0_12] : memref<384x512xf32, #tpu.memory_space<vmem>>, vector<384x512xf32>
    %cst_13 = arith.constant dense<0.000000e+00> : vector<64x512xf32>
    %20 = tpu.matmul %18, %19, %cst_13 {dimension_numbers = #tpu.dot_dimension_numbers<[1], [0], [0], [1], [0, 0, 1, 1], [], []>} : vector<64x384xf32>, vector<384x512xf32>, vector<64x512xf32> -> vector<64x512xf32>
    %c0_14 = arith.constant 0 : index
    %c0_15 = arith.constant 0 : index
    %21 = vector.load %arg6[%c0_14, %c0_15] : memref<1x512xf32, #tpu.memory_space<vmem>>, vector<1x512xf32>
    %22 = vector.broadcast %21 : vector<1x512xf32> to vector<64x512xf32>
    %23 = arith.addf %20, %22 : vector<64x512xf32>
    %24 = arith.mulf %23, %23 : vector<64x512xf32>
    %cst_16 = arith.constant dense<0.000000e+00> : vector<64xf32>
    %25 = vector.multi_reduction <add>, %24, %cst_16 [1] : vector<64x512xf32> to vector<64xf32>
    %26 = vector.shape_cast %25 : vector<64xf32> to vector<64x1xf32>
    %cst_17 = arith.constant 1.000000e-24 : f32
    %27 = vector.broadcast %cst_17 : f32 to vector<64x1xf32>
    %28 = arith.maximumf %26, %27 : vector<64x1xf32>
    %29 = math.rsqrt %28 : vector<64x1xf32>
    %cst_18 = arith.constant dense<0.000000e+00> : vector<64x4xf32>
    %30 = tpu.matmul %23, %16, %cst_18 {dimension_numbers = #tpu.dot_dimension_numbers<[1], [0], [0], [1], [0, 0, 1, 1], [], []>} : vector<64x512xf32>, vector<512x4xf32>, vector<64x4xf32> -> vector<64x4xf32>
    %31 = vector.broadcast %29 : vector<64x1xf32> to vector<64x4xf32>
    %32 = arith.mulf %30, %31 : vector<64x4xf32>
    %33 = tpu.transpose %32, [1, 0] : vector<64x4xf32> -> vector<4x64xf32>
    %c0_19 = arith.constant 0 : index
    %c0_20 = arith.constant 0 : index
    %c0_21 = arith.constant 0 : index
    %34 = vector.load %arg8[%c0_19, %c0_20, %c0_21] : memref<1x4x64xf32, #tpu.memory_space<vmem>>, vector<1x4x64xf32>
    %35 = vector.shape_cast %34 : vector<1x4x64xf32> to vector<4x64xf32>
    %36 = vector.shape_cast %33 : vector<4x64xf32> to vector<1x4x64xf32>
    tpu.vector_store %arg8[%c0_19, %c0_20, %c0_21], %36 {strides = array<i32>} : memref<1x4x64xf32, #tpu.memory_space<vmem>>, vector<1x4x64xf32>,
    %c0_22 = arith.constant 0 : index
    %c0_23 = arith.constant 0 : index
    %c0_24 = arith.constant 0 : index
    %37 = vector.load %arg7[%c0_22, %c0_23, %c0_24] : memref<1x64x512xf32, #tpu.memory_space<vmem>>, vector<1x64x512xf32>
    %38 = vector.shape_cast %37 : vector<1x64x512xf32> to vector<64x512xf32>
    %39 = arith.mulf %38, %38 : vector<64x512xf32>
    %cst_25 = arith.constant dense<0.000000e+00> : vector<64xf32>
    %40 = vector.multi_reduction <add>, %39, %cst_25 [1] : vector<64x512xf32> to vector<64xf32>
    %41 = vector.shape_cast %40 : vector<64xf32> to vector<64x1xf32>
    %cst_26 = arith.constant 1.000000e-24 : f32
    %42 = vector.broadcast %cst_26 : f32 to vector<64x1xf32>
    %43 = arith.maximumf %41, %42 : vector<64x1xf32>
    %44 = math.rsqrt %43 : vector<64x1xf32>
    %cst_27 = arith.constant dense<0.000000e+00> : vector<64x4xf32>
    %45 = tpu.matmul %38, %16, %cst_27 {dimension_numbers = #tpu.dot_dimension_numbers<[1], [0], [0], [1], [0, 0, 1, 1], [], []>} : vector<64x512xf32>, vector<512x4xf32>, vector<64x4xf32> -> vector<64x4xf32>
    %46 = vector.broadcast %44 : vector<64x1xf32> to vector<64x4xf32>
    %47 = arith.mulf %45, %46 : vector<64x4xf32>
    %48 = tpu.transpose %47, [1, 0] : vector<64x4xf32> -> vector<4x64xf32>
    %c0_28 = arith.constant 0 : index
    %c0_29 = arith.constant 0 : index
    %c0_30 = arith.constant 0 : index
    %49 = vector.load %arg9[%c0_28, %c0_29, %c0_30] : memref<1x4x64xf32, #tpu.memory_space<vmem>>, vector<1x4x64xf32>
    %50 = vector.shape_cast %49 : vector<1x4x64xf32> to vector<4x64xf32>
    %51 = vector.shape_cast %48 : vector<4x64xf32> to vector<1x4x64xf32>
    tpu.vector_store %arg9[%c0_28, %c0_29, %c0_30], %51 {strides = array<i32>} : memref<1x4x64xf32, #tpu.memory_space<vmem>>, vector<1x4x64xf32>,
    return
  }
  func.func @transform_0(%arg0: i32) -> (i32, i32, i32) {
    %c0_i32 = arith.constant 0 : i32
    %c0_i32_0 = arith.constant 0 : i32
    %c0_i32_1 = arith.constant 0 : i32
    return %arg0, %c0_i32, %c0_i32_0 : i32, i32, i32
  }
  func.func @transform_1(%arg0: i32) -> (i32, i32, i32) {
    %c0_i32 = arith.constant 0 : i32
    %c0_i32_0 = arith.constant 0 : i32
    %c0_i32_1 = arith.constant 0 : i32
    return %arg0, %c0_i32, %c0_i32_0 : i32, i32, i32
  }
  func.func @transform_2(%arg0: i32) -> (i32, i32) {
    %c0_i32 = arith.constant 0 : i32
    %c0_i32_0 = arith.constant 0 : i32
    %c0_i32_1 = arith.constant 0 : i32
    return %c0_i32, %c0_i32_0 : i32, i32
  }
  func.func @transform_3(%arg0: i32) -> (i32, i32, i32) {
    %c0_i32 = arith.constant 0 : i32
    %c0_i32_0 = arith.constant 0 : i32
    %c0_i32_1 = arith.constant 0 : i32
    return %arg0, %c0_i32, %c0_i32_0 : i32, i32, i32
  }
  func.func @transform_4(%arg0: i32) -> (i32, i32) {
    %c0_i32 = arith.constant 0 : i32
    %c0_i32_0 = arith.constant 0 : i32
    %c0_i32_1 = arith.constant 0 : i32
    return %c0_i32, %c0_i32_0 : i32, i32
  }
  func.func @transform_5(%arg0: i32) -> (i32, i32) {
    %c0_i32 = arith.constant 0 : i32
    %c0_i32_0 = arith.constant 0 : i32
    %c0_i32_1 = arith.constant 0 : i32
    return %c0_i32, %c0_i32_0 : i32, i32
  }
  func.func @transform_6(%arg0: i32) -> (i32, i32, i32) {
    %c0_i32 = arith.constant 0 : i32
    %c0_i32_0 = arith.constant 0 : i32
    %c0_i32_1 = arith.constant 0 : i32
    return %arg0, %c0_i32, %c0_i32_0 : i32, i32, i32
  }
  func.func @transform_7(%arg0: i32) -> (i32, i32, i32) {
    %c0_i32 = arith.constant 0 : i32
    %c0_i32_0 = arith.constant 0 : i32
    %c0_i32_1 = arith.constant 0 : i32
    return %arg0, %c0_i32, %c0_i32_0 : i32, i32, i32
  }
  func.func @transform_8(%arg0: i32) -> (i32, i32, i32) {
    %c0_i32 = arith.constant 0 : i32
    %c0_i32_0 = arith.constant 0 : i32
    %c0_i32_1 = arith.constant 0 : i32
    return %arg0, %c0_i32, %c0_i32_0 : i32, i32, i32
  }
}

module attributes {stable_mosaic.version = 11 : i64} {
  func.func @_upsample_kernel(%arg0: i32, %arg1: memref<1x4x8x8xf32, #tpu.memory_space<vmem>>, %arg2: memref<32x8xf32, #tpu.memory_space<vmem>>, %arg3: memref<8x32xf32, #tpu.memory_space<vmem>>, %arg4: memref<1x4x32x32xf32, #tpu.memory_space<vmem>>) attributes {dimension_semantics = [#tpu.dimension_semantics<parallel>], iteration_bounds = array<i64: 2>, scalar_prefetch = 0 : i64, scratch_operands = 0 : i64, tpu.core_type = #tpu.core_type<tc>, window_params = [{transform_indices = @transform_0, window_bounds = array<i64: 1, 4, 8, 8>}, {pipeline_mode = #tpu.pipeline_mode<synchronous>, transform_indices = @transform_1, window_bounds = array<i64: 32, 8>}, {pipeline_mode = #tpu.pipeline_mode<synchronous>, transform_indices = @transform_2, window_bounds = array<i64: 8, 32>}, {transform_indices = @transform_3, window_bounds = array<i64: 1, 4, 32, 32>}]} {
    %c0 = arith.constant 0 : index
    %c0_0 = arith.constant 0 : index
    %0 = vector.load %arg2[%c0, %c0_0] : memref<32x8xf32, #tpu.memory_space<vmem>>, vector<32x8xf32>
    %c0_1 = arith.constant 0 : index
    %c0_2 = arith.constant 0 : index
    %1 = vector.load %arg3[%c0_1, %c0_2] : memref<8x32xf32, #tpu.memory_space<vmem>>, vector<8x32xf32>
    %c0_3 = arith.constant 0 : index
    %c0_4 = arith.constant 0 : index
    %c0_5 = arith.constant 0 : index
    %c0_6 = arith.constant 0 : index
    %2 = vector.load %arg1[%c0_3, %c0_4, %c0_5, %c0_6] : memref<1x4x8x8xf32, #tpu.memory_space<vmem>>, vector<1x1x8x8xf32>
    %3 = vector.shape_cast %2 : vector<1x1x8x8xf32> to vector<8x8xf32>
    %cst = arith.constant dense<0.000000e+00> : vector<32x8xf32>
    %4 = tpu.matmul %0, %3, %cst {dimension_numbers = #tpu.dot_dimension_numbers<[1], [0], [0], [1], [0, 0, 1, 1], [], []>} : vector<32x8xf32>, vector<8x8xf32>, vector<32x8xf32> -> vector<32x8xf32>
    %cst_7 = arith.constant dense<0.000000e+00> : vector<32x32xf32>
    %5 = tpu.matmul %4, %1, %cst_7 {dimension_numbers = #tpu.dot_dimension_numbers<[1], [0], [0], [1], [0, 0, 1, 1], [], []>} : vector<32x8xf32>, vector<8x32xf32>, vector<32x32xf32> -> vector<32x32xf32>
    %c0_8 = arith.constant 0 : index
    %c0_9 = arith.constant 0 : index
    %c0_10 = arith.constant 0 : index
    %c0_11 = arith.constant 0 : index
    %6 = vector.load %arg4[%c0_8, %c0_9, %c0_10, %c0_11] : memref<1x4x32x32xf32, #tpu.memory_space<vmem>>, vector<1x1x32x32xf32>
    %7 = vector.shape_cast %6 : vector<1x1x32x32xf32> to vector<32x32xf32>
    %8 = vector.shape_cast %5 : vector<32x32xf32> to vector<1x1x32x32xf32>
    tpu.vector_store %arg4[%c0_8, %c0_9, %c0_10, %c0_11], %8 {strides = array<i32>} : memref<1x4x32x32xf32, #tpu.memory_space<vmem>>, vector<1x1x32x32xf32>,
    %c0_12 = arith.constant 0 : index
    %c1 = arith.constant 1 : index
    %c0_13 = arith.constant 0 : index
    %c0_14 = arith.constant 0 : index
    %9 = vector.load %arg1[%c0_12, %c1, %c0_13, %c0_14] : memref<1x4x8x8xf32, #tpu.memory_space<vmem>>, vector<1x1x8x8xf32>
    %10 = vector.shape_cast %9 : vector<1x1x8x8xf32> to vector<8x8xf32>
    %cst_15 = arith.constant dense<0.000000e+00> : vector<32x8xf32>
    %11 = tpu.matmul %0, %10, %cst_15 {dimension_numbers = #tpu.dot_dimension_numbers<[1], [0], [0], [1], [0, 0, 1, 1], [], []>} : vector<32x8xf32>, vector<8x8xf32>, vector<32x8xf32> -> vector<32x8xf32>
    %cst_16 = arith.constant dense<0.000000e+00> : vector<32x32xf32>
    %12 = tpu.matmul %11, %1, %cst_16 {dimension_numbers = #tpu.dot_dimension_numbers<[1], [0], [0], [1], [0, 0, 1, 1], [], []>} : vector<32x8xf32>, vector<8x32xf32>, vector<32x32xf32> -> vector<32x32xf32>
    %c0_17 = arith.constant 0 : index
    %c1_18 = arith.constant 1 : index
    %c0_19 = arith.constant 0 : index
    %c0_20 = arith.constant 0 : index
    %13 = vector.load %arg4[%c0_17, %c1_18, %c0_19, %c0_20] : memref<1x4x32x32xf32, #tpu.memory_space<vmem>>, vector<1x1x32x32xf32>
    %14 = vector.shape_cast %13 : vector<1x1x32x32xf32> to vector<32x32xf32>
    %15 = vector.shape_cast %12 : vector<32x32xf32> to vector<1x1x32x32xf32>
    tpu.vector_store %arg4[%c0_17, %c1_18, %c0_19, %c0_20], %15 {strides = array<i32>} : memref<1x4x32x32xf32, #tpu.memory_space<vmem>>, vector<1x1x32x32xf32>,
    %c0_21 = arith.constant 0 : index
    %c2 = arith.constant 2 : index
    %c0_22 = arith.constant 0 : index
    %c0_23 = arith.constant 0 : index
    %16 = vector.load %arg1[%c0_21, %c2, %c0_22, %c0_23] : memref<1x4x8x8xf32, #tpu.memory_space<vmem>>, vector<1x1x8x8xf32>
    %17 = vector.shape_cast %16 : vector<1x1x8x8xf32> to vector<8x8xf32>
    %cst_24 = arith.constant dense<0.000000e+00> : vector<32x8xf32>
    %18 = tpu.matmul %0, %17, %cst_24 {dimension_numbers = #tpu.dot_dimension_numbers<[1], [0], [0], [1], [0, 0, 1, 1], [], []>} : vector<32x8xf32>, vector<8x8xf32>, vector<32x8xf32> -> vector<32x8xf32>
    %cst_25 = arith.constant dense<0.000000e+00> : vector<32x32xf32>
    %19 = tpu.matmul %18, %1, %cst_25 {dimension_numbers = #tpu.dot_dimension_numbers<[1], [0], [0], [1], [0, 0, 1, 1], [], []>} : vector<32x8xf32>, vector<8x32xf32>, vector<32x32xf32> -> vector<32x32xf32>
    %c0_26 = arith.constant 0 : index
    %c2_27 = arith.constant 2 : index
    %c0_28 = arith.constant 0 : index
    %c0_29 = arith.constant 0 : index
    %20 = vector.load %arg4[%c0_26, %c2_27, %c0_28, %c0_29] : memref<1x4x32x32xf32, #tpu.memory_space<vmem>>, vector<1x1x32x32xf32>
    %21 = vector.shape_cast %20 : vector<1x1x32x32xf32> to vector<32x32xf32>
    %22 = vector.shape_cast %19 : vector<32x32xf32> to vector<1x1x32x32xf32>
    tpu.vector_store %arg4[%c0_26, %c2_27, %c0_28, %c0_29], %22 {strides = array<i32>} : memref<1x4x32x32xf32, #tpu.memory_space<vmem>>, vector<1x1x32x32xf32>,
    %c0_30 = arith.constant 0 : index
    %c3 = arith.constant 3 : index
    %c0_31 = arith.constant 0 : index
    %c0_32 = arith.constant 0 : index
    %23 = vector.load %arg1[%c0_30, %c3, %c0_31, %c0_32] : memref<1x4x8x8xf32, #tpu.memory_space<vmem>>, vector<1x1x8x8xf32>
    %24 = vector.shape_cast %23 : vector<1x1x8x8xf32> to vector<8x8xf32>
    %cst_33 = arith.constant dense<0.000000e+00> : vector<32x8xf32>
    %25 = tpu.matmul %0, %24, %cst_33 {dimension_numbers = #tpu.dot_dimension_numbers<[1], [0], [0], [1], [0, 0, 1, 1], [], []>} : vector<32x8xf32>, vector<8x8xf32>, vector<32x8xf32> -> vector<32x8xf32>
    %cst_34 = arith.constant dense<0.000000e+00> : vector<32x32xf32>
    %26 = tpu.matmul %25, %1, %cst_34 {dimension_numbers = #tpu.dot_dimension_numbers<[1], [0], [0], [1], [0, 0, 1, 1], [], []>} : vector<32x8xf32>, vector<8x32xf32>, vector<32x32xf32> -> vector<32x32xf32>
    %c0_35 = arith.constant 0 : index
    %c3_36 = arith.constant 3 : index
    %c0_37 = arith.constant 0 : index
    %c0_38 = arith.constant 0 : index
    %27 = vector.load %arg4[%c0_35, %c3_36, %c0_37, %c0_38] : memref<1x4x32x32xf32, #tpu.memory_space<vmem>>, vector<1x1x32x32xf32>
    %28 = vector.shape_cast %27 : vector<1x1x32x32xf32> to vector<32x32xf32>
    %29 = vector.shape_cast %26 : vector<32x32xf32> to vector<1x1x32x32xf32>
    tpu.vector_store %arg4[%c0_35, %c3_36, %c0_37, %c0_38], %29 {strides = array<i32>} : memref<1x4x32x32xf32, #tpu.memory_space<vmem>>, vector<1x1x32x32xf32>,
    return
  }
  func.func @transform_0(%arg0: i32) -> (i32, i32, i32, i32) {
    %c0_i32 = arith.constant 0 : i32
    %c0_i32_0 = arith.constant 0 : i32
    %c0_i32_1 = arith.constant 0 : i32
    %c0_i32_2 = arith.constant 0 : i32
    return %arg0, %c0_i32, %c0_i32_0, %c0_i32_1 : i32, i32, i32, i32
  }
  func.func @transform_1(%arg0: i32) -> (i32, i32) {
    %c0_i32 = arith.constant 0 : i32
    %c0_i32_0 = arith.constant 0 : i32
    %c0_i32_1 = arith.constant 0 : i32
    return %c0_i32, %c0_i32_0 : i32, i32
  }
  func.func @transform_2(%arg0: i32) -> (i32, i32) {
    %c0_i32 = arith.constant 0 : i32
    %c0_i32_0 = arith.constant 0 : i32
    %c0_i32_1 = arith.constant 0 : i32
    return %c0_i32, %c0_i32_0 : i32, i32
  }
  func.func @transform_3(%arg0: i32) -> (i32, i32, i32, i32) {
    %c0_i32 = arith.constant 0 : i32
    %c0_i32_0 = arith.constant 0 : i32
    %c0_i32_1 = arith.constant 0 : i32
    %c0_i32_2 = arith.constant 0 : i32
    return %arg0, %c0_i32, %c0_i32_0, %c0_i32_1 : i32, i32, i32, i32
  }
}

</mosaic_0001>

<llo_original>
// kernel: prompt_aux_selfa_forward.3
$region0: #{prompt_aux_selfa_forward.3}
  #allocation0 [shape = 'u32[]', space=smem, size = 0x4, offset = 0x4, fixed_abs, tag = 'smem constant byte address 0x4 - core index']
  #allocation1 [shape = 'u32[144,128]{1,0:T(1,128)}', space=vmem, size = 0x12000, scoped, tag = 'internal scratch']
  %s0 = inlined_call_operand.vmem [shape: f32[2,4,8,8], index: 0, kind: input, shape index: {}]
  %s1 = inlined_call_operand.vmem [shape: f32[32,8], index: 1, kind: input, shape index: {}]
  %s2 = inlined_call_operand.vmem [shape: f32[8,32], index: 2, kind: input, shape index: {}]
  %s3 = inlined_call_operand.hbm [shape: f32[2,4,32,32], index: 3, kind: output, shape index: {}]
  %s4 = sld [smem:[#allocation0]]
  $region45: #{prompt_aux_selfa_forward.3} parent=0
    _
  %s6 = ssub.s32 1, %s4
  %s7 = scalar_select 0, %s6, %s4
  $region1: #{prompt_aux_selfa_forward.3} parent=0
    #allocation2 [shape = 'u8[131072]{0}', space=vmem, size = 0x20000, scoped, tag = 'output window, operand 0']
    #allocation3 [shape = 's32[2]{0}', space=sflag, size = 0x8, scoped, tag = 'scoped memory for prompt_aux_selfa_forward.3']
    %8 = vsyncpa [#allocation3], 0
    %s9 = scalar_lea.sflag [#allocation3], 1
    %10 = vsyncpa %s9, 0
    loop: start=0, step=1, limit=4
    $region2: #{prompt_aux_selfa_forward.3} parent=1 // loop_pre_header
      _
    $region3: #{prompt_aux_selfa_forward.3} parent=1 // loop_header
      %s12 = sphi 0, %s16
      %p13 = scmp.ge.s32.totalorder %s12, 4
      %s22 = sphi 0, %s24
      %s25 = sphi 0, %s22
      %s26 = sphi 0, %s25
      %s42 = sphi 0, %s26
      %s46 = sphi 0, %s46
      %s48 = sphi 0, %s46
      %s49 = sphi 0, %s48
      %s63 = sphi 0, %s49
      %s67 = sphi 0, %s67
      %s69 = sphi 0, %s67
      %s70 = sphi 0, %s69
      %s84 = sphi 0, %s70
      %s90 = sphi 0, %s92
      %s93 = sphi 0, %s90
      %s94 = sphi 0, %s93
      %s110 = sphi 0, %s94
    $region4: #{prompt_aux_selfa_forward.3} parent=1 // loop_header_branch
      %15 = sbr.rel (%p13) target = $region8
    $region5: #{prompt_aux_selfa_forward.3} parent=1 // loop_body
      %s17 = ssub.s32 %s12, 1
      %s18 = ssub.s32 %s12, 2
      %s19 = sadd.s32 %s12, 1
      %s20 = ssub.s32 %s12, %s19
      %p21 = scmp.eq.s32.totalorder %s20, 0
      %s23 = sadd.s32 %s22, 1
      %s24 = scalar_select %p21, %s22, %s23
      %p27 = pneg %p21
      %p28 = scmp.eq.s32.totalorder %s12, 1
      %p29 = por %p27, %p28
      %p30 = scmp.ne.s32.totalorder %s22, %s25
      %p31 = scmp.eq.s32.totalorder %s12, 0
      %p32 = por %p30, %p31
      %p33 = scmp.ne.s32.totalorder %s22, %s25
      %p34 = scmp.eq.s32.totalorder %s17, 1
      %p35 = por %p33, %p34
      %p36 = scmp.ne.s32.totalorder %s25, %s26
      %p37 = scmp.eq.s32.totalorder %s17, 0
      %p38 = por %p36, %p37
      %p39 = scmp.ne.s32.totalorder %s25, %s26
      %p40 = scmp.eq.s32.totalorder %s18, 1
      %p41 = por %p39, %p40
      %p43 = scmp.ne.s32.totalorder %s26, %s42
      %p44 = scmp.eq.s32.totalorder %s18, 0
      %p45 = por %p43, %p44
      %s47 = sadd.s32 %s46, 1
      %p50 = scmp.eq.s32.totalorder %s12, 1
      %p51 = scmp.ne.s32.totalorder %s46, %s48
      %p52 = scmp.eq.s32.totalorder %s12, 0
      %p53 = por %p51, %p52
      %p54 = scmp.ne.s32.totalorder %s46, %s48
      %p55 = scmp.eq.s32.totalorder %s17, 1
      %p56 = por %p54, %p55
      %p57 = scmp.ne.s32.totalorder %s48, %s49
      %p58 = scmp.eq.s32.totalorder %s17, 0
      %p59 = por %p57, %p58
      %p60 = scmp.ne.s32.totalorder %s48, %s49
      %p61 = scmp.eq.s32.totalorder %s18, 1
      %p62 = por %p60, %p61
      %p64 = scmp.ne.s32.totalorder %s49, %s63
      %p65 = scmp.eq.s32.totalorder %s18, 0
      %p66 = por %p64, %p65
      %s68 = sadd.s32 %s67, 1
      %p71 = scmp.eq.s32.totalorder %s12, 1
      %p72 = scmp.ne.s32.totalorder %s67, %s69
      %p73 = scmp.eq.s32.totalorder %s12, 0
      %p74 = por %p72, %p73
      %p75 = scmp.ne.s32.totalorder %s67, %s69
      %p76 = scmp.eq.s32.totalorder %s17, 1
      %p77 = por %p75, %p76
      %p78 = scmp.ne.s32.totalorder %s69, %s70
      %p79 = scmp.eq.s32.totalorder %s17, 0
      %p80 = por %p78, %p79
      %p81 = scmp.ne.s32.totalorder %s69, %s70
      %p82 = scmp.eq.s32.totalorder %s18, 1
      %p83 = por %p81, %p82
      %p85 = scmp.ne.s32.totalorder %s70, %s84
      %p86 = scmp.eq.s32.totalorder %s18, 0
      %p87 = por %p85, %p86
      %s88 = ssub.s32 %s12, %s19
      %p89 = scmp.eq.s32.totalorder %s88, 0
      %s91 = sadd.s32 %s90, 1
      %s92 = scalar_select %p89, %s90, %s91
      %p95 = pneg %p89
      %p96 = scmp.eq.s32.totalorder %s12, 1
      %p97 = por %p95, %p96
      %p98 = scmp.ne.s32.totalorder %s90, %s93
      %p99 = scmp.eq.s32.totalorder %s12, 0
      %p100 = por %p98, %p99
      %p101 = scmp.ne.s32.totalorder %s90, %s93
      %p102 = scmp.eq.s32.totalorder %s17, 1
      %p103 = por %p101, %p102
      %p104 = scmp.ne.s32.totalorder %s93, %s94
      %p105 = scmp.eq.s32.totalorder %s17, 0
      %p106 = por %p104, %p105
      %p107 = scmp.ne.s32.totalorder %s93, %s94
      %p108 = scmp.eq.s32.totalorder %s18, 1
      %p109 = por %p107, %p108
      %p111 = scmp.ne.s32.totalorder %s94, %s110
      %p112 = scmp.eq.s32.totalorder %s18, 0
      %p113 = por %p111, %p112
      %p114 = scmp.le.s32.totalorder 1, %s12
      %p115 = scmp.lt.s32.totalorder %s12, 3
      %p116 = pnand %p114, %p115
      %p117 = pneg %p116
      // Predicated region
      $region9: #{prompt_aux_selfa_forward.3} parent=5 // pred_check
        _
      $region10: #{prompt_aux_selfa_forward.3} parent=5 // pred_check_branch
        %119 = sbr.rel (%p116) target = $region12
      $region11: #{prompt_aux_selfa_forward.3} parent=5 // pred_region
        %s120 = ssub.s32 %s12, 1
        // Predicated region
        $region13: #{prompt_aux_selfa_forward.3} parent=11 // pred_check
          %p121 = pneg %p59
        $region14: #{prompt_aux_selfa_forward.3} parent=11 // pred_check_branch
          %123 = sbr.rel (%p121) target = $region16
        $region15: #{prompt_aux_selfa_forward.3} parent=11 // pred_region
          _
        $region16: #{prompt_aux_selfa_forward.3} parent=11 // pred_fallthru
          _
        // Predicated region
        $region17: #{prompt_aux_selfa_forward.3} parent=11 // pred_check
          %p124 = pneg %p80
        $region18: #{prompt_aux_selfa_forward.3} parent=11 // pred_check_branch
          %126 = sbr.rel (%p124) target = $region20
        $region19: #{prompt_aux_selfa_forward.3} parent=11 // pred_region
          _
        $region20: #{prompt_aux_selfa_forward.3} parent=11 // pred_fallthru
          _
      $region12: #{prompt_aux_selfa_forward.3} parent=5 // pred_fallthru
        _
      %p127 = scmp.lt.s32.totalorder %s12, 2
      // Predicated region
      $region21: #{prompt_aux_selfa_forward.3} parent=5 // pred_check
        %p128 = pneg %p127
      $region22: #{prompt_aux_selfa_forward.3} parent=5 // pred_check_branch
        %130 = sbr.rel (%p128) target = $region24
      $region23: #{prompt_aux_selfa_forward.3} parent=5 // pred_region
        // Predicated region
        $region25: #{prompt_aux_selfa_forward.3} parent=23 // pred_check
          %p131 = pneg %p32
        $region26: #{prompt_aux_selfa_forward.3} parent=23 // pred_check_branch
          %133 = sbr.rel (%p131) target = $region28
        $region27: #{prompt_aux_selfa_forward.3} parent=23 // pred_region
          %p134 = scmp.lt.s32.totalorder %s12, 1
          %s135 = scalar_select %p134, %s12, 1
          %s136 = smul.addr %s135, 4
          %s137 = smul.addr %s136, 8
          %s138 = scalar_lea.vmem %s0, %s137
        $region28: #{prompt_aux_selfa_forward.3} parent=23 // pred_fallthru
          _
      $region24: #{prompt_aux_selfa_forward.3} parent=5 // pred_fallthru
        _
      %p139 = scmp.le.s32.totalorder 1, %s12
      %p140 = scmp.lt.s32.totalorder %s12, 3
      %p141 = pnand %p139, %p140
      %p142 = pneg %p141
      // Predicated region
      $region29: #{prompt_aux_selfa_forward.3} parent=5 // pred_check
        _
      $region30: #{prompt_aux_selfa_forward.3} parent=5 // pred_check_branch
        %144 = sbr.rel (%p141) target = $region32
      $region31: #{prompt_aux_selfa_forward.3} parent=5 // pred_region
        %s145 = ssub.s32 %s12, 1
        %p146 = scmp.lt.s32.totalorder %s17, 1
        %s147 = scalar_select %p146, %s17, 1
        %s148 = smul.addr %s147, 4
        %s149 = smul.addr %s148, 8
        %s150 = scalar_lea.vmem %s0, %s149
        %p151 = pneg %p38
        %p152 = pneg %p35
        %p153 = pneg %p59
        %p154 = pneg %p56
        %p155 = pneg %p80
        %p156 = pneg %p77
        %p157 = pneg %p106
        %p158 = pneg %p103
        %s159 = sand.u32 %s93, 1
        %s160 = scalar_lea.sflag [#allocation3], %s159
        %s161 = sand.u32 %s93, 1
        %s162 = smul.addr %s161, 128
        %s163 = scalar_lea.vmem [#allocation2], %s162
        %p164 = scmp.lt.s32.totalorder %s17, 1
        %s165 = scalar_select %p164, %s17, 1
        %s166 = smul.addr %s165, 4
        %s167 = smul.addr %s166, 8
        %s168 = scalar_lea.vmem %s0, %s167
        %v169 = vld [vmem:[%s1] sm:$0xff]
        %v170 = vld [vmem:[%s1 + $0x8] sm:$0xff]
        %v171 = vld [vmem:[%s1 + $0x10] sm:$0xff]
        %v172 = vld [vmem:[%s1 + $0x18] sm:$0xff]
        %v173 = vld [vmem:[%s2] sm:$0xff]
        %v174 = vld [vmem:[%s168] sm:$0xff]
        %vm175 = vcmask 64512
        %v177 = vsel %vm175, %v169, 0
        %v180 = vsel %vm175, %v170, 0
        %v183 = vsel %vm175, %v171, 0
        %v186 = vsel %vm175, %v172, 0
        %188 = vmatprep.subr.mxu0 0.0
        %189 = vmatpush1.msra.mxu0 0.0
        %190 = vmatprep.subr.mxu0 0.0
        %191 = vmatpush1.msra.mxu0 0.0
        %192 = vmatprep.subr.mxu0 0.0
        %193 = vmatpush1.msra.mxu0 0.0
        %194 = vmatprep.subr.mxu0 0.0
        %195 = vmatpush1.msra.mxu0 0.0
        %196 = vmatprep.subr.mxu0 0.0
        %197 = vmatpush1.msra.mxu0 0.0
        %198 = vmatprep.subr.mxu0 0.0
        %199 = vmatpush1.msra.mxu0 0.0
        %200 = vmatprep.subr.mxu0 0.0
        %201 = vmatpush1.msra.mxu0 0.0
        %202 = vmatprep.subr.mxu0 0.0
        %203 = vmatpush1.msra.mxu0 0.0
        %204 = vmatprep.subr.mxu0 0.0
        %205 = vmatpush1.msra.mxu0 0.0
        %206 = vmatprep.subr.mxu0 0.0
        %207 = vmatpush1.msra.mxu0 0.0
        %208 = vmatprep.subr.mxu0 0.0
        %209 = vmatpush1.msra.mxu0 0.0
        %210 = vmatprep.subr.mxu0 0.0
        %211 = vmatpush1.msra.mxu0 0.0
        %212 = vmatprep.subr.mxu0 0.0
        %213 = vmatpush1.msra.mxu0 0.0
        %214 = vmatprep.subr.mxu0 0.0
        %215 = vmatpush1.msra.mxu0 0.0
        %216 = vmatprep.subr.mxu0 0.0
        %217 = vmatpush1.msra.mxu0 0.0
        %218 = vmatprep.subr.mxu0 0.0
        %219 = vmatpush1.msra.mxu0 %v174
        %220 = vmatprep.subr.mxu0 0.0
        %221 = vmatpush2.msra.mxu0 0.0
        %222 = vmatprep.subr.mxu0 0.0
        %223 = vmatpush2.msra.mxu0 0.0
        %224 = vmatprep.subr.mxu0 0.0
        %225 = vmatpush2.msra.mxu0 0.0
        %226 = vmatprep.subr.mxu0 0.0
        %227 = vmatpush2.msra.mxu0 0.0
        %228 = vmatprep.subr.mxu0 0.0
        %229 = vmatpush2.msra.mxu0 0.0
        %230 = vmatprep.subr.mxu0 0.0
        %231 = vmatpush2.msra.mxu0 0.0
        %232 = vmatprep.subr.mxu0 0.0
        %233 = vmatpush2.msra.mxu0 0.0
        %234 = vmatprep.subr.mxu0 0.0
        %235 = vmatpush2.msra.mxu0 0.0
        %236 = vmatprep.subr.mxu0 0.0
        %237 = vmatpush2.msra.mxu0 0.0
        %238 = vmatprep.subr.mxu0 0.0
        %239 = vmatpush2.msra.mxu0 0.0
        %240 = vmatprep.subr.mxu0 0.0
        %241 = vmatpush2.msra.mxu0 0.0
        %242 = vmatprep.subr.mxu0 0.0
        %243 = vmatpush2.msra.mxu0 0.0
        %244 = vmatprep.subr.mxu0 0.0
        %245 = vmatpush2.msra.mxu0 0.0
        %246 = vmatprep.subr.mxu0 0.0
        %247 = vmatpush2.msra.mxu0 0.0
        %248 = vmatprep.subr.mxu0 0.0
        %249 = vmatpush2.msra.mxu0 0.0
        %250 = vmatprep.subr.mxu0 0.0
        %251 = vmatpush2.msra.mxu0 0.0
        %252 = vmatprep.mubr.f32.mxu0 0.0
        %253 = vmatmul.mubr.f32.gmra.mxu0 %v177
        %v254 = vpop.f32.mrf.mxu0
        %v255 = vadd.f32 0.0, %v254
        %v256 = vpop.f32.mrf.mxu0
        %257 = vmatprep.mubr.f32.mxu0 0.0
        %258 = vmatmul.mubr.f32.gmra.mxu0 %v180
        %v259 = vpop.f32.mrf.mxu0
        %v260 = vadd.f32 0.0, %v259
        %v261 = vpop.f32.mrf.mxu0
        %262 = vmatprep.mubr.f32.mxu0 0.0
        %263 = vmatmul.mubr.f32.gmra.mxu0 %v183
        %v264 = vpop.f32.mrf.mxu0
        %v265 = vadd.f32 0.0, %v264
        %v266 = vpop.f32.mrf.mxu0
        %267 = vmatprep.mubr.f32.mxu0 0.0
        %268 = vmatmul.mubr.f32.gmra.mxu0 %v186
        %v269 = vpop.f32.mrf.mxu0
        %v270 = vadd.f32 0.0, %v269
        %v271 = vpop.f32.mrf.mxu0
        %272 = vdwg.mxu0
        %v274 = vsel %vm175, %v255, 0
        %v277 = vsel %vm175, %v260, 0
        %v280 = vsel %vm175, %v265, 0
        %v283 = vsel %vm175, %v270, 0
        %285 = vmatprep.subr.mxu0 0.0
        %286 = vmatpush1.msra.mxu0 0.0
        %287 = vmatprep.subr.mxu0 0.0
        %288 = vmatpush1.msra.mxu0 0.0
        %289 = vmatprep.subr.mxu0 0.0
        %290 = vmatpush1.msra.mxu0 0.0
        %291 = vmatprep.subr.mxu0 0.0
        %292 = vmatpush1.msra.mxu0 0.0
        %293 = vmatprep.subr.mxu0 0.0
        %294 = vmatpush1.msra.mxu0 0.0
        %295 = vmatprep.subr.mxu0 0.0
        %296 = vmatpush1.msra.mxu0 0.0
        %297 = vmatprep.subr.mxu0 0.0
        %298 = vmatpush1.msra.mxu0 0.0
        %299 = vmatprep.subr.mxu0 0.0
        %300 = vmatpush1.msra.mxu0 0.0
        %301 = vmatprep.subr.mxu0 0.0
        %302 = vmatpush1.msra.mxu0 0.0
        %303 = vmatprep.subr.mxu0 0.0
        %304 = vmatpush1.msra.mxu0 0.0
        %305 = vmatprep.subr.mxu0 0.0
        %306 = vmatpush1.msra.mxu0 0.0
        %307 = vmatprep.subr.mxu0 0.0
        %308 = vmatpush1.msra.mxu0 0.0
        %309 = vmatprep.subr.mxu0 0.0
        %310 = vmatpush1.msra.mxu0 0.0
        %311 = vmatprep.subr.mxu0 0.0
        %312 = vmatpush1.msra.mxu0 0.0
        %313 = vmatprep.subr.mxu0 0.0
        %314 = vmatpush1.msra.mxu0 0.0
        %315 = vmatprep.subr.mxu0 0.0
        %316 = vmatpush1.msra.mxu0 %v173
        %317 = vmatprep.subr.mxu0 0.0
        %318 = vmatpush2.msra.mxu0 0.0
        %319 = vmatprep.subr.mxu0 0.0
        %320 = vmatpush2.msra.mxu0 0.0
        %321 = vmatprep.subr.mxu0 0.0
        %322 = vmatpush2.msra.mxu0 0.0
        %323 = vmatprep.subr.mxu0 0.0
        %324 = vmatpush2.msra.mxu0 0.0
        %325 = vmatprep.subr.mxu0 0.0
        %326 = vmatpush2.msra.mxu0 0.0
        %327 = vmatprep.subr.mxu0 0.0
        %328 = vmatpush2.msra.mxu0 0.0
        %329 = vmatprep.subr.mxu0 0.0
        %330 = vmatpush2.msra.mxu0 0.0
        %331 = vmatprep.subr.mxu0 0.0
        %332 = vmatpush2.msra.mxu0 0.0
        %333 = vmatprep.subr.mxu0 0.0
        %334 = vmatpush2.msra.mxu0 0.0
        %335 = vmatprep.subr.mxu0 0.0
        %336 = vmatpush2.msra.mxu0 0.0
        %337 = vmatprep.subr.mxu0 0.0
        %338 = vmatpush2.msra.mxu0 0.0
        %339 = vmatprep.subr.mxu0 0.0
        %340 = vmatpush2.msra.mxu0 0.0
        %341 = vmatprep.subr.mxu0 0.0
        %342 = vmatpush2.msra.mxu0 0.0
        %343 = vmatprep.subr.mxu0 0.0
        %344 = vmatpush2.msra.mxu0 0.0
        %345 = vmatprep.subr.mxu0 0.0
        %346 = vmatpush2.msra.mxu0 0.0
        %347 = vmatprep.subr.mxu0 0.0
        %348 = vmatpush2.msra.mxu0 0.0
        %349 = vmatprep.mubr.f32.mxu0 0.0
        %350 = vmatmul.mubr.f32.gmra.mxu0 %v274
        %v351 = vpop.f32.mrf.mxu0
        %v352 = vadd.f32 0.0, %v351
        %v353 = vpop.f32.mrf.mxu0
        %354 = vmatprep.mubr.f32.mxu0 0.0
        %355 = vmatmul.mubr.f32.gmra.mxu0 %v277
        %v356 = vpop.f32.mrf.mxu0
        %v357 = vadd.f32 0.0, %v356
        %v358 = vpop.f32.mrf.mxu0
        %359 = vmatprep.mubr.f32.mxu0 0.0
        %360 = vmatmul.mubr.f32.gmra.mxu0 %v280
        %v361 = vpop.f32.mrf.mxu0
        %v362 = vadd.f32 0.0, %v361
        %v363 = vpop.f32.mrf.mxu0
        %364 = vmatprep.mubr.f32.mxu0 0.0
        %365 = vmatmul.mubr.f32.gmra.mxu0 %v283
        %v366 = vpop.f32.mrf.mxu0
        %v367 = vadd.f32 0.0, %v366
        %v368 = vpop.f32.mrf.mxu0
        %369 = vdwg.mxu0
        %vm370 = vcmask 261120
        %371 = vst.msk [vmem:[%s163] sm:$0xff] %vm370, %v352
        %372 = vst.msk [vmem:[%s163 + $0x8] sm:$0xff] %vm370, %v357
        %373 = vst.msk [vmem:[%s163 + $0x10] sm:$0xff] %vm370, %v362
        %374 = vst.msk [vmem:[%s163 + $0x18] sm:$0xff] %vm370, %v367
        %s375 = scalar_lea.vmem %s168, 8
        %v376 = vld [vmem:[%s375] sm:$0xff]
        %377 = vmatprep.subr.mxu0 0.0
        %378 = vmatpush1.msra.mxu0 0.0
        %379 = vmatprep.subr.mxu0 0.0
        %380 = vmatpush1.msra.mxu0 0.0
        %381 = vmatprep.subr.mxu0 0.0
        %382 = vmatpush1.msra.mxu0 0.0
        %383 = vmatprep.subr.mxu0 0.0
        %384 = vmatpush1.msra.mxu0 0.0
        %385 = vmatprep.subr.mxu0 0.0
        %386 = vmatpush1.msra.mxu0 0.0
        %387 = vmatprep.subr.mxu0 0.0
        %388 = vmatpush1.msra.mxu0 0.0
        %389 = vmatprep.subr.mxu0 0.0
        %390 = vmatpush1.msra.mxu0 0.0
        %391 = vmatprep.subr.mxu0 0.0
        %392 = vmatpush1.msra.mxu0 0.0
        %393 = vmatprep.subr.mxu0 0.0
        %394 = vmatpush1.msra.mxu0 0.0
        %395 = vmatprep.subr.mxu0 0.0
        %396 = vmatpush1.msra.mxu0 0.0
        %397 = vmatprep.subr.mxu0 0.0
        %398 = vmatpush1.msra.mxu0 0.0
        %399 = vmatprep.subr.mxu0 0.0
        %400 = vmatpush1.msra.mxu0 0.0
        %401 = vmatprep.subr.mxu0 0.0
        %402 = vmatpush1.msra.mxu0 0.0
        %403 = vmatprep.subr.mxu0 0.0
        %404 = vmatpush1.msra.mxu0 0.0
        %405 = vmatprep.subr.mxu0 0.0
        %406 = vmatpush1.msra.mxu0 0.0
        %407 = vmatprep.subr.mxu0 0.0
        %408 = vmatpush1.msra.mxu0 %v376
        %409 = vmatprep.subr.mxu0 0.0
        %410 = vmatpush2.msra.mxu0 0.0
        %411 = vmatprep.subr.mxu0 0.0
        %412 = vmatpush2.msra.mxu0 0.0
        %413 = vmatprep.subr.mxu0 0.0
        %414 = vmatpush2.msra.mxu0 0.0
        %415 = vmatprep.subr.mxu0 0.0
        %416 = vmatpush2.msra.mxu0 0.0
        %417 = vmatprep.subr.mxu0 0.0
        %418 = vmatpush2.msra.mxu0 0.0
        %419 = vmatprep.subr.mxu0 0.0
        %420 = vmatpush2.msra.mxu0 0.0
        %421 = vmatprep.subr.mxu0 0.0
        %422 = vmatpush2.msra.mxu0 0.0
        %423 = vmatprep.subr.mxu0 0.0
        %424 = vmatpush2.msra.mxu0 0.0
        %425 = vmatprep.subr.mxu0 0.0
        %426 = vmatpush2.msra.mxu0 0.0
        %427 = vmatprep.subr.mxu0 0.0
        %428 = vmatpush2.msra.mxu0 0.0
        %429 = vmatprep.subr.mxu0 0.0
        %430 = vmatpush2.msra.mxu0 0.0
        %431 = vmatprep.subr.mxu0 0.0
        %432 = vmatpush2.msra.mxu0 0.0
        %433 = vmatprep.subr.mxu0 0.0
        %434 = vmatpush2.msra.mxu0 0.0
        %435 = vmatprep.subr.mxu0 0.0
        %436 = vmatpush2.msra.mxu0 0.0
        %437 = vmatprep.subr.mxu0 0.0
        %438 = vmatpush2.msra.mxu0 0.0
        %439 = vmatprep.subr.mxu0 0.0
        %440 = vmatpush2.msra.mxu0 0.0
        %441 = vmatprep.mubr.f32.mxu0 0.0
        %442 = vmatmul.mubr.f32.gmra.mxu0 %v177
        %v443 = vpop.f32.mrf.mxu0
        %v444 = vadd.f32 0.0, %v443
        %v445 = vpop.f32.mrf.mxu0
        %446 = vmatprep.mubr.f32.mxu0 0.0
        %447 = vmatmul.mubr.f32.gmra.mxu0 %v180
        %v448 = vpop.f32.mrf.mxu0
        %v449 = vadd.f32 0.0, %v448
        %v450 = vpop.f32.mrf.mxu0
        %451 = vmatprep.mubr.f32.mxu0 0.0
        %452 = vmatmul.mubr.f32.gmra.mxu0 %v183
        %v453 = vpop.f32.mrf.mxu0
        %v454 = vadd.f32 0.0, %v453
        %v455 = vpop.f32.mrf.mxu0
        %456 = vmatprep.mubr.f32.mxu0 0.0
        %457 = vmatmul.mubr.f32.gmra.mxu0 %v186
        %v458 = vpop.f32.mrf.mxu0
        %v459 = vadd.f32 0.0, %v458
        %v460 = vpop.f32.mrf.mxu0
        %461 = vdwg.mxu0
        %v463 = vsel %vm175, %v444, 0
        %v466 = vsel %vm175, %v449, 0
        %v469 = vsel %vm175, %v454, 0
        %v472 = vsel %vm175, %v459, 0
        %474 = vmatprep.subr.mxu0 0.0
        %475 = vmatpush1.msra.mxu0 0.0
        %476 = vmatprep.subr.mxu0 0.0
        %477 = vmatpush1.msra.mxu0 0.0
        %478 = vmatprep.subr.mxu0 0.0
        %479 = vmatpush1.msra.mxu0 0.0
        %480 = vmatprep.subr.mxu0 0.0
        %481 = vmatpush1.msra.mxu0 0.0
        %482 = vmatprep.subr.mxu0 0.0
        %483 = vmatpush1.msra.mxu0 0.0
        %484 = vmatprep.subr.mxu0 0.0
        %485 = vmatpush1.msra.mxu0 0.0
        %486 = vmatprep.subr.mxu0 0.0
        %487 = vmatpush1.msra.mxu0 0.0
        %488 = vmatprep.subr.mxu0 0.0
        %489 = vmatpush1.msra.mxu0 0.0
        %490 = vmatprep.subr.mxu0 0.0
        %491 = vmatpush1.msra.mxu0 0.0
        %492 = vmatprep.subr.mxu0 0.0
        %493 = vmatpush1.msra.mxu0 0.0
        %494 = vmatprep.subr.mxu0 0.0
        %495 = vmatpush1.msra.mxu0 0.0
        %496 = vmatprep.subr.mxu0 0.0
        %497 = vmatpush1.msra.mxu0 0.0
        %498 = vmatprep.subr.mxu0 0.0
        %499 = vmatpush1.msra.mxu0 0.0
        %500 = vmatprep.subr.mxu0 0.0
        %501 = vmatpush1.msra.mxu0 0.0
        %502 = vmatprep.subr.mxu0 0.0
        %503 = vmatpush1.msra.mxu0 0.0
        %504 = vmatprep.subr.mxu0 0.0
        %505 = vmatpush1.msra.mxu0 %v173
        %506 = vmatprep.subr.mxu0 0.0
        %507 = vmatpush2.msra.mxu0 0.0
        %508 = vmatprep.subr.mxu0 0.0
        %509 = vmatpush2.msra.mxu0 0.0
        %510 = vmatprep.subr.mxu0 0.0
        %511 = vmatpush2.msra.mxu0 0.0
        %512 = vmatprep.subr.mxu0 0.0
        %513 = vmatpush2.msra.mxu0 0.0
        %514 = vmatprep.subr.mxu0 0.0
        %515 = vmatpush2.msra.mxu0 0.0
        %516 = vmatprep.subr.mxu0 0.0
        %517 = vmatpush2.msra.mxu0 0.0
        %518 = vmatprep.subr.mxu0 0.0
        %519 = vmatpush2.msra.mxu0 0.0
        %520 = vmatprep.subr.mxu0 0.0
        %521 = vmatpush2.msra.mxu0 0.0
        %522 = vmatprep.subr.mxu0 0.0
        %523 = vmatpush2.msra.mxu0 0.0
        %524 = vmatprep.subr.mxu0 0.0
        %525 = vmatpush2.msra.mxu0 0.0
        %526 = vmatprep.subr.mxu0 0.0
        %527 = vmatpush2.msra.mxu0 0.0
        %528 = vmatprep.subr.mxu0 0.0
        %529 = vmatpush2.msra.mxu0 0.0
        %530 = vmatprep.subr.mxu0 0.0
        %531 = vmatpush2.msra.mxu0 0.0
        %532 = vmatprep.subr.mxu0 0.0
        %533 = vmatpush2.msra.mxu0 0.0
        %534 = vmatprep.subr.mxu0 0.0
        %535 = vmatpush2.msra.mxu0 0.0
        %536 = vmatprep.subr.mxu0 0.0
        %537 = vmatpush2.msra.mxu0 0.0
        %538 = vmatprep.mubr.f32.mxu0 0.0
        %539 = vmatmul.mubr.f32.gmra.mxu0 %v463
        %v540 = vpop.f32.mrf.mxu0
        %v541 = vadd.f32 0.0, %v540
        %v542 = vpop.f32.mrf.mxu0
        %543 = vmatprep.mubr.f32.mxu0 0.0
        %544 = vmatmul.mubr.f32.gmra.mxu0 %v466
        %v545 = vpop.f32.mrf.mxu0
        %v546 = vadd.f32 0.0, %v545
        %v547 = vpop.f32.mrf.mxu0
        %548 = vmatprep.mubr.f32.mxu0 0.0
        %549 = vmatmul.mubr.f32.gmra.mxu0 %v469
        %v550 = vpop.f32.mrf.mxu0
        %v551 = vadd.f32 0.0, %v550
        %v552 = vpop.f32.mrf.mxu0
        %553 = vmatprep.mubr.f32.mxu0 0.0
        %554 = vmatmul.mubr.f32.gmra.mxu0 %v472
        %v555 = vpop.f32.mrf.mxu0
        %v556 = vadd.f32 0.0, %v555
        %v557 = vpop.f32.mrf.mxu0
        %558 = vdwg.mxu0
        %s559 = scalar_lea.vmem %s163, 32 [#allocation2]
        %560 = vst.msk [vmem:[%s559] sm:$0xff] %vm370, %v541
        %561 = vst.msk [vmem:[%s559 + $0x8] sm:$0xff] %vm370, %v546
        %562 = vst.msk [vmem:[%s559 + $0x10] sm:$0xff] %vm370, %v551
        %563 = vst.msk [vmem:[%s559 + $0x18] sm:$0xff] %vm370, %v556
        %s564 = scalar_lea.vmem %s168, 16
        %v565 = vld [vmem:[%s564] sm:$0xff]
        %566 = vmatprep.subr.mxu0 0.0
        %567 = vmatpush1.msra.mxu0 0.0
        %568 = vmatprep.subr.mxu0 0.0
        %569 = vmatpush1.msra.mxu0 0.0
        %570 = vmatprep.subr.mxu0 0.0
        %571 = vmatpush1.msra.mxu0 0.0
        %572 = vmatprep.subr.mxu0 0.0
        %573 = vmatpush1.msra.mxu0 0.0
        %574 = vmatprep.subr.mxu0 0.0
        %575 = vmatpush1.msra.mxu0 0.0
        %576 = vmatprep.subr.mxu0 0.0
        %577 = vmatpush1.msra.mxu0 0.0
        %578 = vmatprep.subr.mxu0 0.0
        %579 = vmatpush1.msra.mxu0 0.0
        %580 = vmatprep.subr.mxu0 0.0
        %581 = vmatpush1.msra.mxu0 0.0
        %582 = vmatprep.subr.mxu0 0.0
        %583 = vmatpush1.msra.mxu0 0.0
        %584 = vmatprep.subr.mxu0 0.0
        %585 = vmatpush1.msra.mxu0 0.0
        %586 = vmatprep.subr.mxu0 0.0
        %587 = vmatpush1.msra.mxu0 0.0
        %588 = vmatprep.subr.mxu0 0.0
        %589 = vmatpush1.msra.mxu0 0.0
        %590 = vmatprep.subr.mxu0 0.0
        %591 = vmatpush1.msra.mxu0 0.0
        %592 = vmatprep.subr.mxu0 0.0
        %593 = vmatpush1.msra.mxu0 0.0
        %594 = vmatprep.subr.mxu0 0.0
        %595 = vmatpush1.msra.mxu0 0.0
        %596 = vmatprep.subr.mxu0 0.0
        %597 = vmatpush1.msra.mxu0 %v565
        %598 = vmatprep.subr.mxu0 0.0
        %599 = vmatpush2.msra.mxu0 0.0
        %600 = vmatprep.subr.mxu0 0.0
        %601 = vmatpush2.msra.mxu0 0.0
        %602 = vmatprep.subr.mxu0 0.0
        %603 = vmatpush2.msra.mxu0 0.0
        %604 = vmatprep.subr.mxu0 0.0
        %605 = vmatpush2.msra.mxu0 0.0
        %606 = vmatprep.subr.mxu0 0.0
        %607 = vmatpush2.msra.mxu0 0.0
        %608 = vmatprep.subr.mxu0 0.0
        %609 = vmatpush2.msra.mxu0 0.0
        %610 = vmatprep.subr.mxu0 0.0
        %611 = vmatpush2.msra.mxu0 0.0
        %612 = vmatprep.subr.mxu0 0.0
        %613 = vmatpush2.msra.mxu0 0.0
        %614 = vmatprep.subr.mxu0 0.0
        %615 = vmatpush2.msra.mxu0 0.0
        %616 = vmatprep.subr.mxu0 0.0
        %617 = vmatpush2.msra.mxu0 0.0
        %618 = vmatprep.subr.mxu0 0.0
        %619 = vmatpush2.msra.mxu0 0.0
        %620 = vmatprep.subr.mxu0 0.0
        %621 = vmatpush2.msra.mxu0 0.0
        %622 = vmatprep.subr.mxu0 0.0
        %623 = vmatpush2.msra.mxu0 0.0
        %624 = vmatprep.subr.mxu0 0.0
        %625 = vmatpush2.msra.mxu0 0.0
        %626 = vmatprep.subr.mxu0 0.0
        %627 = vmatpush2.msra.mxu0 0.0
        %628 = vmatprep.subr.mxu0 0.0
        %629 = vmatpush2.msra.mxu0 0.0
        %630 = vmatprep.mubr.f32.mxu0 0.0
        %631 = vmatmul.mubr.f32.gmra.mxu0 %v177
        %v632 = vpop.f32.mrf.mxu0
        %v633 = vadd.f32 0.0, %v632
        %v634 = vpop.f32.mrf.mxu0
        %635 = vmatprep.mubr.f32.mxu0 0.0
        %636 = vmatmul.mubr.f32.gmra.mxu0 %v180
        %v637 = vpop.f32.mrf.mxu0
        %v638 = vadd.f32 0.0, %v637
        %v639 = vpop.f32.mrf.mxu0
        %640 = vmatprep.mubr.f32.mxu0 0.0
        %641 = vmatmul.mubr.f32.gmra.mxu0 %v183
        %v642 = vpop.f32.mrf.mxu0
        %v643 = vadd.f32 0.0, %v642
        %v644 = vpop.f32.mrf.mxu0
        %645 = vmatprep.mubr.f32.mxu0 0.0
        %646 = vmatmul.mubr.f32.gmra.mxu0 %v186
        %v647 = vpop.f32.mrf.mxu0
        %v648 = vadd.f32 0.0, %v647
        %v649 = vpop.f32.mrf.mxu0
        %650 = vdwg.mxu0
        %v652 = vsel %vm175, %v633, 0
        %v655 = vsel %vm175, %v638, 0
        %v658 = vsel %vm175, %v643, 0
        %v661 = vsel %vm175, %v648, 0
        %663 = vmatprep.subr.mxu0 0.0
        %664 = vmatpush1.msra.mxu0 0.0
        %665 = vmatprep.subr.mxu0 0.0
        %666 = vmatpush1.msra.mxu0 0.0
        %667 = vmatprep.subr.mxu0 0.0
        %668 = vmatpush1.msra.mxu0 0.0
        %669 = vmatprep.subr.mxu0 0.0
        %670 = vmatpush1.msra.mxu0 0.0
        %671 = vmatprep.subr.mxu0 0.0
        %672 = vmatpush1.msra.mxu0 0.0
        %673 = vmatprep.subr.mxu0 0.0
        %674 = vmatpush1.msra.mxu0 0.0
        %675 = vmatprep.subr.mxu0 0.0
        %676 = vmatpush1.msra.mxu0 0.0
        %677 = vmatprep.subr.mxu0 0.0
        %678 = vmatpush1.msra.mxu0 0.0
        %679 = vmatprep.subr.mxu0 0.0
        %680 = vmatpush1.msra.mxu0 0.0
        %681 = vmatprep.subr.mxu0 0.0
        %682 = vmatpush1.msra.mxu0 0.0
        %683 = vmatprep.subr.mxu0 0.0
        %684 = vmatpush1.msra.mxu0 0.0
        %685 = vmatprep.subr.mxu0 0.0
        %686 = vmatpush1.msra.mxu0 0.0
        %687 = vmatprep.subr.mxu0 0.0
        %688 = vmatpush1.msra.mxu0 0.0
        %689 = vmatprep.subr.mxu0 0.0
        %690 = vmatpush1.msra.mxu0 0.0
        %691 = vmatprep.subr.mxu0 0.0
        %692 = vmatpush1.msra.mxu0 0.0
        %693 = vmatprep.subr.mxu0 0.0
        %694 = vmatpush1.msra.mxu0 %v173
        %695 = vmatprep.subr.mxu0 0.0
        %696 = vmatpush2.msra.mxu0 0.0
        %697 = vmatprep.subr.mxu0 0.0
        %698 = vmatpush2.msra.mxu0 0.0
        %699 = vmatprep.subr.mxu0 0.0
        %700 = vmatpush2.msra.mxu0 0.0
        %701 = vmatprep.subr.mxu0 0.0
        %702 = vmatpush2.msra.mxu0 0.0
        %703 = vmatprep.subr.mxu0 0.0
        %704 = vmatpush2.msra.mxu0 0.0
        %705 = vmatprep.subr.mxu0 0.0
        %706 = vmatpush2.msra.mxu0 0.0
        %707 = vmatprep.subr.mxu0 0.0
        %708 = vmatpush2.msra.mxu0 0.0
        %709 = vmatprep.subr.mxu0 0.0
        %710 = vmatpush2.msra.mxu0 0.0
        %711 = vmatprep.subr.mxu0 0.0
        %712 = vmatpush2.msra.mxu0 0.0
        %713 = vmatprep.subr.mxu0 0.0
        %714 = vmatpush2.msra.mxu0 0.0
        %715 = vmatprep.subr.mxu0 0.0
        %716 = vmatpush2.msra.mxu0 0.0
        %717 = vmatprep.subr.mxu0 0.0
        %718 = vmatpush2.msra.mxu0 0.0
        %719 = vmatprep.subr.mxu0 0.0
        %720 = vmatpush2.msra.mxu0 0.0
        %721 = vmatprep.subr.mxu0 0.0
        %722 = vmatpush2.msra.mxu0 0.0
        %723 = vmatprep.subr.mxu0 0.0
        %724 = vmatpush2.msra.mxu0 0.0
        %725 = vmatprep.subr.mxu0 0.0
        %726 = vmatpush2.msra.mxu0 0.0
        %727 = vmatprep.mubr.f32.mxu0 0.0
        %728 = vmatmul.mubr.f32.gmra.mxu0 %v652
        %v729 = vpop.f32.mrf.mxu0
        %v730 = vadd.f32 0.0, %v729
        %v731 = vpop.f32.mrf.mxu0
        %732 = vmatprep.mubr.f32.mxu0 0.0
        %733 = vmatmul.mubr.f32.gmra.mxu0 %v655
        %v734 = vpop.f32.mrf.mxu0
        %v735 = vadd.f32 0.0, %v734
        %v736 = vpop.f32.mrf.mxu0
        %737 = vmatprep.mubr.f32.mxu0 0.0
        %738 = vmatmul.mubr.f32.gmra.mxu0 %v658
        %v739 = vpop.f32.mrf.mxu0
        %v740 = vadd.f32 0.0, %v739
        %v741 = vpop.f32.mrf.mxu0
        %742 = vmatprep.mubr.f32.mxu0 0.0
        %743 = vmatmul.mubr.f32.gmra.mxu0 %v661
        %v744 = vpop.f32.mrf.mxu0
        %v745 = vadd.f32 0.0, %v744
        %v746 = vpop.f32.mrf.mxu0
        %747 = vdwg.mxu0
        %s748 = scalar_lea.vmem %s163, 64 [#allocation2]
        %749 = vst.msk [vmem:[%s748] sm:$0xff] %vm370, %v730
        %750 = vst.msk [vmem:[%s748 + $0x8] sm:$0xff] %vm370, %v735
        %751 = vst.msk [vmem:[%s748 + $0x10] sm:$0xff] %vm370, %v740
        %752 = vst.msk [vmem:[%s748 + $0x18] sm:$0xff] %vm370, %v745
        %s753 = scalar_lea.vmem %s168, 24
        %v754 = vld [vmem:[%s753] sm:$0xff]
        %755 = vmatprep.subr.mxu0 0.0
        %756 = vmatpush1.msra.mxu0 0.0
        %757 = vmatprep.subr.mxu0 0.0
        %758 = vmatpush1.msra.mxu0 0.0
        %759 = vmatprep.subr.mxu0 0.0
        %760 = vmatpush1.msra.mxu0 0.0
        %761 = vmatprep.subr.mxu0 0.0
        %762 = vmatpush1.msra.mxu0 0.0
        %763 = vmatprep.subr.mxu0 0.0
        %764 = vmatpush1.msra.mxu0 0.0
        %765 = vmatprep.subr.mxu0 0.0
        %766 = vmatpush1.msra.mxu0 0.0
        %767 = vmatprep.subr.mxu0 0.0
        %768 = vmatpush1.msra.mxu0 0.0
        %769 = vmatprep.subr.mxu0 0.0
        %770 = vmatpush1.msra.mxu0 0.0
        %771 = vmatprep.subr.mxu0 0.0
        %772 = vmatpush1.msra.mxu0 0.0
        %773 = vmatprep.subr.mxu0 0.0
        %774 = vmatpush1.msra.mxu0 0.0
        %775 = vmatprep.subr.mxu0 0.0
        %776 = vmatpush1.msra.mxu0 0.0
        %777 = vmatprep.subr.mxu0 0.0
        %778 = vmatpush1.msra.mxu0 0.0
        %779 = vmatprep.subr.mxu0 0.0
        %780 = vmatpush1.msra.mxu0 0.0
        %781 = vmatprep.subr.mxu0 0.0
        %782 = vmatpush1.msra.mxu0 0.0
        %783 = vmatprep.subr.mxu0 0.0
        %784 = vmatpush1.msra.mxu0 0.0
        %785 = vmatprep.subr.mxu0 0.0
        %786 = vmatpush1.msra.mxu0 %v754
        %787 = vmatprep.subr.mxu0 0.0
        %788 = vmatpush2.msra.mxu0 0.0
        %789 = vmatprep.subr.mxu0 0.0
        %790 = vmatpush2.msra.mxu0 0.0
        %791 = vmatprep.subr.mxu0 0.0
        %792 = vmatpush2.msra.mxu0 0.0
        %793 = vmatprep.subr.mxu0 0.0
        %794 = vmatpush2.msra.mxu0 0.0
        %795 = vmatprep.subr.mxu0 0.0
        %796 = vmatpush2.msra.mxu0 0.0
        %797 = vmatprep.subr.mxu0 0.0
        %798 = vmatpush2.msra.mxu0 0.0
        %799 = vmatprep.subr.mxu0 0.0
        %800 = vmatpush2.msra.mxu0 0.0
        %801 = vmatprep.subr.mxu0 0.0
        %802 = vmatpush2.msra.mxu0 0.0
        %803 = vmatprep.subr.mxu0 0.0
        %804 = vmatpush2.msra.mxu0 0.0
        %805 = vmatprep.subr.mxu0 0.0
        %806 = vmatpush2.msra.mxu0 0.0
        %807 = vmatprep.subr.mxu0 0.0
        %808 = vmatpush2.msra.mxu0 0.0
        %809 = vmatprep.subr.mxu0 0.0
        %810 = vmatpush2.msra.mxu0 0.0
        %811 = vmatprep.subr.mxu0 0.0
        %812 = vmatpush2.msra.mxu0 0.0
        %813 = vmatprep.subr.mxu0 0.0
        %814 = vmatpush2.msra.mxu0 0.0
        %815 = vmatprep.subr.mxu0 0.0
        %816 = vmatpush2.msra.mxu0 0.0
        %817 = vmatprep.subr.mxu0 0.0
        %818 = vmatpush2.msra.mxu0 0.0
        %819 = vmatprep.mubr.f32.mxu0 0.0
        %820 = vmatmul.mubr.f32.gmra.mxu0 %v177
        %v821 = vpop.f32.mrf.mxu0
        %v822 = vadd.f32 0.0, %v821
        %v823 = vpop.f32.mrf.mxu0
        %824 = vmatprep.mubr.f32.mxu0 0.0
        %825 = vmatmul.mubr.f32.gmra.mxu0 %v180
        %v826 = vpop.f32.mrf.mxu0
        %v827 = vadd.f32 0.0, %v826
        %v828 = vpop.f32.mrf.mxu0
        %829 = vmatprep.mubr.f32.mxu0 0.0
        %830 = vmatmul.mubr.f32.gmra.mxu0 %v183
        %v831 = vpop.f32.mrf.mxu0
        %v832 = vadd.f32 0.0, %v831
        %v833 = vpop.f32.mrf.mxu0
        %834 = vmatprep.mubr.f32.mxu0 0.0
        %835 = vmatmul.mubr.f32.gmra.mxu0 %v186
        %v836 = vpop.f32.mrf.mxu0
        %v837 = vadd.f32 0.0, %v836
        %v838 = vpop.f32.mrf.mxu0
        %839 = vdwg.mxu0
        %v841 = vsel %vm175, %v822, 0
        %v844 = vsel %vm175, %v827, 0
        %v847 = vsel %vm175, %v832, 0
        %v850 = vsel %vm175, %v837, 0
        %852 = vmatprep.subr.mxu0 0.0
        %853 = vmatpush1.msra.mxu0 0.0
        %854 = vmatprep.subr.mxu0 0.0
        %855 = vmatpush1.msra.mxu0 0.0
        %856 = vmatprep.subr.mxu0 0.0
        %857 = vmatpush1.msra.mxu0 0.0
        %858 = vmatprep.subr.mxu0 0.0
        %859 = vmatpush1.msra.mxu0 0.0
        %860 = vmatprep.subr.mxu0 0.0
        %861 = vmatpush1.msra.mxu0 0.0
        %862 = vmatprep.subr.mxu0 0.0
        %863 = vmatpush1.msra.mxu0 0.0
        %864 = vmatprep.subr.mxu0 0.0
        %865 = vmatpush1.msra.mxu0 0.0
        %866 = vmatprep.subr.mxu0 0.0
        %867 = vmatpush1.msra.mxu0 0.0
        %868 = vmatprep.subr.mxu0 0.0
        %869 = vmatpush1.msra.mxu0 0.0
        %870 = vmatprep.subr.mxu0 0.0
        %871 = vmatpush1.msra.mxu0 0.0
        %872 = vmatprep.subr.mxu0 0.0
        %873 = vmatpush1.msra.mxu0 0.0
        %874 = vmatprep.subr.mxu0 0.0
        %875 = vmatpush1.msra.mxu0 0.0
        %876 = vmatprep.subr.mxu0 0.0
        %877 = vmatpush1.msra.mxu0 0.0
        %878 = vmatprep.subr.mxu0 0.0
        %879 = vmatpush1.msra.mxu0 0.0
        %880 = vmatprep.subr.mxu0 0.0
        %881 = vmatpush1.msra.mxu0 0.0
        %882 = vmatprep.subr.mxu0 0.0
        %883 = vmatpush1.msra.mxu0 %v173
        %884 = vmatprep.subr.mxu0 0.0
        %885 = vmatpush2.msra.mxu0 0.0
        %886 = vmatprep.subr.mxu0 0.0
        %887 = vmatpush2.msra.mxu0 0.0
        %888 = vmatprep.subr.mxu0 0.0
        %889 = vmatpush2.msra.mxu0 0.0
        %890 = vmatprep.subr.mxu0 0.0
        %891 = vmatpush2.msra.mxu0 0.0
        %892 = vmatprep.subr.mxu0 0.0
        %893 = vmatpush2.msra.mxu0 0.0
        %894 = vmatprep.subr.mxu0 0.0
        %895 = vmatpush2.msra.mxu0 0.0
        %896 = vmatprep.subr.mxu0 0.0
        %897 = vmatpush2.msra.mxu0 0.0
        %898 = vmatprep.subr.mxu0 0.0
        %899 = vmatpush2.msra.mxu0 0.0
        %900 = vmatprep.subr.mxu0 0.0
        %901 = vmatpush2.msra.mxu0 0.0
        %902 = vmatprep.subr.mxu0 0.0
        %903 = vmatpush2.msra.mxu0 0.0
        %904 = vmatprep.subr.mxu0 0.0
        %905 = vmatpush2.msra.mxu0 0.0
        %906 = vmatprep.subr.mxu0 0.0
        %907 = vmatpush2.msra.mxu0 0.0
        %908 = vmatprep.subr.mxu0 0.0
        %909 = vmatpush2.msra.mxu0 0.0
        %910 = vmatprep.subr.mxu0 0.0
        %911 = vmatpush2.msra.mxu0 0.0
        %912 = vmatprep.subr.mxu0 0.0
        %913 = vmatpush2.msra.mxu0 0.0
        %914 = vmatprep.subr.mxu0 0.0
        %915 = vmatpush2.msra.mxu0 0.0
        %916 = vmatprep.mubr.f32.mxu0 0.0
        %917 = vmatmul.mubr.f32.gmra.mxu0 %v841
        %v918 = vpop.f32.mrf.mxu0
        %v919 = vadd.f32 0.0, %v918
        %v920 = vpop.f32.mrf.mxu0
        %921 = vmatprep.mubr.f32.mxu0 0.0
        %922 = vmatmul.mubr.f32.gmra.mxu0 %v844
        %v923 = vpop.f32.mrf.mxu0
        %v924 = vadd.f32 0.0, %v923
        %v925 = vpop.f32.mrf.mxu0
        %926 = vmatprep.mubr.f32.mxu0 0.0
        %927 = vmatmul.mubr.f32.gmra.mxu0 %v847
        %v928 = vpop.f32.mrf.mxu0
        %v929 = vadd.f32 0.0, %v928
        %v930 = vpop.f32.mrf.mxu0
        %931 = vmatprep.mubr.f32.mxu0 0.0
        %932 = vmatmul.mubr.f32.gmra.mxu0 %v850
        %v933 = vpop.f32.mrf.mxu0
        %v934 = vadd.f32 0.0, %v933
        %v935 = vpop.f32.mrf.mxu0
        %936 = vdwg.mxu0
        %s937 = scalar_lea.vmem %s163, 96 [#allocation2]
        %938 = vst.msk [vmem:[%s937] sm:$0xff] %vm370, %v919
        %939 = vst.msk [vmem:[%s937 + $0x8] sm:$0xff] %vm370, %v924
        %940 = vst.msk [vmem:[%s937 + $0x10] sm:$0xff] %vm370, %v929
        %941 = vst.msk [vmem:[%s937 + $0x18] sm:$0xff] %vm370, %v934
        %s942 = sand.u32 %s93, 1
        %s943 = scalar_lea.sflag [#allocation3], %s942
        %s944 = sand.u32 %s93, 1
        %s945 = smul.addr %s944, 128
        %s946 = scalar_lea.vmem [#allocation2], %s945
        // Predicated region
        $region33: #{prompt_aux_selfa_forward.3} parent=31 // pred_check
          %p947 = pneg %p103
        $region34: #{prompt_aux_selfa_forward.3} parent=31 // pred_check_branch
          %949 = sbr.rel (%p947) target = $region36
        $region35: #{prompt_aux_selfa_forward.3} parent=31 // pred_region
          %s951 = ssub.s32 2048, 2048
          %952 = vsyncadd %s943, %s951
          %s953 = smul.addr %s17, 16
          %s954 = smul.addr %s953, 128
          %s955 = scalar_lea.hbm %s3, %s954
          %s956 = sshll.u32 %s946, 4
          %s957 = int_to_ptr.vmem [resolvable:$true] %s956
          %962 = dma.vmem_to_hbm [thread:$0]  %s957, 2048, %s955, %s943, 128, 128, 8
        $region36: #{prompt_aux_selfa_forward.3} parent=31 // pred_fallthru
          _
      $region32: #{prompt_aux_selfa_forward.3} parent=5 // pred_fallthru
        _
      %p963 = scmp.le.s32.totalorder 2, %s12
      // Predicated region
      $region37: #{prompt_aux_selfa_forward.3} parent=5 // pred_check
        %p964 = pneg %p963
      $region38: #{prompt_aux_selfa_forward.3} parent=5 // pred_check_branch
        %966 = sbr.rel (%p964) target = $region40
      $region39: #{prompt_aux_selfa_forward.3} parent=5 // pred_region
        %s967 = ssub.s32 %s12, 2
        // Predicated region
        $region41: #{prompt_aux_selfa_forward.3} parent=39 // pred_check
          %p968 = pneg %p109
        $region42: #{prompt_aux_selfa_forward.3} parent=39 // pred_check_branch
          %970 = sbr.rel (%p968) target = $region44
        $region43: #{prompt_aux_selfa_forward.3} parent=39 // pred_region
          %s971 = sand.u32 %s94, 1
          %s972 = scalar_lea.sflag [#allocation3], %s971
          %s973 = sand.u32 %s94, 1
          %s974 = smul.addr %s973, 128
          %s975 = scalar_lea.vmem [#allocation2], %s974
          %976 = dma.done %s972, 2048
        $region44: #{prompt_aux_selfa_forward.3} parent=39 // pred_fallthru
          _
      $region40: #{prompt_aux_selfa_forward.3} parent=5 // pred_fallthru
        _
    $region6: #{prompt_aux_selfa_forward.3} parent=1 // loop_footer
      %s16 = sadd.s32 1, %s12
    $region7: #{prompt_aux_selfa_forward.3} parent=1 // loop_footer_branch
      %11 = sbr.rel target = $region3
    $region8: #{prompt_aux_selfa_forward.3} parent=1 // loop_exit
      _
    %977 = vsyncpa [#allocation3], 1
    %s978 = scalar_lea.sflag [#allocation3], 1
    %979 = vsyncpa %s978, 1

// kernel: prompt_aux_selfa_forward.2
$region0: #{prompt_aux_selfa_forward.2}
  #allocation0 [shape = 'u32[]', space=smem, size = 0x4, offset = 0x4, fixed_abs, tag = 'smem constant byte address 0x4 - core index']
  #allocation1 [shape = 'u32[144,128]{1,0:T(1,128)}', space=vmem, size = 0x12000, scoped, tag = 'internal scratch']
  %s0 = inlined_call_operand.hbm [shape: f32[2,4,512], index: 0, kind: input, shape index: {}]
  %s1 = inlined_call_operand.hbm [shape: f32[2,4,512], index: 1, kind: input, shape index: {}]
  %s2 = inlined_call_operand.vmem [shape: f32[1,512], index: 2, kind: input, shape index: {}]
  %s3 = inlined_call_operand.hbm [shape: f32[2,64,384], index: 3, kind: input, shape index: {}]
  %s4 = inlined_call_operand.hbm [shape: f32[384,512], index: 4, kind: input, shape index: {}]
  %s5 = inlined_call_operand.vmem [shape: f32[1,512], index: 5, kind: input, shape index: {}]
  %s6 = inlined_call_operand.hbm [shape: f32[2,64,512], index: 6, kind: input, shape index: {}]
  %s7 = inlined_call_operand.vmem [shape: f32[2,4,64], index: 7, kind: output, shape index: {0}]
  %s8 = inlined_call_operand.vmem [shape: f32[2,4,64], index: 8, kind: output, shape index: {1}]
  %9 = xla_tuple %s7, %s8
  %s10 = sld [smem:[#allocation0]]
  $region89: #{prompt_aux_selfa_forward.2} parent=0
    _
  %s12 = ssub.s32 1, %s10
  %s13 = scalar_select 0, %s12, %s10
  $region1: #{prompt_aux_selfa_forward.2} parent=0
    #allocation2 [shape = 'u8[16384]{0}', space=vmem, size = 0x4000, scoped, tag = 'input window, operand 0']
    #allocation3 [shape = 's32[2]{0}', space=sflag, size = 0x8, scoped, tag = 'scoped memory for prompt_aux_selfa_forward.2']
    #allocation4 [shape = 'u8[16384]{0}', space=vmem, size = 0x4000, scoped, tag = 'input window, operand 1']
    #allocation5 [shape = 's32[2]{0}', space=sflag, size = 0x8, scoped, tag = 'scoped memory for prompt_aux_selfa_forward.2']
    #allocation6 [shape = 'u8[196608]{0}', space=vmem, size = 0x30000, scoped, tag = 'input window, operand 3']
    #allocation7 [shape = 'u8[786432]{0}', space=vmem, size = 0xc0000, scoped, tag = 'input window, operand 4, single buffered']
    #allocation8 [shape = 's32[1]{0}', space=sflag, size = 0x4, scoped, tag = 'scoped memory for prompt_aux_selfa_forward.2']
    #allocation9 [shape = 'u8[262144]{0}', space=vmem, size = 0x40000, scoped, tag = 'input window, operand 6']
    %14 = vsyncpa [#allocation3], 0
    %s15 = scalar_lea.sflag [#allocation3], 1
    %16 = vsyncpa %s15, 0
    %17 = vsyncpa [#allocation5], 0
    %s18 = scalar_lea.sflag [#allocation5], 1
    %19 = vsyncpa %s18, 0
    %20 = vsyncpa [#allocation8], 0
    loop: start=0, step=1, limit=4
    $region2: #{prompt_aux_selfa_forward.2} parent=1 // loop_pre_header
      _
    $region3: #{prompt_aux_selfa_forward.2} parent=1 // loop_header
      %s22 = sphi 0, %s26
      %p23 = scmp.ge.s32.totalorder %s22, 4
      %s32 = sphi 0, %s34
      %s35 = sphi 0, %s32
      %s36 = sphi 0, %s35
      %s52 = sphi 0, %s36
      %s58 = sphi 0, %s60
      %s61 = sphi 0, %s58
      %s62 = sphi 0, %s61
      %s78 = sphi 0, %s62
      %s82 = sphi 0, %s82
      %s84 = sphi 0, %s82
      %s85 = sphi 0, %s84
      %s99 = sphi 0, %s85
      %s105 = sphi 0, %s107
      %s108 = sphi 0, %s105
      %s109 = sphi 0, %s108
      %s125 = sphi 0, %s109
      %s129 = sphi 0, %s129
      %s131 = sphi 0, %s129
      %s132 = sphi 0, %s131
      %s146 = sphi 0, %s132
      %s150 = sphi 0, %s150
      %s152 = sphi 0, %s150
      %s153 = sphi 0, %s152
      %s167 = sphi 0, %s153
      %s173 = sphi 0, %s175
      %s176 = sphi 0, %s173
      %s177 = sphi 0, %s176
      %s193 = sphi 0, %s177
      %s199 = sphi 0, %s201
      %s202 = sphi 0, %s199
      %s203 = sphi 0, %s202
      %s219 = sphi 0, %s203
      %s225 = sphi 0, %s227
      %s228 = sphi 0, %s225
      %s229 = sphi 0, %s228
      %s245 = sphi 0, %s229
    $region4: #{prompt_aux_selfa_forward.2} parent=1 // loop_header_branch
      %25 = sbr.rel (%p23) target = $region8
    $region5: #{prompt_aux_selfa_forward.2} parent=1 // loop_body
      %s27 = ssub.s32 %s22, 1
      %s28 = ssub.s32 %s22, 2
      %s29 = sadd.s32 %s22, 1
      %s30 = ssub.s32 %s22, %s29
      %p31 = scmp.eq.s32.totalorder %s30, 0
      %s33 = sadd.s32 %s32, 1
      %s34 = scalar_select %p31, %s32, %s33
      %p37 = pneg %p31
      %p38 = scmp.eq.s32.totalorder %s22, 1
      %p39 = por %p37, %p38
      %p40 = scmp.ne.s32.totalorder %s32, %s35
      %p41 = scmp.eq.s32.totalorder %s22, 0
      %p42 = por %p40, %p41
      %p43 = scmp.ne.s32.totalorder %s32, %s35
      %p44 = scmp.eq.s32.totalorder %s27, 1
      %p45 = por %p43, %p44
      %p46 = scmp.ne.s32.totalorder %s35, %s36
      %p47 = scmp.eq.s32.totalorder %s27, 0
      %p48 = por %p46, %p47
      %p49 = scmp.ne.s32.totalorder %s35, %s36
      %p50 = scmp.eq.s32.totalorder %s28, 1
      %p51 = por %p49, %p50
      %p53 = scmp.ne.s32.totalorder %s36, %s52
      %p54 = scmp.eq.s32.totalorder %s28, 0
      %p55 = por %p53, %p54
      %s56 = ssub.s32 %s22, %s29
      %p57 = scmp.eq.s32.totalorder %s56, 0
      %s59 = sadd.s32 %s58, 1
      %s60 = scalar_select %p57, %s58, %s59
      %p63 = pneg %p57
      %p64 = scmp.eq.s32.totalorder %s22, 1
      %p65 = por %p63, %p64
      %p66 = scmp.ne.s32.totalorder %s58, %s61
      %p67 = scmp.eq.s32.totalorder %s22, 0
      %p68 = por %p66, %p67
      %p69 = scmp.ne.s32.totalorder %s58, %s61
      %p70 = scmp.eq.s32.totalorder %s27, 1
      %p71 = por %p69, %p70
      %p72 = scmp.ne.s32.totalorder %s61, %s62
      %p73 = scmp.eq.s32.totalorder %s27, 0
      %p74 = por %p72, %p73
      %p75 = scmp.ne.s32.totalorder %s61, %s62
      %p76 = scmp.eq.s32.totalorder %s28, 1
      %p77 = por %p75, %p76
      %p79 = scmp.ne.s32.totalorder %s62, %s78
      %p80 = scmp.eq.s32.totalorder %s28, 0
      %p81 = por %p79, %p80
      %s83 = sadd.s32 %s82, 1
      %p86 = scmp.eq.s32.totalorder %s22, 1
      %p87 = scmp.ne.s32.totalorder %s82, %s84
      %p88 = scmp.eq.s32.totalorder %s22, 0
      %p89 = por %p87, %p88
      %p90 = scmp.ne.s32.totalorder %s82, %s84
      %p91 = scmp.eq.s32.totalorder %s27, 1
      %p92 = por %p90, %p91
      %p93 = scmp.ne.s32.totalorder %s84, %s85
      %p94 = scmp.eq.s32.totalorder %s27, 0
      %p95 = por %p93, %p94
      %p96 = scmp.ne.s32.totalorder %s84, %s85
      %p97 = scmp.eq.s32.totalorder %s28, 1
      %p98 = por %p96, %p97
      %p100 = scmp.ne.s32.totalorder %s85, %s99
      %p101 = scmp.eq.s32.totalorder %s28, 0
      %p102 = por %p100, %p101
      %s103 = ssub.s32 %s22, %s29
      %p104 = scmp.eq.s32.totalorder %s103, 0
      %s106 = sadd.s32 %s105, 1
      %s107 = scalar_select %p104, %s105, %s106
      %p110 = pneg %p104
      %p111 = scmp.eq.s32.totalorder %s22, 1
      %p112 = por %p110, %p111
      %p113 = scmp.ne.s32.totalorder %s105, %s108
      %p114 = scmp.eq.s32.totalorder %s22, 0
      %p115 = por %p113, %p114
      %p116 = scmp.ne.s32.totalorder %s105, %s108
      %p117 = scmp.eq.s32.totalorder %s27, 1
      %p118 = por %p116, %p117
      %p119 = scmp.ne.s32.totalorder %s108, %s109
      %p120 = scmp.eq.s32.totalorder %s27, 0
      %p121 = por %p119, %p120
      %p122 = scmp.ne.s32.totalorder %s108, %s109
      %p123 = scmp.eq.s32.totalorder %s28, 1
      %p124 = por %p122, %p123
      %p126 = scmp.ne.s32.totalorder %s109, %s125
      %p127 = scmp.eq.s32.totalorder %s28, 0
      %p128 = por %p126, %p127
      %s130 = sadd.s32 %s129, 1
      %p133 = scmp.eq.s32.totalorder %s22, 1
      %p134 = scmp.ne.s32.totalorder %s129, %s131
      %p135 = scmp.eq.s32.totalorder %s22, 0
      %p136 = por %p134, %p135
      %p137 = scmp.ne.s32.totalorder %s129, %s131
      %p138 = scmp.eq.s32.totalorder %s27, 1
      %p139 = por %p137, %p138
      %p140 = scmp.ne.s32.totalorder %s131, %s132
      %p141 = scmp.eq.s32.totalorder %s27, 0
      %p142 = por %p140, %p141
      %p143 = scmp.ne.s32.totalorder %s131, %s132
      %p144 = scmp.eq.s32.totalorder %s28, 1
      %p145 = por %p143, %p144
      %p147 = scmp.ne.s32.totalorder %s132, %s146
      %p148 = scmp.eq.s32.totalorder %s28, 0
      %p149 = por %p147, %p148
      %s151 = sadd.s32 %s150, 1
      %p154 = scmp.eq.s32.totalorder %s22, 1
      %p155 = scmp.ne.s32.totalorder %s150, %s152
      %p156 = scmp.eq.s32.totalorder %s22, 0
      %p157 = por %p155, %p156
      %p158 = scmp.ne.s32.totalorder %s150, %s152
      %p159 = scmp.eq.s32.totalorder %s27, 1
      %p160 = por %p158, %p159
      %p161 = scmp.ne.s32.totalorder %s152, %s153
      %p162 = scmp.eq.s32.totalorder %s27, 0
      %p163 = por %p161, %p162
      %p164 = scmp.ne.s32.totalorder %s152, %s153
      %p165 = scmp.eq.s32.totalorder %s28, 1
      %p166 = por %p164, %p165
      %p168 = scmp.ne.s32.totalorder %s153, %s167
      %p169 = scmp.eq.s32.totalorder %s28, 0
      %p170 = por %p168, %p169
      %s171 = ssub.s32 %s22, %s29
      %p172 = scmp.eq.s32.totalorder %s171, 0
      %s174 = sadd.s32 %s173, 1
      %s175 = scalar_select %p172, %s173, %s174
      %p178 = pneg %p172
      %p179 = scmp.eq.s32.totalorder %s22, 1
      %p180 = por %p178, %p179
      %p181 = scmp.ne.s32.totalorder %s173, %s176
      %p182 = scmp.eq.s32.totalorder %s22, 0
      %p183 = por %p181, %p182
      %p184 = scmp.ne.s32.totalorder %s173, %s176
      %p185 = scmp.eq.s32.totalorder %s27, 1
      %p186 = por %p184, %p185
      %p187 = scmp.ne.s32.totalorder %s176, %s177
      %p188 = scmp.eq.s32.totalorder %s27, 0
      %p189 = por %p187, %p188
      %p190 = scmp.ne.s32.totalorder %s176, %s177
      %p191 = scmp.eq.s32.totalorder %s28, 1
      %p192 = por %p190, %p191
      %p194 = scmp.ne.s32.totalorder %s177, %s193
      %p195 = scmp.eq.s32.totalorder %s28, 0
      %p196 = por %p194, %p195
      %s197 = ssub.s32 %s22, %s29
      %p198 = scmp.eq.s32.totalorder %s197, 0
      %s200 = sadd.s32 %s199, 1
      %s201 = scalar_select %p198, %s199, %s200
      %p204 = pneg %p198
      %p205 = scmp.eq.s32.totalorder %s22, 1
      %p206 = por %p204, %p205
      %p207 = scmp.ne.s32.totalorder %s199, %s202
      %p208 = scmp.eq.s32.totalorder %s22, 0
      %p209 = por %p207, %p208
      %p210 = scmp.ne.s32.totalorder %s199, %s202
      %p211 = scmp.eq.s32.totalorder %s27, 1
      %p212 = por %p210, %p211
      %p213 = scmp.ne.s32.totalorder %s202, %s203
      %p214 = scmp.eq.s32.totalorder %s27, 0
      %p215 = por %p213, %p214
      %p216 = scmp.ne.s32.totalorder %s202, %s203
      %p217 = scmp.eq.s32.totalorder %s28, 1
      %p218 = por %p216, %p217
      %p220 = scmp.ne.s32.totalorder %s203, %s219
      %p221 = scmp.eq.s32.totalorder %s28, 0
      %p222 = por %p220, %p221
      %s223 = ssub.s32 %s22, %s29
      %p224 = scmp.eq.s32.totalorder %s223, 0
      %s226 = sadd.s32 %s225, 1
      %s227 = scalar_select %p224, %s225, %s226
      %p230 = pneg %p224
      %p231 = scmp.eq.s32.totalorder %s22, 1
      %p232 = por %p230, %p231
      %p233 = scmp.ne.s32.totalorder %s225, %s228
      %p234 = scmp.eq.s32.totalorder %s22, 0
      %p235 = por %p233, %p234
      %p236 = scmp.ne.s32.totalorder %s225, %s228
      %p237 = scmp.eq.s32.totalorder %s27, 1
      %p238 = por %p236, %p237
      %p239 = scmp.ne.s32.totalorder %s228, %s229
      %p240 = scmp.eq.s32.totalorder %s27, 0
      %p241 = por %p239, %p240
      %p242 = scmp.ne.s32.totalorder %s228, %s229
      %p243 = scmp.eq.s32.totalorder %s28, 1
      %p244 = por %p242, %p243
      %p246 = scmp.ne.s32.totalorder %s229, %s245
      %p247 = scmp.eq.s32.totalorder %s28, 0
      %p248 = por %p246, %p247
      %p249 = scmp.le.s32.totalorder 1, %s22
      %p250 = scmp.lt.s32.totalorder %s22, 3
      %p251 = pnand %p249, %p250
      %p252 = pneg %p251
      // Predicated region
      $region9: #{prompt_aux_selfa_forward.2} parent=5 // pred_check
        _
      $region10: #{prompt_aux_selfa_forward.2} parent=5 // pred_check_branch
        %254 = sbr.rel (%p251) target = $region12
      $region11: #{prompt_aux_selfa_forward.2} parent=5 // pred_region
        %s255 = ssub.s32 %s22, 1
        // Predicated region
        $region13: #{prompt_aux_selfa_forward.2} parent=11 // pred_check
          %p256 = pneg %p95
        $region14: #{prompt_aux_selfa_forward.2} parent=11 // pred_check_branch
          %258 = sbr.rel (%p256) target = $region16
        $region15: #{prompt_aux_selfa_forward.2} parent=11 // pred_region
          _
        $region16: #{prompt_aux_selfa_forward.2} parent=11 // pred_fallthru
          _
        // Predicated region
        $region17: #{prompt_aux_selfa_forward.2} parent=11 // pred_check
          %p259 = pneg %p142
        $region18: #{prompt_aux_selfa_forward.2} parent=11 // pred_check_branch
          %261 = sbr.rel (%p259) target = $region20
        $region19: #{prompt_aux_selfa_forward.2} parent=11 // pred_region
          %s263 = ssub.s32 24576, 24576
          %264 = vsyncadd [#allocation8], %s263
          %s265 = sshll.u32 [#allocation7], 4
          %s266 = int_to_ptr.vmem [resolvable:$true] %s265
          %271 = dma.hbm_to_vmem [thread:$0]  %s4, 24576, %s266, [#allocation8], 512, 512, 32
        $region20: #{prompt_aux_selfa_forward.2} parent=11 // pred_fallthru
          _
        // Predicated region
        $region21: #{prompt_aux_selfa_forward.2} parent=11 // pred_check
          %p272 = pneg %p163
        $region22: #{prompt_aux_selfa_forward.2} parent=11 // pred_check_branch
          %274 = sbr.rel (%p272) target = $region24
        $region23: #{prompt_aux_selfa_forward.2} parent=11 // pred_region
          _
        $region24: #{prompt_aux_selfa_forward.2} parent=11 // pred_fallthru
          _
      $region12: #{prompt_aux_selfa_forward.2} parent=5 // pred_fallthru
        _
      %p275 = scmp.lt.s32.totalorder %s22, 2
      // Predicated region
      $region25: #{prompt_aux_selfa_forward.2} parent=5 // pred_check
        %p276 = pneg %p275
      $region26: #{prompt_aux_selfa_forward.2} parent=5 // pred_check_branch
        %278 = sbr.rel (%p276) target = $region28
      $region27: #{prompt_aux_selfa_forward.2} parent=5 // pred_region
        // Predicated region
        $region29: #{prompt_aux_selfa_forward.2} parent=27 // pred_check
          %p279 = pneg %p42
        $region30: #{prompt_aux_selfa_forward.2} parent=27 // pred_check_branch
          %281 = sbr.rel (%p279) target = $region32
        $region31: #{prompt_aux_selfa_forward.2} parent=27 // pred_region
          %s282 = sand.u32 %s22, 1
          %s283 = scalar_lea.sflag [#allocation3], %s282
          %s284 = sand.u32 %s32, 1
          %s285 = smul.addr %s284, 16
          %s286 = scalar_lea.vmem [#allocation2], %s285
          %s288 = ssub.s32 256, 256
          %289 = vsyncadd %s283, %s288
          %s290 = smul.addr %s22, 4
          %s291 = smul.addr %s290, 64
          %s292 = scalar_lea.hbm %s0, %s291
          %s294 = sshll.u32 %s286, 4
          %s295 = int_to_ptr.vmem [resolvable:$true] %s294
          %297 = dma.hbm_to_vmem [thread:$0]  %s292, 256, %s295, %s283
        $region32: #{prompt_aux_selfa_forward.2} parent=27 // pred_fallthru
          _
        // Predicated region
        $region33: #{prompt_aux_selfa_forward.2} parent=27 // pred_check
          %p298 = pneg %p68
        $region34: #{prompt_aux_selfa_forward.2} parent=27 // pred_check_branch
          %300 = sbr.rel (%p298) target = $region36
        $region35: #{prompt_aux_selfa_forward.2} parent=27 // pred_region
          %s301 = sand.u32 %s22, 1
          %s302 = scalar_lea.sflag [#allocation5], %s301
          %s303 = sand.u32 %s58, 1
          %s304 = smul.addr %s303, 16
          %s305 = scalar_lea.vmem [#allocation4], %s304
          %s307 = ssub.s32 256, 256
          %308 = vsyncadd %s302, %s307
          %s309 = smul.addr %s22, 4
          %s310 = smul.addr %s309, 64
          %s311 = scalar_lea.hbm %s1, %s310
          %s313 = sshll.u32 %s305, 4
          %s314 = int_to_ptr.vmem [resolvable:$true] %s313
          %316 = dma.hbm_to_vmem [thread:$0]  %s311, 256, %s314, %s302
        $region36: #{prompt_aux_selfa_forward.2} parent=27 // pred_fallthru
          _
        // Predicated region
        $region37: #{prompt_aux_selfa_forward.2} parent=27 // pred_check
          %p317 = pneg %p115
        $region38: #{prompt_aux_selfa_forward.2} parent=27 // pred_check_branch
          %319 = sbr.rel (%p317) target = $region40
        $region39: #{prompt_aux_selfa_forward.2} parent=27 // pred_region
          %s320 = sand.u32 %s22, 1
          %s321 = scalar_lea.sflag [#allocation5], %s320
          %s322 = sand.u32 %s105, 1
          %s323 = smul.addr %s322, 192
          %s324 = scalar_lea.vmem [#allocation6], %s323
          %s326 = ssub.s32 3072, 3072
          %327 = vsyncadd %s321, %s326
          %s328 = smul.addr %s22, 24
          %s329 = smul.addr %s328, 128
          %s330 = scalar_lea.hbm %s3, %s329
          %s331 = sshll.u32 %s324, 4
          %s332 = int_to_ptr.vmem [resolvable:$true] %s331
          %337 = dma.hbm_to_vmem [thread:$0]  %s330, 3072, %s332, %s321, 384, 384, 24
        $region40: #{prompt_aux_selfa_forward.2} parent=27 // pred_fallthru
          _
        // Predicated region
        $region41: #{prompt_aux_selfa_forward.2} parent=27 // pred_check
          %p338 = pneg %p183
        $region42: #{prompt_aux_selfa_forward.2} parent=27 // pred_check_branch
          %340 = sbr.rel (%p338) target = $region44
        $region43: #{prompt_aux_selfa_forward.2} parent=27 // pred_region
          %s341 = sand.u32 %s22, 1
          %s342 = scalar_lea.sflag [#allocation3], %s341
          %s343 = sand.u32 %s173, 1
          %s344 = smul.addr %s343, 256
          %s345 = scalar_lea.vmem [#allocation9], %s344
          %s347 = ssub.s32 4096, 4096
          %348 = vsyncadd %s342, %s347
          %s349 = smul.addr %s22, 32
          %s350 = smul.addr %s349, 128
          %s351 = scalar_lea.hbm %s6, %s350
          %s352 = sshll.u32 %s345, 4
          %s353 = int_to_ptr.vmem [resolvable:$true] %s352
          %358 = dma.hbm_to_vmem [thread:$0]  %s351, 4096, %s353, %s342, 512, 512, 32
        $region44: #{prompt_aux_selfa_forward.2} parent=27 // pred_fallthru
          _
      $region28: #{prompt_aux_selfa_forward.2} parent=5 // pred_fallthru
        _
      %p359 = scmp.le.s32.totalorder 1, %s22
      %p360 = scmp.lt.s32.totalorder %s22, 3
      %p361 = pnand %p359, %p360
      %p362 = pneg %p361
      // Predicated region
      $region45: #{prompt_aux_selfa_forward.2} parent=5 // pred_check
        _
      $region46: #{prompt_aux_selfa_forward.2} parent=5 // pred_check_branch
        %364 = sbr.rel (%p361) target = $region48
      $region47: #{prompt_aux_selfa_forward.2} parent=5 // pred_region
        %s365 = ssub.s32 %s22, 1
        %s366 = sand.u32 %s27, 1
        %s367 = scalar_lea.sflag [#allocation3], %s366
        %s368 = sand.u32 %s35, 1
        %s369 = smul.addr %s368, 16
        %s370 = scalar_lea.vmem [#allocation2], %s369
        // Predicated region
        $region49: #{prompt_aux_selfa_forward.2} parent=47 // pred_check
          %p371 = pneg %p48
        $region50: #{prompt_aux_selfa_forward.2} parent=47 // pred_check_branch
          %373 = sbr.rel (%p371) target = $region52
        $region51: #{prompt_aux_selfa_forward.2} parent=47 // pred_region
          %374 = dma.done %s367, 256
        $region52: #{prompt_aux_selfa_forward.2} parent=47 // pred_fallthru
          _
        %s375 = sand.u32 %s27, 1
        %s376 = scalar_lea.sflag [#allocation5], %s375
        %s377 = sand.u32 %s61, 1
        %s378 = smul.addr %s377, 16
        %s379 = scalar_lea.vmem [#allocation4], %s378
        // Predicated region
        $region53: #{prompt_aux_selfa_forward.2} parent=47 // pred_check
          %p380 = pneg %p74
        $region54: #{prompt_aux_selfa_forward.2} parent=47 // pred_check_branch
          %382 = sbr.rel (%p380) target = $region56
        $region55: #{prompt_aux_selfa_forward.2} parent=47 // pred_region
          %383 = dma.done %s376, 256
        $region56: #{prompt_aux_selfa_forward.2} parent=47 // pred_fallthru
          _
        %s384 = sand.u32 %s27, 1
        %s385 = scalar_lea.sflag [#allocation5], %s384
        %s386 = sand.u32 %s108, 1
        %s387 = smul.addr %s386, 192
        %s388 = scalar_lea.vmem [#allocation6], %s387
        // Predicated region
        $region57: #{prompt_aux_selfa_forward.2} parent=47 // pred_check
          %p389 = pneg %p121
        $region58: #{prompt_aux_selfa_forward.2} parent=47 // pred_check_branch
          %391 = sbr.rel (%p389) target = $region60
        $region59: #{prompt_aux_selfa_forward.2} parent=47 // pred_region
          %392 = dma.done %s385, 3072
        $region60: #{prompt_aux_selfa_forward.2} parent=47 // pred_fallthru
          _
        // Predicated region
        $region61: #{prompt_aux_selfa_forward.2} parent=47 // pred_check
          %p393 = pneg %p142
        $region62: #{prompt_aux_selfa_forward.2} parent=47 // pred_check_branch
          %395 = sbr.rel (%p393) target = $region64
        $region63: #{prompt_aux_selfa_forward.2} parent=47 // pred_region
          %396 = dma.done [#allocation8], 24576
        $region64: #{prompt_aux_selfa_forward.2} parent=47 // pred_fallthru
          _
        %s397 = sand.u32 %s27, 1
        %s398 = scalar_lea.sflag [#allocation3], %s397
        %s399 = sand.u32 %s176, 1
        %s400 = smul.addr %s399, 256
        %s401 = scalar_lea.vmem [#allocation9], %s400
        // Predicated region
        $region65: #{prompt_aux_selfa_forward.2} parent=47 // pred_check
          %p402 = pneg %p189
        $region66: #{prompt_aux_selfa_forward.2} parent=47 // pred_check_branch
          %404 = sbr.rel (%p402) target = $region68
        $region67: #{prompt_aux_selfa_forward.2} parent=47 // pred_region
          %405 = dma.done %s398, 4096
        $region68: #{prompt_aux_selfa_forward.2} parent=47 // pred_fallthru
          _
        %s406 = sand.u32 %s27, 1
        %s407 = scalar_lea.sflag [#allocation3], %s406
        %s408 = sand.u32 %s35, 1
        %s409 = smul.addr %s408, 16
        %s410 = scalar_lea.vmem [#allocation2], %s409
        %p411 = pneg %p48
        %p412 = pneg %p45
        %s413 = sand.u32 %s27, 1
        %s414 = scalar_lea.sflag [#allocation5], %s413
        %s415 = sand.u32 %s61, 1
        %s416 = smul.addr %s415, 16
        %s417 = scalar_lea.vmem [#allocation4], %s416
        %p418 = pneg %p74
        %p419 = pneg %p71
        %p420 = pneg %p95
        %p421 = pneg %p92
        %s422 = sand.u32 %s27, 1
        %s423 = scalar_lea.sflag [#allocation5], %s422
        %s424 = sand.u32 %s108, 1
        %s425 = smul.addr %s424, 192
        %s426 = scalar_lea.vmem [#allocation6], %s425
        %p427 = pneg %p121
        %p428 = pneg %p118
        %p429 = pneg %p142
        %p430 = pneg %p139
        %p431 = pneg %p163
        %p432 = pneg %p160
        %s433 = sand.u32 %s27, 1
        %s434 = scalar_lea.sflag [#allocation3], %s433
        %s435 = sand.u32 %s176, 1
        %s436 = smul.addr %s435, 256
        %s437 = scalar_lea.vmem [#allocation9], %s436
        %p438 = pneg %p189
        %p439 = pneg %p186
        %p440 = pneg %p215
        %p441 = pneg %p212
        %p442 = scmp.lt.s32.totalorder %s27, 1
        %s443 = scalar_select %p442, %s27, 1
        %s444 = smul.addr %s443, 4
        %s445 = scalar_lea.vmem %s7, %s444
        %p446 = pneg %p241
        %p447 = pneg %p238
        %p448 = scmp.lt.s32.totalorder %s27, 1
        %s449 = scalar_select %p448, %s27, 1
        %s450 = smul.addr %s449, 4
        %s451 = scalar_lea.vmem %s8, %s450
        %p452 = scmp.lt.s32.totalorder %s27, 1
        %s453 = scalar_select %p452, %s27, 1
        %s454 = smul.addr %s453, 4
        %s455 = scalar_lea.vmem %s7, %s454
        %p456 = scmp.lt.s32.totalorder %s27, 1
        %s457 = scalar_select %p456, %s27, 1
        %s458 = smul.addr %s457, 4
        %s459 = scalar_lea.vmem %s8, %s458
        %v460 = vld [vmem:[%s370] sm:$0xff]
        %v461 = vld [vmem:[%s370 + $0x8] sm:$0xff]
        %v462 = vld [vmem:[%s2] sm:$0xf]
        %v463 = vld [vmem:[%s379] sm:$0xff]
        %v464 = vld [vmem:[%s379 + $0x8] sm:$0xff]
        %v466 = vlaneseq
        %v467 = vshrl.u32 %v466, 7
        %v468 = vsub.s32 0, %v467
        %v469 = vrot.slane %v462, %v468
        %v470 = vlaneseq
        %v471 = vshrl.u32 %v470, 7
        %v472 = vsub.s32 1, %v471
        %v473 = vrot.slane %v462, %v472
        %v474 = vlaneseq
        %v475 = vshrl.u32 %v474, 7
        %v476 = vsub.s32 2, %v475
        %v477 = vrot.slane %v462, %v476
        %v478 = vlaneseq
        %v479 = vshrl.u32 %v478, 7
        %v480 = vsub.s32 3, %v479
        %v481 = vrot.slane %v462, %v480
        %v488 = vcombine.high %v463, %v463
        %v489 = vcombine.high %v464, %v464
        %v492 = vmul.f32 %v469, %v463
        %v493 = vmul.f32 %v473, %v488
        %v494 = vmul.f32 %v477, %v464
        %v495 = vmul.f32 %v481, %v489
        %v500 = vcombine.low %v492, %v493
        %v501 = vcombine.low %v494, %v495
        %v504 = vadd.f32 %v460, %v500
        %v505 = vadd.f32 %v461, %v501
        %v506 = vmul.f32 %v504, %v504
        %v507 = vmul.f32 %v505, %v505
        %v510 = vcombine.high %v506, %v506
        %v511 = vcombine.high %v507, %v507
        %vm514 = vcmask 1043456
        %v515 = vsel %vm514, %v506, 0.0
        %v516 = vsel %vm514, %v510, 0.0
        %v517 = vadd.f32 %v515, %v516
        %v518 = vsel %vm514, %v507, 0.0
        %v519 = vadd.f32 %v517, %v518
        %v520 = vsel %vm514, %v511, 0.0
        %v521 = vadd.f32 %v519, %v520
        %522 = vadd.xlane.f32.xlu0 %v521
        %v523 = vpop.xlane.xlu0 %522
        %v524 = vmax.f32 %v523, 1e-24
        %v525 = vrsqrt.pop %v524
        %v528 = vunpack.c.l.s4 839922192
        %v529 = vunpack.c.0.s8 %v528
        %v530 = vlaneseq
        %v531 = vshrl.u32 %v530, 7
        %v532 = vsub.s32 %v529, %v531
        %v533 = vrot.slane %v525, %v532
        %v535 = vmul.f32 %v504, %v533
        %v536 = vmul.f32 %v505, %v533
        %v537 = vld [vmem:[%s388] sm:$0xff]
        %v538 = vld [vmem:[%s388 + $0x8] sm:$0xff]
        %v539 = vld [vmem:[%s388 + $0x10] sm:$0xff]
        %v540 = vld [vmem:[%s388 + $0x18] sm:$0xff]
        %v541 = vld [vmem:[%s388 + $0x20] sm:$0xff]
        %v542 = vld [vmem:[%s388 + $0x28] sm:$0xff]
        %v543 = vld [vmem:[%s388 + $0x30] sm:$0xff]
        %v544 = vld [vmem:[%s388 + $0x38] sm:$0xff]
        %v545 = vld [vmem:[%s388 + $0x40] sm:$0xff]
        %v546 = vld [vmem:[%s388 + $0x48] sm:$0xff]
        %v547 = vld [vmem:[%s388 + $0x50] sm:$0xff]
        %v548 = vld [vmem:[%s388 + $0x58] sm:$0xff]
        %v549 = vld [vmem:[%s388 + $0x60] sm:$0xff]
        %v550 = vld [vmem:[%s388 + $0x68] sm:$0xff]
        %v551 = vld [vmem:[%s388 + $0x70] sm:$0xff]
        %v552 = vld [vmem:[%s388 + $0x78] sm:$0xff]
        %v553 = vld [vmem:[%s388 + $0x80] sm:$0xff]
        %v554 = vld [vmem:[%s388 + $0x88] sm:$0xff]
        %v555 = vld [vmem:[%s388 + $0x90] sm:$0xff]
        %v556 = vld [vmem:[%s388 + $0x98] sm:$0xff]
        %v557 = vld [vmem:[%s388 + $0xa0] sm:$0xff]
        %v558 = vld [vmem:[%s388 + $0xa8] sm:$0xff]
        %v559 = vld [vmem:[%s388 + $0xb0] sm:$0xff]
        %v560 = vld [vmem:[%s388 + $0xb8] sm:$0xff]
        %v561 = vld [vmem:[#allocation7] sm:$0xff]
        %v562 = vld [vmem:[#allocation7 + $0x8] sm:$0xff]
        %v563 = vld [vmem:[#allocation7 + $0x10] sm:$0xff]
        %v564 = vld [vmem:[#allocation7 + $0x18] sm:$0xff]
        %v565 = vld [vmem:[#allocation7 + $0x20] sm:$0xff]
        %v566 = vld [vmem:[#allocation7 + $0x28] sm:$0xff]
        %v567 = vld [vmem:[#allocation7 + $0x30] sm:$0xff]
        %v568 = vld [vmem:[#allocation7 + $0x38] sm:$0xff]
        %v569 = vld [vmem:[#allocation7 + $0x40] sm:$0xff]
        %v570 = vld [vmem:[#allocation7 + $0x48] sm:$0xff]
        %v571 = vld [vmem:[#allocation7 + $0x50] sm:$0xff]
        %v572 = vld [vmem:[#allocation7 + $0x58] sm:$0xff]
        %v573 = vld [vmem:[#allocation7 + $0x60] sm:$0xff]
        %v574 = vld [vmem:[#allocation7 + $0x68] sm:$0xff]
        %v575 = vld [vmem:[#allocation7 + $0x70] sm:$0xff]
        %v576 = vld [vmem:[#allocation7 + $0x78] sm:$0xff]
        %v577 = vld [vmem:[#allocation7 + $0x80] sm:$0xff]
        %v578 = vld [vmem:[#allocation7 + $0x88] sm:$0xff]
        %v579 = vld [vmem:[#allocation7 + $0x90] sm:$0xff]
        %v580 = vld [vmem:[#allocation7 + $0x98] sm:$0xff]
        %v581 = vld [vmem:[#allocation7 + $0xa0] sm:$0xff]
        %v582 = vld [vmem:[#allocation7 + $0xa8] sm:$0xff]
        %v583 = vld [vmem:[#allocation7 + $0xb0] sm:$0xff]
        %v584 = vld [vmem:[#allocation7 + $0xb8] sm:$0xff]
        %v585 = vld [vmem:[#allocation7 + $0xc0] sm:$0xff]
        %v586 = vld [vmem:[#allocation7 + $0xc8] sm:$0xff]
        %v587 = vld [vmem:[#allocation7 + $0xd0] sm:$0xff]
        %v588 = vld [vmem:[#allocation7 + $0xd8] sm:$0xff]
        %v589 = vld [vmem:[#allocation7 + $0xe0] sm:$0xff]
        %v590 = vld [vmem:[#allocation7 + $0xe8] sm:$0xff]
        %v591 = vld [vmem:[#allocation7 + $0xf0] sm:$0xff]
        %v592 = vld [vmem:[#allocation7 + $0xf8] sm:$0xff]
        %v593 = vld [vmem:[#allocation7 + $0x100] sm:$0xff]
        %v594 = vld [vmem:[#allocation7 + $0x108] sm:$0xff]
        %v595 = vld [vmem:[#allocation7 + $0x110] sm:$0xff]
        %v596 = vld [vmem:[#allocation7 + $0x118] sm:$0xff]
        %v597 = vld [vmem:[#allocation7 + $0x120] sm:$0xff]
        %v598 = vld [vmem:[#allocation7 + $0x128] sm:$0xff]
        %v599 = vld [vmem:[#allocation7 + $0x130] sm:$0xff]
        %v600 = vld [vmem:[#allocation7 + $0x138] sm:$0xff]
        %v601 = vld [vmem:[#allocation7 + $0x140] sm:$0xff]
        %v602 = vld [vmem:[#allocation7 + $0x148] sm:$0xff]
        %v603 = vld [vmem:[#allocation7 + $0x150] sm:$0xff]
        %v604 = vld [vmem:[#allocation7 + $0x158] sm:$0xff]
        %v605 = vld [vmem:[#allocation7 + $0x160] sm:$0xff]
        %v606 = vld [vmem:[#allocation7 + $0x168] sm:$0xff]
        %v607 = vld [vmem:[#allocation7 + $0x170] sm:$0xff]
        %v608 = vld [vmem:[#allocation7 + $0x178] sm:$0xff]
        %v609 = vld [vmem:[#allocation7 + $0x180] sm:$0xff]
        %v610 = vld [vmem:[#allocation7 + $0x188] sm:$0xff]
        %v611 = vld [vmem:[#allocation7 + $0x190] sm:$0xff]
        %v612 = vld [vmem:[#allocation7 + $0x198] sm:$0xff]
        %v613 = vld [vmem:[#allocation7 + $0x1a0] sm:$0xff]
        %v614 = vld [vmem:[#allocation7 + $0x1a8] sm:$0xff]
        %v615 = vld [vmem:[#allocation7 + $0x1b0] sm:$0xff]
        %v616 = vld [vmem:[#allocation7 + $0x1b8] sm:$0xff]
        %v617 = vld [vmem:[#allocation7 + $0x1c0] sm:$0xff]
        %v618 = vld [vmem:[#allocation7 + $0x1c8] sm:$0xff]
        %v619 = vld [vmem:[#allocation7 + $0x1d0] sm:$0xff]
        %v620 = vld [vmem:[#allocation7 + $0x1d8] sm:$0xff]
        %v621 = vld [vmem:[#allocation7 + $0x1e0] sm:$0xff]
        %v622 = vld [vmem:[#allocation7 + $0x1e8] sm:$0xff]
        %v623 = vld [vmem:[#allocation7 + $0x1f0] sm:$0xff]
        %v624 = vld [vmem:[#allocation7 + $0x1f8] sm:$0xff]
        %v625 = vld [vmem:[#allocation7 + $0x200] sm:$0xff]
        %v626 = vld [vmem:[#allocation7 + $0x208] sm:$0xff]
        %v627 = vld [vmem:[#allocation7 + $0x210] sm:$0xff]
        %v628 = vld [vmem:[#allocation7 + $0x218] sm:$0xff]
        %v629 = vld [vmem:[#allocation7 + $0x220] sm:$0xff]
        %v630 = vld [vmem:[#allocation7 + $0x228] sm:$0xff]
        %v631 = vld [vmem:[#allocation7 + $0x230] sm:$0xff]
        %v632 = vld [vmem:[#allocation7 + $0x238] sm:$0xff]
        %v633 = vld [vmem:[#allocation7 + $0x240] sm:$0xff]
        %v634 = vld [vmem:[#allocation7 + $0x248] sm:$0xff]
        %v635 = vld [vmem:[#allocation7 + $0x250] sm:$0xff]
        %v636 = vld [vmem:[#allocation7 + $0x258] sm:$0xff]
        %v637 = vld [vmem:[#allocation7 + $0x260] sm:$0xff]
        %v638 = vld [vmem:[#allocation7 + $0x268] sm:$0xff]
        %v639 = vld [vmem:[#allocation7 + $0x270] sm:$0xff]
        %v640 = vld [vmem:[#allocation7 + $0x278] sm:$0xff]
        %v641 = vld [vmem:[#allocation7 + $0x280] sm:$0xff]
        %v642 = vld [vmem:[#allocation7 + $0x288] sm:$0xff]
        %v643 = vld [vmem:[#allocation7 + $0x290] sm:$0xff]
        %v644 = vld [vmem:[#allocation7 + $0x298] sm:$0xff]
        %v645 = vld [vmem:[#allocation7 + $0x2a0] sm:$0xff]
        %v646 = vld [vmem:[#allocation7 + $0x2a8] sm:$0xff]
        %v647 = vld [vmem:[#allocation7 + $0x2b0] sm:$0xff]
        %v648 = vld [vmem:[#allocation7 + $0x2b8] sm:$0xff]
        %v649 = vld [vmem:[#allocation7 + $0x2c0] sm:$0xff]
        %v650 = vld [vmem:[#allocation7 + $0x2c8] sm:$0xff]
        %v651 = vld [vmem:[#allocation7 + $0x2d0] sm:$0xff]
        %v652 = vld [vmem:[#allocation7 + $0x2d8] sm:$0xff]
        %v653 = vld [vmem:[#allocation7 + $0x2e0] sm:$0xff]
        %v654 = vld [vmem:[#allocation7 + $0x2e8] sm:$0xff]
        %v655 = vld [vmem:[#allocation7 + $0x2f0] sm:$0xff]
        %v656 = vld [vmem:[#allocation7 + $0x2f8] sm:$0xff]
        %v657 = vld [vmem:[#allocation7 + $0x300] sm:$0xff]
        %v658 = vld [vmem:[#allocation7 + $0x308] sm:$0xff]
        %v659 = vld [vmem:[#allocation7 + $0x310] sm:$0xff]
        %v660 = vld [vmem:[#allocation7 + $0x318] sm:$0xff]
        %v661 = vld [vmem:[#allocation7 + $0x320] sm:$0xff]
        %v662 = vld [vmem:[#allocation7 + $0x328] sm:$0xff]
        %v663 = vld [vmem:[#allocation7 + $0x330] sm:$0xff]
        %v664 = vld [vmem:[#allocation7 + $0x338] sm:$0xff]
        %v665 = vld [vmem:[#allocation7 + $0x340] sm:$0xff]
        %v666 = vld [vmem:[#allocation7 + $0x348] sm:$0xff]
        %v667 = vld [vmem:[#allocation7 + $0x350] sm:$0xff]
        %v668 = vld [vmem:[#allocation7 + $0x358] sm:$0xff]
        %v669 = vld [vmem:[#allocation7 + $0x360] sm:$0xff]
        %v670 = vld [vmem:[#allocation7 + $0x368] sm:$0xff]
        %v671 = vld [vmem:[#allocation7 + $0x370] sm:$0xff]
        %v672 = vld [vmem:[#allocation7 + $0x378] sm:$0xff]
        %v673 = vld [vmem:[#allocation7 + $0x380] sm:$0xff]
        %v674 = vld [vmem:[#allocation7 + $0x388] sm:$0xff]
        %v675 = vld [vmem:[#allocation7 + $0x390] sm:$0xff]
        %v676 = vld [vmem:[#allocation7 + $0x398] sm:$0xff]
        %v677 = vld [vmem:[#allocation7 + $0x3a0] sm:$0xff]
        %v678 = vld [vmem:[#allocation7 + $0x3a8] sm:$0xff]
        %v679 = vld [vmem:[#allocation7 + $0x3b0] sm:$0xff]
        %v680 = vld [vmem:[#allocation7 + $0x3b8] sm:$0xff]
        %v681 = vld [vmem:[#allocation7 + $0x3c0] sm:$0xff]
        %v682 = vld [vmem:[#allocation7 + $0x3c8] sm:$0xff]
        %v683 = vld [vmem:[#allocation7 + $0x3d0] sm:$0xff]
        %v684 = vld [vmem:[#allocation7 + $0x3d8] sm:$0xff]
        %v685 = vld [vmem:[#allocation7 + $0x3e0] sm:$0xff]
        %v686 = vld [vmem:[#allocation7 + $0x3e8] sm:$0xff]
        %v687 = vld [vmem:[#allocation7 + $0x3f0] sm:$0xff]
        %v688 = vld [vmem:[#allocation7 + $0x3f8] sm:$0xff]
        %v689 = vld [vmem:[#allocation7 + $0x400] sm:$0xff]
        %v690 = vld [vmem:[#allocation7 + $0x408] sm:$0xff]
        %v691 = vld [vmem:[#allocation7 + $0x410] sm:$0xff]
        %v692 = vld [vmem:[#allocation7 + $0x418] sm:$0xff]
        %v693 = vld [vmem:[#allocation7 + $0x420] sm:$0xff]
        %v694 = vld [vmem:[#allocation7 + $0x428] sm:$0xff]
        %v695 = vld [vmem:[#allocation7 + $0x430] sm:$0xff]
        %v696 = vld [vmem:[#allocation7 + $0x438] sm:$0xff]
        %v697 = vld [vmem:[#allocation7 + $0x440] sm:$0xff]
        %v698 = vld [vmem:[#allocation7 + $0x448] sm:$0xff]
        %v699 = vld [vmem:[#allocation7 + $0x450] sm:$0xff]
        %v700 = vld [vmem:[#allocation7 + $0x458] sm:$0xff]
        %v701 = vld [vmem:[#allocation7 + $0x460] sm:$0xff]
        %v702 = vld [vmem:[#allocation7 + $0x468] sm:$0xff]
        %v703 = vld [vmem:[#allocation7 + $0x470] sm:$0xff]
        %v704 = vld [vmem:[#allocation7 + $0x478] sm:$0xff]
        %v705 = vld [vmem:[#allocation7 + $0x480] sm:$0xff]
        %v706 = vld [vmem:[#allocation7 + $0x488] sm:$0xff]
        %v707 = vld [vmem:[#allocation7 + $0x490] sm:$0xff]
        %v708 = vld [vmem:[#allocation7 + $0x498] sm:$0xff]
        %v709 = vld [vmem:[#allocation7 + $0x4a0] sm:$0xff]
        %v710 = vld [vmem:[#allocation7 + $0x4a8] sm:$0xff]
        %v711 = vld [vmem:[#allocation7 + $0x4b0] sm:$0xff]
        %v712 = vld [vmem:[#allocation7 + $0x4b8] sm:$0xff]
        %v713 = vld [vmem:[#allocation7 + $0x4c0] sm:$0xff]
        %v714 = vld [vmem:[#allocation7 + $0x4c8] sm:$0xff]
        %v715 = vld [vmem:[#allocation7 + $0x4d0] sm:$0xff]
        %v716 = vld [vmem:[#allocation7 + $0x4d8] sm:$0xff]
        %v717 = vld [vmem:[#allocation7 + $0x4e0] sm:$0xff]
        %v718 = vld [vmem:[#allocation7 + $0x4e8] sm:$0xff]
        %v719 = vld [vmem:[#allocation7 + $0x4f0] sm:$0xff]
        %v720 = vld [vmem:[#allocation7 + $0x4f8] sm:$0xff]
        %v721 = vld [vmem:[#allocation7 + $0x500] sm:$0xff]
        %v722 = vld [vmem:[#allocation7 + $0x508] sm:$0xff]
        %v723 = vld [vmem:[#allocation7 + $0x510] sm:$0xff]
        %v724 = vld [vmem:[#allocation7 + $0x518] sm:$0xff]
        %v725 = vld [vmem:[#allocation7 + $0x520] sm:$0xff]
        %v726 = vld [vmem:[#allocation7 + $0x528] sm:$0xff]
        %v727 = vld [vmem:[#allocation7 + $0x530] sm:$0xff]
        %v728 = vld [vmem:[#allocation7 + $0x538] sm:$0xff]
        %v729 = vld [vmem:[#allocation7 + $0x540] sm:$0xff]
        %v730 = vld [vmem:[#allocation7 + $0x548] sm:$0xff]
        %v731 = vld [vmem:[#allocation7 + $0x550] sm:$0xff]
        %v732 = vld [vmem:[#allocation7 + $0x558] sm:$0xff]
        %v733 = vld [vmem:[#allocation7 + $0x560] sm:$0xff]
        %v734 = vld [vmem:[#allocation7 + $0x568] sm:$0xff]
        %v735 = vld [vmem:[#allocation7 + $0x570] sm:$0xff]
        %v736 = vld [vmem:[#allocation7 + $0x578] sm:$0xff]
        %v737 = vld [vmem:[#allocation7 + $0x580] sm:$0xff]
        %v738 = vld [vmem:[#allocation7 + $0x588] sm:$0xff]
        %v739 = vld [vmem:[#allocation7 + $0x590] sm:$0xff]
        %v740 = vld [vmem:[#allocation7 + $0x598] sm:$0xff]
        %v741 = vld [vmem:[#allocation7 + $0x5a0] sm:$0xff]
        %v742 = vld [vmem:[#allocation7 + $0x5a8] sm:$0xff]
        %v743 = vld [vmem:[#allocation7 + $0x5b0] sm:$0xff]
        %v744 = vld [vmem:[#allocation7 + $0x5b8] sm:$0xff]
        %v745 = vld [vmem:[#allocation7 + $0x5c0] sm:$0xff]
        %v746 = vld [vmem:[#allocation7 + $0x5c8] sm:$0xff]
        %v747 = vld [vmem:[#allocation7 + $0x5d0] sm:$0xff]
        %v748 = vld [vmem:[#allocation7 + $0x5d8] sm:$0xff]
        %v749 = vld [vmem:[#allocation7 + $0x5e0] sm:$0xff]
        %v750 = vld [vmem:[#allocation7 + $0x5e8] sm:$0xff]
        %v751 = vld [vmem:[#allocation7 + $0x5f0] sm:$0xff]
        %v752 = vld [vmem:[#allocation7 + $0x5f8] sm:$0xff]
        %v753 = vld [vmem:[%s5] sm:$0xf]
        %v755 = vlaneseq
        %v756 = vshrl.u32 %v755, 7
        %v757 = vsub.s32 0, %v756
        %v758 = vrot.slane %v753, %v757
        %v759 = vlaneseq
        %v760 = vshrl.u32 %v759, 7
        %v761 = vsub.s32 1, %v760
        %v762 = vrot.slane %v753, %v761
        %v763 = vlaneseq
        %v764 = vshrl.u32 %v763, 7
        %v765 = vsub.s32 2, %v764
        %v766 = vrot.slane %v753, %v765
        %v767 = vlaneseq
        %v768 = vshrl.u32 %v767, 7
        %v769 = vsub.s32 3, %v768
        %v770 = vrot.slane %v753, %v769
        %775 = vmatprep.subr.mxu0 %v622
        %776 = vmatpush1.msra.mxu0 %v621
        %777 = vmatprep.subr.mxu0 %v618
        %778 = vmatpush1.msra.mxu0 %v617
        %779 = vmatprep.subr.mxu0 %v614
        %780 = vmatpush1.msra.mxu0 %v613
        %781 = vmatprep.subr.mxu0 %v610
        %782 = vmatpush1.msra.mxu0 %v609
        %783 = vmatprep.subr.mxu0 %v606
        %784 = vmatpush1.msra.mxu0 %v605
        %785 = vmatprep.subr.mxu0 %v602
        %786 = vmatpush1.msra.mxu0 %v601
        %787 = vmatprep.subr.mxu0 %v598
        %788 = vmatpush1.msra.mxu0 %v597
        %789 = vmatprep.subr.mxu0 %v594
        %790 = vmatpush1.msra.mxu0 %v593
        %791 = vmatprep.subr.mxu0 %v590
        %792 = vmatpush1.msra.mxu0 %v589
        %793 = vmatprep.subr.mxu0 %v586
        %794 = vmatpush1.msra.mxu0 %v585
        %795 = vmatprep.subr.mxu0 %v582
        %796 = vmatpush1.msra.mxu0 %v581
        %797 = vmatprep.subr.mxu0 %v578
        %798 = vmatpush1.msra.mxu0 %v577
        %799 = vmatprep.subr.mxu0 %v574
        %800 = vmatpush1.msra.mxu0 %v573
        %801 = vmatprep.subr.mxu0 %v570
        %802 = vmatpush1.msra.mxu0 %v569
        %803 = vmatprep.subr.mxu0 %v566
        %804 = vmatpush1.msra.mxu0 %v565
        %805 = vmatprep.subr.mxu0 %v562
        %806 = vmatpush1.msra.mxu0 %v561
        %807 = vmatprep.subr.mxu0 %v686
        %808 = vmatpush2.msra.mxu0 %v685
        %809 = vmatprep.subr.mxu0 %v682
        %810 = vmatpush2.msra.mxu0 %v681
        %811 = vmatprep.subr.mxu0 %v678
        %812 = vmatpush2.msra.mxu0 %v677
        %813 = vmatprep.subr.mxu0 %v674
        %814 = vmatpush2.msra.mxu0 %v673
        %815 = vmatprep.subr.mxu0 %v670
        %816 = vmatpush2.msra.mxu0 %v669
        %817 = vmatprep.subr.mxu0 %v666
        %818 = vmatpush2.msra.mxu0 %v665
        %819 = vmatprep.subr.mxu0 %v662
        %820 = vmatpush2.msra.mxu0 %v661
        %821 = vmatprep.subr.mxu0 %v658
        %822 = vmatpush2.msra.mxu0 %v657
        %823 = vmatprep.subr.mxu0 %v654
        %824 = vmatpush2.msra.mxu0 %v653
        %825 = vmatprep.subr.mxu0 %v650
        %826 = vmatpush2.msra.mxu0 %v649
        %827 = vmatprep.subr.mxu0 %v646
        %828 = vmatpush2.msra.mxu0 %v645
        %829 = vmatprep.subr.mxu0 %v642
        %830 = vmatpush2.msra.mxu0 %v641
        %831 = vmatprep.subr.mxu0 %v638
        %832 = vmatpush2.msra.mxu0 %v637
        %833 = vmatprep.subr.mxu0 %v634
        %834 = vmatpush2.msra.mxu0 %v633
        %835 = vmatprep.subr.mxu0 %v630
        %836 = vmatpush2.msra.mxu0 %v629
        %837 = vmatprep.subr.mxu0 %v626
        %838 = vmatpush2.msra.mxu0 %v625
        %839 = vmatprep.mubr.f32.mxu0 %v538
        %840 = vmatmul.mubr.f32.gmra.mxu0 %v537
        %v841 = vpop.f32.mrf.mxu0
        %v842 = vadd.f32 %v758, %v841
        %v843 = vpop.f32.mrf.mxu0
        %v844 = vadd.f32 %v762, %v843
        %845 = vmatprep.mubr.f32.mxu0 %v541
        %846 = vmatmul.mubr.f32.gmra.mxu0 %v540
        %v847 = vpop.f32.mrf.mxu0
        %v848 = vadd.f32 %v758, %v847
        %v849 = vpop.f32.mrf.mxu0
        %v850 = vadd.f32 %v762, %v849
        %851 = vmatprep.mubr.f32.mxu0 %v544
        %852 = vmatmul.mubr.f32.gmra.mxu0 %v543
        %v853 = vpop.f32.mrf.mxu0
        %v854 = vadd.f32 %v758, %v853
        %v855 = vpop.f32.mrf.mxu0
        %v856 = vadd.f32 %v762, %v855
        %857 = vmatprep.mubr.f32.mxu0 %v547
        %858 = vmatmul.mubr.f32.gmra.mxu0 %v546
        %v859 = vpop.f32.mrf.mxu0
        %v860 = vadd.f32 %v758, %v859
        %v861 = vpop.f32.mrf.mxu0
        %v862 = vadd.f32 %v762, %v861
        %863 = vmatprep.mubr.f32.mxu0 %v550
        %864 = vmatmul.mubr.f32.gmra.mxu0 %v549
        %v865 = vpop.f32.mrf.mxu0
        %v866 = vadd.f32 %v758, %v865
        %v867 = vpop.f32.mrf.mxu0
        %v868 = vadd.f32 %v762, %v867
        %869 = vmatprep.mubr.f32.mxu0 %v553
        %870 = vmatmul.mubr.f32.gmra.mxu0 %v552
        %v871 = vpop.f32.mrf.mxu0
        %v872 = vadd.f32 %v758, %v871
        %v873 = vpop.f32.mrf.mxu0
        %v874 = vadd.f32 %v762, %v873
        %875 = vmatprep.mubr.f32.mxu0 %v556
        %876 = vmatmul.mubr.f32.gmra.mxu0 %v555
        %v877 = vpop.f32.mrf.mxu0
        %v878 = vadd.f32 %v758, %v877
        %v879 = vpop.f32.mrf.mxu0
        %v880 = vadd.f32 %v762, %v879
        %881 = vmatprep.mubr.f32.mxu0 %v559
        %882 = vmatmul.mubr.f32.gmra.mxu0 %v558
        %v883 = vpop.f32.mrf.mxu0
        %v884 = vadd.f32 %v758, %v883
        %v885 = vpop.f32.mrf.mxu0
        %v886 = vadd.f32 %v762, %v885
        %887 = vdwg.mxu0
        %888 = vmatprep.subr.mxu0 %v750
        %889 = vmatpush1.msra.mxu0 %v749
        %890 = vmatprep.subr.mxu0 %v746
        %891 = vmatpush1.msra.mxu0 %v745
        %892 = vmatprep.subr.mxu0 %v742
        %893 = vmatpush1.msra.mxu0 %v741
        %894 = vmatprep.subr.mxu0 %v738
        %895 = vmatpush1.msra.mxu0 %v737
        %896 = vmatprep.subr.mxu0 %v734
        %897 = vmatpush1.msra.mxu0 %v733
        %898 = vmatprep.subr.mxu0 %v730
        %899 = vmatpush1.msra.mxu0 %v729
        %900 = vmatprep.subr.mxu0 %v726
        %901 = vmatpush1.msra.mxu0 %v725
        %902 = vmatprep.subr.mxu0 %v722
        %903 = vmatpush1.msra.mxu0 %v721
        %904 = vmatprep.subr.mxu0 %v718
        %905 = vmatpush1.msra.mxu0 %v717
        %906 = vmatprep.subr.mxu0 %v714
        %907 = vmatpush1.msra.mxu0 %v713
        %908 = vmatprep.subr.mxu0 %v710
        %909 = vmatpush1.msra.mxu0 %v709
        %910 = vmatprep.subr.mxu0 %v706
        %911 = vmatpush1.msra.mxu0 %v705
        %912 = vmatprep.subr.mxu0 %v702
        %913 = vmatpush1.msra.mxu0 %v701
        %914 = vmatprep.subr.mxu0 %v698
        %915 = vmatpush1.msra.mxu0 %v697
        %916 = vmatprep.subr.mxu0 %v694
        %917 = vmatpush1.msra.mxu0 %v693
        %918 = vmatprep.subr.mxu0 %v690
        %919 = vmatpush1.msra.mxu0 %v689
        %920 = vmatprep.subr.mxu0 0.0
        %921 = vmatpush2.msra.mxu0 0.0
        %922 = vmatprep.subr.mxu0 0.0
        %923 = vmatpush2.msra.mxu0 0.0
        %924 = vmatprep.subr.mxu0 0.0
        %925 = vmatpush2.msra.mxu0 0.0
        %926 = vmatprep.subr.mxu0 0.0
        %927 = vmatpush2.msra.mxu0 0.0
        %928 = vmatprep.subr.mxu0 0.0
        %929 = vmatpush2.msra.mxu0 0.0
        %930 = vmatprep.subr.mxu0 0.0
        %931 = vmatpush2.msra.mxu0 0.0
        %932 = vmatprep.subr.mxu0 0.0
        %933 = vmatpush2.msra.mxu0 0.0
        %934 = vmatprep.subr.mxu0 0.0
        %935 = vmatpush2.msra.mxu0 0.0
        %936 = vmatprep.subr.mxu0 0.0
        %937 = vmatpush2.msra.mxu0 0.0
        %938 = vmatprep.subr.mxu0 0.0
        %939 = vmatpush2.msra.mxu0 0.0
        %940 = vmatprep.subr.mxu0 0.0
        %941 = vmatpush2.msra.mxu0 0.0
        %942 = vmatprep.subr.mxu0 0.0
        %943 = vmatpush2.msra.mxu0 0.0
        %944 = vmatprep.subr.mxu0 0.0
        %945 = vmatpush2.msra.mxu0 0.0
        %946 = vmatprep.subr.mxu0 0.0
        %947 = vmatpush2.msra.mxu0 0.0
        %948 = vmatprep.subr.mxu0 0.0
        %949 = vmatpush2.msra.mxu0 0.0
        %950 = vmatprep.subr.mxu0 0.0
        %951 = vmatpush2.msra.mxu0 0.0
        %952 = vmatprep.mubr.f32.mxu0 0.0
        %953 = vmatmul.mubr.f32.gmra.mxu0 %v539
        %v954 = vpop.f32.mrf.mxu0
        %v955 = vadd.f32 %v842, %v954
        %v956 = vpop.f32.mrf.mxu0
        %v957 = vadd.f32 %v844, %v956
        %958 = vmatprep.mubr.f32.mxu0 0.0
        %959 = vmatmul.mubr.f32.gmra.mxu0 %v542
        %v960 = vpop.f32.mrf.mxu0
        %v961 = vadd.f32 %v848, %v960
        %v962 = vpop.f32.mrf.mxu0
        %v963 = vadd.f32 %v850, %v962
        %964 = vmatprep.mubr.f32.mxu0 0.0
        %965 = vmatmul.mubr.f32.gmra.mxu0 %v545
        %v966 = vpop.f32.mrf.mxu0
        %v967 = vadd.f32 %v854, %v966
        %v968 = vpop.f32.mrf.mxu0
        %v969 = vadd.f32 %v856, %v968
        %970 = vmatprep.mubr.f32.mxu0 0.0
        %971 = vmatmul.mubr.f32.gmra.mxu0 %v548
        %v972 = vpop.f32.mrf.mxu0
        %v973 = vadd.f32 %v860, %v972
        %v974 = vpop.f32.mrf.mxu0
        %v975 = vadd.f32 %v862, %v974
        %976 = vmatprep.mubr.f32.mxu0 0.0
        %977 = vmatmul.mubr.f32.gmra.mxu0 %v551
        %v978 = vpop.f32.mrf.mxu0
        %v979 = vadd.f32 %v866, %v978
        %v980 = vpop.f32.mrf.mxu0
        %v981 = vadd.f32 %v868, %v980
        %982 = vmatprep.mubr.f32.mxu0 0.0
        %983 = vmatmul.mubr.f32.gmra.mxu0 %v554
        %v984 = vpop.f32.mrf.mxu0
        %v985 = vadd.f32 %v872, %v984
        %v986 = vpop.f32.mrf.mxu0
        %v987 = vadd.f32 %v874, %v986
        %988 = vmatprep.mubr.f32.mxu0 0.0
        %989 = vmatmul.mubr.f32.gmra.mxu0 %v557
        %v990 = vpop.f32.mrf.mxu0
        %v991 = vadd.f32 %v878, %v990
        %v992 = vpop.f32.mrf.mxu0
        %v993 = vadd.f32 %v880, %v992
        %994 = vmatprep.mubr.f32.mxu0 0.0
        %995 = vmatmul.mubr.f32.gmra.mxu0 %v560
        %v996 = vpop.f32.mrf.mxu0
        %v997 = vadd.f32 %v884, %v996
        %v998 = vpop.f32.mrf.mxu0
        %v999 = vadd.f32 %v886, %v998
        %1000 = vdwg.mxu0
        %1001 = vmatprep.subr.mxu0 %v624
        %1002 = vmatpush1.msra.mxu0 %v623
        %1003 = vmatprep.subr.mxu0 %v620
        %1004 = vmatpush1.msra.mxu0 %v619
        %1005 = vmatprep.subr.mxu0 %v616
        %1006 = vmatpush1.msra.mxu0 %v615
        %1007 = vmatprep.subr.mxu0 %v612
        %1008 = vmatpush1.msra.mxu0 %v611
        %1009 = vmatprep.subr.mxu0 %v608
        %1010 = vmatpush1.msra.mxu0 %v607
        %1011 = vmatprep.subr.mxu0 %v604
        %1012 = vmatpush1.msra.mxu0 %v603
        %1013 = vmatprep.subr.mxu0 %v600
        %1014 = vmatpush1.msra.mxu0 %v599
        %1015 = vmatprep.subr.mxu0 %v596
        %1016 = vmatpush1.msra.mxu0 %v595
        %1017 = vmatprep.subr.mxu0 %v592
        %1018 = vmatpush1.msra.mxu0 %v591
        %1019 = vmatprep.subr.mxu0 %v588
        %1020 = vmatpush1.msra.mxu0 %v587
        %1021 = vmatprep.subr.mxu0 %v584
        %1022 = vmatpush1.msra.mxu0 %v583
        %1023 = vmatprep.subr.mxu0 %v580
        %1024 = vmatpush1.msra.mxu0 %v579
        %1025 = vmatprep.subr.mxu0 %v576
        %1026 = vmatpush1.msra.mxu0 %v575
        %1027 = vmatprep.subr.mxu0 %v572
        %1028 = vmatpush1.msra.mxu0 %v571
        %1029 = vmatprep.subr.mxu0 %v568
        %1030 = vmatpush1.msra.mxu0 %v567
        %1031 = vmatprep.subr.mxu0 %v564
        %1032 = vmatpush1.msra.mxu0 %v563
        %1033 = vmatprep.subr.mxu0 %v688
        %1034 = vmatpush2.msra.mxu0 %v687
        %1035 = vmatprep.subr.mxu0 %v684
        %1036 = vmatpush2.msra.mxu0 %v683
        %1037 = vmatprep.subr.mxu0 %v680
        %1038 = vmatpush2.msra.mxu0 %v679
        %1039 = vmatprep.subr.mxu0 %v676
        %1040 = vmatpush2.msra.mxu0 %v675
        %1041 = vmatprep.subr.mxu0 %v672
        %1042 = vmatpush2.msra.mxu0 %v671
        %1043 = vmatprep.subr.mxu0 %v668
        %1044 = vmatpush2.msra.mxu0 %v667
        %1045 = vmatprep.subr.mxu0 %v664
        %1046 = vmatpush2.msra.mxu0 %v663
        %1047 = vmatprep.subr.mxu0 %v660
        %1048 = vmatpush2.msra.mxu0 %v659
        %1049 = vmatprep.subr.mxu0 %v656
        %1050 = vmatpush2.msra.mxu0 %v655
        %1051 = vmatprep.subr.mxu0 %v652
        %1052 = vmatpush2.msra.mxu0 %v651
        %1053 = vmatprep.subr.mxu0 %v648
        %1054 = vmatpush2.msra.mxu0 %v647
        %1055 = vmatprep.subr.mxu0 %v644
        %1056 = vmatpush2.msra.mxu0 %v643
        %1057 = vmatprep.subr.mxu0 %v640
        %1058 = vmatpush2.msra.mxu0 %v639
        %1059 = vmatprep.subr.mxu0 %v636
        %1060 = vmatpush2.msra.mxu0 %v635
        %1061 = vmatprep.subr.mxu0 %v632
        %1062 = vmatpush2.msra.mxu0 %v631
        %1063 = vmatprep.subr.mxu0 %v628
        %1064 = vmatpush2.msra.mxu0 %v627
        %1065 = vmatprep.mubr.f32.mxu0 %v538
        %1066 = vmatmul.mubr.f32.gmra.mxu0 %v537
        %v1067 = vpop.f32.mrf.mxu0
        %v1068 = vadd.f32 %v766, %v1067
        %v1069 = vpop.f32.mrf.mxu0
        %v1070 = vadd.f32 %v770, %v1069
        %1071 = vmatprep.mubr.f32.mxu0 %v541
        %1072 = vmatmul.mubr.f32.gmra.mxu0 %v540
        %v1073 = vpop.f32.mrf.mxu0
        %v1074 = vadd.f32 %v766, %v1073
        %v1075 = vpop.f32.mrf.mxu0
        %v1076 = vadd.f32 %v770, %v1075
        %1077 = vmatprep.mubr.f32.mxu0 %v544
        %1078 = vmatmul.mubr.f32.gmra.mxu0 %v543
        %v1079 = vpop.f32.mrf.mxu0
        %v1080 = vadd.f32 %v766, %v1079
        %v1081 = vpop.f32.mrf.mxu0
        %v1082 = vadd.f32 %v770, %v1081
        %1083 = vmatprep.mubr.f32.mxu0 %v547
        %1084 = vmatmul.mubr.f32.gmra.mxu0 %v546
        %v1085 = vpop.f32.mrf.mxu0
        %v1086 = vadd.f32 %v766, %v1085
        %v1087 = vpop.f32.mrf.mxu0
        %v1088 = vadd.f32 %v770, %v1087
        %1089 = vmatprep.mubr.f32.mxu0 %v550
        %1090 = vmatmul.mubr.f32.gmra.mxu0 %v549
        %v1091 = vpop.f32.mrf.mxu0
        %v1092 = vadd.f32 %v766, %v1091
        %v1093 = vpop.f32.mrf.mxu0
        %v1094 = vadd.f32 %v770, %v1093
        %1095 = vmatprep.mubr.f32.mxu0 %v553
        %1096 = vmatmul.mubr.f32.gmra.mxu0 %v552
        %v1097 = vpop.f32.mrf.mxu0
        %v1098 = vadd.f32 %v766, %v1097
        %v1099 = vpop.f32.mrf.mxu0
        %v1100 = vadd.f32 %v770, %v1099
        %1101 = vmatprep.mubr.f32.mxu0 %v556
        %1102 = vmatmul.mubr.f32.gmra.mxu0 %v555
        %v1103 = vpop.f32.mrf.mxu0
        %v1104 = vadd.f32 %v766, %v1103
        %v1105 = vpop.f32.mrf.mxu0
        %v1106 = vadd.f32 %v770, %v1105
        %1107 = vmatprep.mubr.f32.mxu0 %v559
        %1108 = vmatmul.mubr.f32.gmra.mxu0 %v558
        %v1109 = vpop.f32.mrf.mxu0
        %v1110 = vadd.f32 %v766, %v1109
        %v1111 = vpop.f32.mrf.mxu0
        %v1112 = vadd.f32 %v770, %v1111
        %1113 = vdwg.mxu0
        %1114 = vmatprep.subr.mxu0 %v752
        %1115 = vmatpush1.msra.mxu0 %v751
        %1116 = vmatprep.subr.mxu0 %v748
        %1117 = vmatpush1.msra.mxu0 %v747
        %1118 = vmatprep.subr.mxu0 %v744
        %1119 = vmatpush1.msra.mxu0 %v743
        %1120 = vmatprep.subr.mxu0 %v740
        %1121 = vmatpush1.msra.mxu0 %v739
        %1122 = vmatprep.subr.mxu0 %v736
        %1123 = vmatpush1.msra.mxu0 %v735
        %1124 = vmatprep.subr.mxu0 %v732
        %1125 = vmatpush1.msra.mxu0 %v731
        %1126 = vmatprep.subr.mxu0 %v728
        %1127 = vmatpush1.msra.mxu0 %v727
        %1128 = vmatprep.subr.mxu0 %v724
        %1129 = vmatpush1.msra.mxu0 %v723
        %1130 = vmatprep.subr.mxu0 %v720
        %1131 = vmatpush1.msra.mxu0 %v719
        %1132 = vmatprep.subr.mxu0 %v716
        %1133 = vmatpush1.msra.mxu0 %v715
        %1134 = vmatprep.subr.mxu0 %v712
        %1135 = vmatpush1.msra.mxu0 %v711
        %1136 = vmatprep.subr.mxu0 %v708
        %1137 = vmatpush1.msra.mxu0 %v707
        %1138 = vmatprep.subr.mxu0 %v704
        %1139 = vmatpush1.msra.mxu0 %v703
        %1140 = vmatprep.subr.mxu0 %v700
        %1141 = vmatpush1.msra.mxu0 %v699
        %1142 = vmatprep.subr.mxu0 %v696
        %1143 = vmatpush1.msra.mxu0 %v695
        %1144 = vmatprep.subr.mxu0 %v692
        %1145 = vmatpush1.msra.mxu0 %v691
        %1146 = vmatprep.subr.mxu0 0.0
        %1147 = vmatpush2.msra.mxu0 0.0
        %1148 = vmatprep.subr.mxu0 0.0
        %1149 = vmatpush2.msra.mxu0 0.0
        %1150 = vmatprep.subr.mxu0 0.0
        %1151 = vmatpush2.msra.mxu0 0.0
        %1152 = vmatprep.subr.mxu0 0.0
        %1153 = vmatpush2.msra.mxu0 0.0
        %1154 = vmatprep.subr.mxu0 0.0
        %1155 = vmatpush2.msra.mxu0 0.0
        %1156 = vmatprep.subr.mxu0 0.0
        %1157 = vmatpush2.msra.mxu0 0.0
        %1158 = vmatprep.subr.mxu0 0.0
        %1159 = vmatpush2.msra.mxu0 0.0
        %1160 = vmatprep.subr.mxu0 0.0
        %1161 = vmatpush2.msra.mxu0 0.0
        %1162 = vmatprep.subr.mxu0 0.0
        %1163 = vmatpush2.msra.mxu0 0.0
        %1164 = vmatprep.subr.mxu0 0.0
        %1165 = vmatpush2.msra.mxu0 0.0
        %1166 = vmatprep.subr.mxu0 0.0
        %1167 = vmatpush2.msra.mxu0 0.0
        %1168 = vmatprep.subr.mxu0 0.0
        %1169 = vmatpush2.msra.mxu0 0.0
        %1170 = vmatprep.subr.mxu0 0.0
        %1171 = vmatpush2.msra.mxu0 0.0
        %1172 = vmatprep.subr.mxu0 0.0
        %1173 = vmatpush2.msra.mxu0 0.0
        %1174 = vmatprep.subr.mxu0 0.0
        %1175 = vmatpush2.msra.mxu0 0.0
        %1176 = vmatprep.subr.mxu0 0.0
        %1177 = vmatpush2.msra.mxu0 0.0
        %1178 = vmatprep.mubr.f32.mxu0 0.0
        %1179 = vmatmul.mubr.f32.gmra.mxu0 %v539
        %v1180 = vpop.f32.mrf.mxu0
        %v1181 = vadd.f32 %v1068, %v1180
        %v1182 = vpop.f32.mrf.mxu0
        %v1183 = vadd.f32 %v1070, %v1182
        %1184 = vmatprep.mubr.f32.mxu0 0.0
        %1185 = vmatmul.mubr.f32.gmra.mxu0 %v542
        %v1186 = vpop.f32.mrf.mxu0
        %v1187 = vadd.f32 %v1074, %v1186
        %v1188 = vpop.f32.mrf.mxu0
        %v1189 = vadd.f32 %v1076, %v1188
        %1190 = vmatprep.mubr.f32.mxu0 0.0
        %1191 = vmatmul.mubr.f32.gmra.mxu0 %v545
        %v1192 = vpop.f32.mrf.mxu0
        %v1193 = vadd.f32 %v1080, %v1192
        %v1194 = vpop.f32.mrf.mxu0
        %v1195 = vadd.f32 %v1082, %v1194
        %1196 = vmatprep.mubr.f32.mxu0 0.0
        %1197 = vmatmul.mubr.f32.gmra.mxu0 %v548
        %v1198 = vpop.f32.mrf.mxu0
        %v1199 = vadd.f32 %v1086, %v1198
        %v1200 = vpop.f32.mrf.mxu0
        %v1201 = vadd.f32 %v1088, %v1200
        %1202 = vmatprep.mubr.f32.mxu0 0.0
        %1203 = vmatmul.mubr.f32.gmra.mxu0 %v551
        %v1204 = vpop.f32.mrf.mxu0
        %v1205 = vadd.f32 %v1092, %v1204
        %v1206 = vpop.f32.mrf.mxu0
        %v1207 = vadd.f32 %v1094, %v1206
        %1208 = vmatprep.mubr.f32.mxu0 0.0
        %1209 = vmatmul.mubr.f32.gmra.mxu0 %v554
        %v1210 = vpop.f32.mrf.mxu0
        %v1211 = vadd.f32 %v1098, %v1210
        %v1212 = vpop.f32.mrf.mxu0
        %v1213 = vadd.f32 %v1100, %v1212
        %1214 = vmatprep.mubr.f32.mxu0 0.0
        %1215 = vmatmul.mubr.f32.gmra.mxu0 %v557
        %v1216 = vpop.f32.mrf.mxu0
        %v1217 = vadd.f32 %v1104, %v1216
        %v1218 = vpop.f32.mrf.mxu0
        %v1219 = vadd.f32 %v1106, %v1218
        %1220 = vmatprep.mubr.f32.mxu0 0.0
        %1221 = vmatmul.mubr.f32.gmra.mxu0 %v560
        %v1222 = vpop.f32.mrf.mxu0
        %v1223 = vadd.f32 %v1110, %v1222
        %v1224 = vpop.f32.mrf.mxu0
        %v1225 = vadd.f32 %v1112, %v1224
        %1226 = vdwg.mxu0
        %v1227 = vmul.f32 %v955, %v955
        %v1228 = vmul.f32 %v957, %v957
        %v1229 = vmul.f32 %v1181, %v1181
        %v1230 = vmul.f32 %v1183, %v1183
        %v1231 = vmul.f32 %v961, %v961
        %v1232 = vmul.f32 %v963, %v963
        %v1233 = vmul.f32 %v1187, %v1187
        %v1234 = vmul.f32 %v1189, %v1189
        %v1235 = vmul.f32 %v967, %v967
        %v1236 = vmul.f32 %v969, %v969
        %v1237 = vmul.f32 %v1193, %v1193
        %v1238 = vmul.f32 %v1195, %v1195
        %v1239 = vmul.f32 %v973, %v973
        %v1240 = vmul.f32 %v975, %v975
        %v1241 = vmul.f32 %v1199, %v1199
        %v1242 = vmul.f32 %v1201, %v1201
        %v1243 = vmul.f32 %v979, %v979
        %v1244 = vmul.f32 %v981, %v981
        %v1245 = vmul.f32 %v1205, %v1205
        %v1246 = vmul.f32 %v1207, %v1207
        %v1247 = vmul.f32 %v985, %v985
        %v1248 = vmul.f32 %v987, %v987
        %v1249 = vmul.f32 %v1211, %v1211
        %v1250 = vmul.f32 %v1213, %v1213
        %v1251 = vmul.f32 %v991, %v991
        %v1252 = vmul.f32 %v993, %v993
        %v1253 = vmul.f32 %v1217, %v1217
        %v1254 = vmul.f32 %v1219, %v1219
        %v1255 = vmul.f32 %v997, %v997
        %v1256 = vmul.f32 %v999, %v999
        %v1257 = vmul.f32 %v1223, %v1223
        %v1258 = vmul.f32 %v1225, %v1225
        %v1259 = vadd.f32 %v1227, %v1228
        %v1260 = vadd.f32 %v1259, %v1229
        %v1261 = vadd.f32 %v1260, %v1230
        %1262 = vadd.xlane.f32.xlu0 %v1261
        %v1263 = vpop.xlane.xlu0 %1262
        %v1264 = vadd.f32 %v1231, %v1232
        %v1265 = vadd.f32 %v1264, %v1233
        %v1266 = vadd.f32 %v1265, %v1234
        %1267 = vadd.xlane.f32.xlu0 %v1266
        %v1268 = vpop.xlane.xlu0 %1267
        %v1269 = vadd.f32 %v1235, %v1236
        %v1270 = vadd.f32 %v1269, %v1237
        %v1271 = vadd.f32 %v1270, %v1238
        %1272 = vadd.xlane.f32.xlu0 %v1271
        %v1273 = vpop.xlane.xlu0 %1272
        %v1274 = vadd.f32 %v1239, %v1240
        %v1275 = vadd.f32 %v1274, %v1241
        %v1276 = vadd.f32 %v1275, %v1242
        %1277 = vadd.xlane.f32.xlu0 %v1276
        %v1278 = vpop.xlane.xlu0 %1277
        %v1279 = vadd.f32 %v1243, %v1244
        %v1280 = vadd.f32 %v1279, %v1245
        %v1281 = vadd.f32 %v1280, %v1246
        %1282 = vadd.xlane.f32.xlu0 %v1281
        %v1283 = vpop.xlane.xlu0 %1282
        %v1284 = vadd.f32 %v1247, %v1248
        %v1285 = vadd.f32 %v1284, %v1249
        %v1286 = vadd.f32 %v1285, %v1250
        %1287 = vadd.xlane.f32.xlu0 %v1286
        %v1288 = vpop.xlane.xlu0 %1287
        %v1289 = vadd.f32 %v1251, %v1252
        %v1290 = vadd.f32 %v1289, %v1253
        %v1291 = vadd.f32 %v1290, %v1254
        %1292 = vadd.xlane.f32.xlu0 %v1291
        %v1293 = vpop.xlane.xlu0 %1292
        %v1294 = vadd.f32 %v1255, %v1256
        %v1295 = vadd.f32 %v1294, %v1257
        %v1296 = vadd.f32 %v1295, %v1258
        %1297 = vadd.xlane.f32.xlu0 %v1296
        %v1298 = vpop.xlane.xlu0 %1297
        %v1299 = vmax.f32 %v1263, 1e-24
        %v1300 = vmax.f32 %v1268, 1e-24
        %v1301 = vmax.f32 %v1273, 1e-24
        %v1302 = vmax.f32 %v1278, 1e-24
        %v1303 = vmax.f32 %v1283, 1e-24
        %v1304 = vmax.f32 %v1288, 1e-24
        %v1305 = vmax.f32 %v1293, 1e-24
        %v1306 = vmax.f32 %v1298, 1e-24
        %v1307 = vrsqrt.pop %v1299
        %v1308 = vrsqrt.pop %v1300
        %v1309 = vrsqrt.pop %v1301
        %v1310 = vrsqrt.pop %v1302
        %v1311 = vrsqrt.pop %v1303
        %v1312 = vrsqrt.pop %v1304
        %v1313 = vrsqrt.pop %v1305
        %v1314 = vrsqrt.pop %v1306
        %v1317 = vcombine.high %v535, %v535
        %v1318 = vcombine.high %v536, %v536
        %1321 = vmatprep.subr.mxu0 0.0
        %1322 = vmatpush1.xpose.msra.mxu0 0.0
        %1323 = vmatprep.subr.mxu0 0.0
        %1324 = vmatpush1.xpose.msra.mxu0 0.0
        %1325 = vmatprep.subr.mxu0 0.0
        %1326 = vmatpush1.xpose.msra.mxu0 0.0
        %1327 = vmatprep.subr.mxu0 0.0
        %1328 = vmatpush1.xpose.msra.mxu0 0.0
        %1329 = vmatprep.subr.mxu0 0.0
        %1330 = vmatpush1.xpose.msra.mxu0 0.0
        %1331 = vmatprep.subr.mxu0 0.0
        %1332 = vmatpush1.xpose.msra.mxu0 0.0
        %1333 = vmatprep.subr.mxu0 0.0
        %1334 = vmatpush1.xpose.msra.mxu0 0.0
        %1335 = vmatprep.subr.mxu0 0.0
        %1336 = vmatpush1.xpose.msra.mxu0 0.0
        %1337 = vmatprep.subr.mxu0 0.0
        %1338 = vmatpush1.xpose.msra.mxu0 0.0
        %1339 = vmatprep.subr.mxu0 0.0
        %1340 = vmatpush1.xpose.msra.mxu0 0.0
        %1341 = vmatprep.subr.mxu0 0.0
        %1342 = vmatpush1.xpose.msra.mxu0 0.0
        %1343 = vmatprep.subr.mxu0 0.0
        %1344 = vmatpush1.xpose.msra.mxu0 0.0
        %1345 = vmatprep.subr.mxu0 0.0
        %1346 = vmatpush1.xpose.msra.mxu0 0.0
        %1347 = vmatprep.subr.mxu0 0.0
        %1348 = vmatpush1.xpose.msra.mxu0 0.0
        %1349 = vmatprep.subr.mxu0 0.0
        %1350 = vmatpush1.xpose.msra.mxu0 0.0
        %1351 = vmatprep.subr.mxu0 %v1317
        %1352 = vmatpush1.xpose.msra.mxu0 %v535
        %1353 = vmatprep.subr.mxu0 0.0
        %1354 = vmatpush2.xpose.msra.mxu0 0.0
        %1355 = vmatprep.subr.mxu0 0.0
        %1356 = vmatpush2.xpose.msra.mxu0 0.0
        %1357 = vmatprep.subr.mxu0 0.0
        %1358 = vmatpush2.xpose.msra.mxu0 0.0
        %1359 = vmatprep.subr.mxu0 0.0
        %1360 = vmatpush2.xpose.msra.mxu0 0.0
        %1361 = vmatprep.subr.mxu0 0.0
        %1362 = vmatpush2.xpose.msra.mxu0 0.0
        %1363 = vmatprep.subr.mxu0 0.0
        %1364 = vmatpush2.xpose.msra.mxu0 0.0
        %1365 = vmatprep.subr.mxu0 0.0
        %1366 = vmatpush2.xpose.msra.mxu0 0.0
        %1367 = vmatprep.subr.mxu0 0.0
        %1368 = vmatpush2.xpose.msra.mxu0 0.0
        %1369 = vmatprep.subr.mxu0 0.0
        %1370 = vmatpush2.xpose.msra.mxu0 0.0
        %1371 = vmatprep.subr.mxu0 0.0
        %1372 = vmatpush2.xpose.msra.mxu0 0.0
        %1373 = vmatprep.subr.mxu0 0.0
        %1374 = vmatpush2.xpose.msra.mxu0 0.0
        %1375 = vmatprep.subr.mxu0 0.0
        %1376 = vmatpush2.xpose.msra.mxu0 0.0
        %1377 = vmatprep.subr.mxu0 0.0
        %1378 = vmatpush2.xpose.msra.mxu0 0.0
        %1379 = vmatprep.subr.mxu0 0.0
        %1380 = vmatpush2.xpose.msra.mxu0 0.0
        %1381 = vmatprep.subr.mxu0 0.0
        %1382 = vmatpush2.xpose.msra.mxu0 0.0
        %1383 = vmatprep.subr.mxu0 0.0
        %1384 = vmatpush2.xpose.msra.mxu0 0.0
        %1385 = vmatprep.mubr.f32.mxu0 %v957
        %1386 = vmatmul.mubr.f32.gmra.mxu0 %v955
        %v1387 = vpop.f32.mrf.mxu0
        %v1388 = vadd.f32 0.0, %v1387
        %v1389 = vpop.f32.mrf.mxu0
        %1390 = vmatprep.mubr.f32.mxu0 %v963
        %1391 = vmatmul.mubr.f32.gmra.mxu0 %v961
        %v1392 = vpop.f32.mrf.mxu0
        %v1393 = vadd.f32 0.0, %v1392
        %v1394 = vpop.f32.mrf.mxu0
        %1395 = vmatprep.mubr.f32.mxu0 %v969
        %1396 = vmatmul.mubr.f32.gmra.mxu0 %v967
        %v1397 = vpop.f32.mrf.mxu0
        %v1398 = vadd.f32 0.0, %v1397
        %v1399 = vpop.f32.mrf.mxu0
        %1400 = vmatprep.mubr.f32.mxu0 %v975
        %1401 = vmatmul.mubr.f32.gmra.mxu0 %v973
        %v1402 = vpop.f32.mrf.mxu0
        %v1403 = vadd.f32 0.0, %v1402
        %v1404 = vpop.f32.mrf.mxu0
        %1405 = vmatprep.mubr.f32.mxu0 %v981
        %1406 = vmatmul.mubr.f32.gmra.mxu0 %v979
        %v1407 = vpop.f32.mrf.mxu0
        %v1408 = vadd.f32 0.0, %v1407
        %v1409 = vpop.f32.mrf.mxu0
        %1410 = vmatprep.mubr.f32.mxu0 %v987
        %1411 = vmatmul.mubr.f32.gmra.mxu0 %v985
        %v1412 = vpop.f32.mrf.mxu0
        %v1413 = vadd.f32 0.0, %v1412
        %v1414 = vpop.f32.mrf.mxu0
        %1415 = vmatprep.mubr.f32.mxu0 %v993
        %1416 = vmatmul.mubr.f32.gmra.mxu0 %v991
        %v1417 = vpop.f32.mrf.mxu0
        %v1418 = vadd.f32 0.0, %v1417
        %v1419 = vpop.f32.mrf.mxu0
        %1420 = vmatprep.mubr.f32.mxu0 %v999
        %1421 = vmatmul.mubr.f32.gmra.mxu0 %v997
        %v1422 = vpop.f32.mrf.mxu0
        %v1423 = vadd.f32 0.0, %v1422
        %v1424 = vpop.f32.mrf.mxu0
        %1425 = vdwg.mxu0
        %1426 = vmatprep.subr.mxu0 0.0
        %1427 = vmatpush1.xpose.msra.mxu0 0.0
        %1428 = vmatprep.subr.mxu0 0.0
        %1429 = vmatpush1.xpose.msra.mxu0 0.0
        %1430 = vmatprep.subr.mxu0 0.0
        %1431 = vmatpush1.xpose.msra.mxu0 0.0
        %1432 = vmatprep.subr.mxu0 0.0
        %1433 = vmatpush1.xpose.msra.mxu0 0.0
        %1434 = vmatprep.subr.mxu0 0.0
        %1435 = vmatpush1.xpose.msra.mxu0 0.0
        %1436 = vmatprep.subr.mxu0 0.0
        %1437 = vmatpush1.xpose.msra.mxu0 0.0
        %1438 = vmatprep.subr.mxu0 0.0
        %1439 = vmatpush1.xpose.msra.mxu0 0.0
        %1440 = vmatprep.subr.mxu0 0.0
        %1441 = vmatpush1.xpose.msra.mxu0 0.0
        %1442 = vmatprep.subr.mxu0 0.0
        %1443 = vmatpush1.xpose.msra.mxu0 0.0
        %1444 = vmatprep.subr.mxu0 0.0
        %1445 = vmatpush1.xpose.msra.mxu0 0.0
        %1446 = vmatprep.subr.mxu0 0.0
        %1447 = vmatpush1.xpose.msra.mxu0 0.0
        %1448 = vmatprep.subr.mxu0 0.0
        %1449 = vmatpush1.xpose.msra.mxu0 0.0
        %1450 = vmatprep.subr.mxu0 0.0
        %1451 = vmatpush1.xpose.msra.mxu0 0.0
        %1452 = vmatprep.subr.mxu0 0.0
        %1453 = vmatpush1.xpose.msra.mxu0 0.0
        %1454 = vmatprep.subr.mxu0 0.0
        %1455 = vmatpush1.xpose.msra.mxu0 0.0
        %1456 = vmatprep.subr.mxu0 %v1318
        %1457 = vmatpush1.xpose.msra.mxu0 %v536
        %1458 = vmatprep.subr.mxu0 0.0
        %1459 = vmatpush2.xpose.msra.mxu0 0.0
        %1460 = vmatprep.subr.mxu0 0.0
        %1461 = vmatpush2.xpose.msra.mxu0 0.0
        %1462 = vmatprep.subr.mxu0 0.0
        %1463 = vmatpush2.xpose.msra.mxu0 0.0
        %1464 = vmatprep.subr.mxu0 0.0
        %1465 = vmatpush2.xpose.msra.mxu0 0.0
        %1466 = vmatprep.subr.mxu0 0.0
        %1467 = vmatpush2.xpose.msra.mxu0 0.0
        %1468 = vmatprep.subr.mxu0 0.0
        %1469 = vmatpush2.xpose.msra.mxu0 0.0
        %1470 = vmatprep.subr.mxu0 0.0
        %1471 = vmatpush2.xpose.msra.mxu0 0.0
        %1472 = vmatprep.subr.mxu0 0.0
        %1473 = vmatpush2.xpose.msra.mxu0 0.0
        %1474 = vmatprep.subr.mxu0 0.0
        %1475 = vmatpush2.xpose.msra.mxu0 0.0
        %1476 = vmatprep.subr.mxu0 0.0
        %1477 = vmatpush2.xpose.msra.mxu0 0.0
        %1478 = vmatprep.subr.mxu0 0.0
        %1479 = vmatpush2.xpose.msra.mxu0 0.0
        %1480 = vmatprep.subr.mxu0 0.0
        %1481 = vmatpush2.xpose.msra.mxu0 0.0
        %1482 = vmatprep.subr.mxu0 0.0
        %1483 = vmatpush2.xpose.msra.mxu0 0.0
        %1484 = vmatprep.subr.mxu0 0.0
        %1485 = vmatpush2.xpose.msra.mxu0 0.0
        %1486 = vmatprep.subr.mxu0 0.0
        %1487 = vmatpush2.xpose.msra.mxu0 0.0
        %1488 = vmatprep.subr.mxu0 0.0
        %1489 = vmatpush2.xpose.msra.mxu0 0.0
        %1490 = vmatprep.mubr.f32.mxu0 %v1183
        %1491 = vmatmul.mubr.f32.gmra.mxu0 %v1181
        %v1492 = vpop.f32.mrf.mxu0
        %v1493 = vadd.f32 %v1388, %v1492
        %v1494 = vpop.f32.mrf.mxu0
        %1495 = vmatprep.mubr.f32.mxu0 %v1189
        %1496 = vmatmul.mubr.f32.gmra.mxu0 %v1187
        %v1497 = vpop.f32.mrf.mxu0
        %v1498 = vadd.f32 %v1393, %v1497
        %v1499 = vpop.f32.mrf.mxu0
        %1500 = vmatprep.mubr.f32.mxu0 %v1195
        %1501 = vmatmul.mubr.f32.gmra.mxu0 %v1193
        %v1502 = vpop.f32.mrf.mxu0
        %v1503 = vadd.f32 %v1398, %v1502
        %v1504 = vpop.f32.mrf.mxu0
        %1505 = vmatprep.mubr.f32.mxu0 %v1201
        %1506 = vmatmul.mubr.f32.gmra.mxu0 %v1199
        %v1507 = vpop.f32.mrf.mxu0
        %v1508 = vadd.f32 %v1403, %v1507
        %v1509 = vpop.f32.mrf.mxu0
        %1510 = vmatprep.mubr.f32.mxu0 %v1207
        %1511 = vmatmul.mubr.f32.gmra.mxu0 %v1205
        %v1512 = vpop.f32.mrf.mxu0
        %v1513 = vadd.f32 %v1408, %v1512
        %v1514 = vpop.f32.mrf.mxu0
        %1515 = vmatprep.mubr.f32.mxu0 %v1213
        %1516 = vmatmul.mubr.f32.gmra.mxu0 %v1211
        %v1517 = vpop.f32.mrf.mxu0
        %v1518 = vadd.f32 %v1413, %v1517
        %v1519 = vpop.f32.mrf.mxu0
        %1520 = vmatprep.mubr.f32.mxu0 %v1219
        %1521 = vmatmul.mubr.f32.gmra.mxu0 %v1217
        %v1522 = vpop.f32.mrf.mxu0
        %v1523 = vadd.f32 %v1418, %v1522
        %v1524 = vpop.f32.mrf.mxu0
        %1525 = vmatprep.mubr.f32.mxu0 %v1225
        %1526 = vmatmul.mubr.f32.gmra.mxu0 %v1223
        %v1527 = vpop.f32.mrf.mxu0
        %v1528 = vadd.f32 %v1423, %v1527
        %v1529 = vpop.f32.mrf.mxu0
        %1530 = vdwg.mxu0
        %v1531 = vmul.f32 %v1493, %v1307
        %v1532 = vmul.f32 %v1498, %v1308
        %v1533 = vmul.f32 %v1503, %v1309
        %v1534 = vmul.f32 %v1508, %v1310
        %v1535 = vmul.f32 %v1513, %v1311
        %v1536 = vmul.f32 %v1518, %v1312
        %v1537 = vmul.f32 %v1523, %v1313
        %v1538 = vmul.f32 %v1528, %v1314
        %1539 = vxpose.xlu0.b32.start [1/16] %v1531, 128
        %1540 = vxpose.xlu0.b32.cont [2/16] %v1532, 128
        %1541 = vxpose.xlu0.b32.cont [3/16] %v1533, 128
        %1542 = vxpose.xlu0.b32.cont [4/16] %v1534, 128
        %1543 = vxpose.xlu0.b32.cont [5/16] %v1535, 128
        %1544 = vxpose.xlu0.b32.cont [6/16] %v1536, 128
        %1545 = vxpose.xlu0.b32.cont [7/16] %v1537, 128
        %1546 = vxpose.xlu0.b32.cont [8/16] %v1538, 128
        %1547 = vxpose.xlu0.b32.cont [9/16] 0.0, 128
        %1548 = vxpose.xlu0.b32.cont [10/16] 0.0, 128
        %1549 = vxpose.xlu0.b32.cont [11/16] 0.0, 128
        %1550 = vxpose.xlu0.b32.cont [12/16] 0.0, 128
        %1551 = vxpose.xlu0.b32.cont [13/16] 0.0, 128
        %1552 = vxpose.xlu0.b32.cont [14/16] 0.0, 128
        %1553 = vxpose.xlu0.b32.cont [15/16] 0.0, 128
        %1554 = vxpose.xlu0.b32.end [16/16] 0.0, 128
        %v1555 = vpop.trf.xlu0
        %v1556 = vpop.trf.xlu0
        %v1557 = vpop.trf.xlu0
        %v1558 = vpop.trf.xlu0
        %v1559 = vpop.trf.xlu0
        %v1560 = vpop.trf.xlu0
        %v1561 = vpop.trf.xlu0
        %v1562 = vpop.trf.xlu0
        %v1563 = vpop.trf.xlu0
        %v1564 = vpop.trf.xlu0
        %v1565 = vpop.trf.xlu0
        %v1566 = vpop.trf.xlu0
        %v1567 = vpop.trf.xlu0
        %v1568 = vpop.trf.xlu0
        %v1569 = vpop.trf.xlu0
        %v1570 = vpop.trf.xlu0
        %vm1571 = vcmask 519168
        %1572 = vst.msk [vmem:[%s455] sm:$0xf] %vm1571, %v1555
        %v1573 = vld [vmem:[%s401] sm:$0xff]
        %v1574 = vld [vmem:[%s401 + $0x8] sm:$0xff]
        %v1575 = vld [vmem:[%s401 + $0x10] sm:$0xff]
        %v1576 = vld [vmem:[%s401 + $0x18] sm:$0xff]
        %v1577 = vld [vmem:[%s401 + $0x20] sm:$0xff]
        %v1578 = vld [vmem:[%s401 + $0x28] sm:$0xff]
        %v1579 = vld [vmem:[%s401 + $0x30] sm:$0xff]
        %v1580 = vld [vmem:[%s401 + $0x38] sm:$0xff]
        %v1581 = vld [vmem:[%s401 + $0x40] sm:$0xff]
        %v1582 = vld [vmem:[%s401 + $0x48] sm:$0xff]
        %v1583 = vld [vmem:[%s401 + $0x50] sm:$0xff]
        %v1584 = vld [vmem:[%s401 + $0x58] sm:$0xff]
        %v1585 = vld [vmem:[%s401 + $0x60] sm:$0xff]
        %v1586 = vld [vmem:[%s401 + $0x68] sm:$0xff]
        %v1587 = vld [vmem:[%s401 + $0x70] sm:$0xff]
        %v1588 = vld [vmem:[%s401 + $0x78] sm:$0xff]
        %v1589 = vld [vmem:[%s401 + $0x80] sm:$0xff]
        %v1590 = vld [vmem:[%s401 + $0x88] sm:$0xff]
        %v1591 = vld [vmem:[%s401 + $0x90] sm:$0xff]
        %v1592 = vld [vmem:[%s401 + $0x98] sm:$0xff]
        %v1593 = vld [vmem:[%s401 + $0xa0] sm:$0xff]
        %v1594 = vld [vmem:[%s401 + $0xa8] sm:$0xff]
        %v1595 = vld [vmem:[%s401 + $0xb0] sm:$0xff]
        %v1596 = vld [vmem:[%s401 + $0xb8] sm:$0xff]
        %v1597 = vld [vmem:[%s401 + $0xc0] sm:$0xff]
        %v1598 = vld [vmem:[%s401 + $0xc8] sm:$0xff]
        %v1599 = vld [vmem:[%s401 + $0xd0] sm:$0xff]
        %v1600 = vld [vmem:[%s401 + $0xd8] sm:$0xff]
        %v1601 = vld [vmem:[%s401 + $0xe0] sm:$0xff]
        %v1602 = vld [vmem:[%s401 + $0xe8] sm:$0xff]
        %v1603 = vld [vmem:[%s401 + $0xf0] sm:$0xff]
        %v1604 = vld [vmem:[%s401 + $0xf8] sm:$0xff]
        %v1605 = vmul.f32 %v1573, %v1573
        %v1606 = vmul.f32 %v1574, %v1574
        %v1607 = vmul.f32 %v1575, %v1575
        %v1608 = vmul.f32 %v1576, %v1576
        %v1609 = vmul.f32 %v1577, %v1577
        %v1610 = vmul.f32 %v1578, %v1578
        %v1611 = vmul.f32 %v1579, %v1579
        %v1612 = vmul.f32 %v1580, %v1580
        %v1613 = vmul.f32 %v1581, %v1581
        %v1614 = vmul.f32 %v1582, %v1582
        %v1615 = vmul.f32 %v1583, %v1583
        %v1616 = vmul.f32 %v1584, %v1584
        %v1617 = vmul.f32 %v1585, %v1585
        %v1618 = vmul.f32 %v1586, %v1586
        %v1619 = vmul.f32 %v1587, %v1587
        %v1620 = vmul.f32 %v1588, %v1588
        %v1621 = vmul.f32 %v1589, %v1589
        %v1622 = vmul.f32 %v1590, %v1590
        %v1623 = vmul.f32 %v1591, %v1591
        %v1624 = vmul.f32 %v1592, %v1592
        %v1625 = vmul.f32 %v1593, %v1593
        %v1626 = vmul.f32 %v1594, %v1594
        %v1627 = vmul.f32 %v1595, %v1595
        %v1628 = vmul.f32 %v1596, %v1596
        %v1629 = vmul.f32 %v1597, %v1597
        %v1630 = vmul.f32 %v1598, %v1598
        %v1631 = vmul.f32 %v1599, %v1599
        %v1632 = vmul.f32 %v1600, %v1600
        %v1633 = vmul.f32 %v1601, %v1601
        %v1634 = vmul.f32 %v1602, %v1602
        %v1635 = vmul.f32 %v1603, %v1603
        %v1636 = vmul.f32 %v1604, %v1604
        %v1637 = vadd.f32 %v1605, %v1606
        %v1638 = vadd.f32 %v1637, %v1607
        %v1639 = vadd.f32 %v1638, %v1608
        %1640 = vadd.xlane.f32.xlu0 %v1639
        %v1641 = vpop.xlane.xlu0 %1640
        %v1642 = vadd.f32 %v1609, %v1610
        %v1643 = vadd.f32 %v1642, %v1611
        %v1644 = vadd.f32 %v1643, %v1612
        %1645 = vadd.xlane.f32.xlu0 %v1644
        %v1646 = vpop.xlane.xlu0 %1645
        %v1647 = vadd.f32 %v1613, %v1614
        %v1648 = vadd.f32 %v1647, %v1615
        %v1649 = vadd.f32 %v1648, %v1616
        %1650 = vadd.xlane.f32.xlu0 %v1649
        %v1651 = vpop.xlane.xlu0 %1650
        %v1652 = vadd.f32 %v1617, %v1618
        %v1653 = vadd.f32 %v1652, %v1619
        %v1654 = vadd.f32 %v1653, %v1620
        %1655 = vadd.xlane.f32.xlu0 %v1654
        %v1656 = vpop.xlane.xlu0 %1655
        %v1657 = vadd.f32 %v1621, %v1622
        %v1658 = vadd.f32 %v1657, %v1623
        %v1659 = vadd.f32 %v1658, %v1624
        %1660 = vadd.xlane.f32.xlu0 %v1659
        %v1661 = vpop.xlane.xlu0 %1660
        %v1662 = vadd.f32 %v1625, %v1626
        %v1663 = vadd.f32 %v1662, %v1627
        %v1664 = vadd.f32 %v1663, %v1628
        %1665 = vadd.xlane.f32.xlu0 %v1664
        %v1666 = vpop.xlane.xlu0 %1665
        %v1667 = vadd.f32 %v1629, %v1630
        %v1668 = vadd.f32 %v1667, %v1631
        %v1669 = vadd.f32 %v1668, %v1632
        %1670 = vadd.xlane.f32.xlu0 %v1669
        %v1671 = vpop.xlane.xlu0 %1670
        %v1672 = vadd.f32 %v1633, %v1634
        %v1673 = vadd.f32 %v1672, %v1635
        %v1674 = vadd.f32 %v1673, %v1636
        %1675 = vadd.xlane.f32.xlu0 %v1674
        %v1676 = vpop.xlane.xlu0 %1675
        %v1677 = vmax.f32 %v1641, 1e-24
        %v1678 = vmax.f32 %v1646, 1e-24
        %v1679 = vmax.f32 %v1651, 1e-24
        %v1680 = vmax.f32 %v1656, 1e-24
        %v1681 = vmax.f32 %v1661, 1e-24
        %v1682 = vmax.f32 %v1666, 1e-24
        %v1683 = vmax.f32 %v1671, 1e-24
        %v1684 = vmax.f32 %v1676, 1e-24
        %v1685 = vrsqrt.pop %v1677
        %v1686 = vrsqrt.pop %v1678
        %v1687 = vrsqrt.pop %v1679
        %v1688 = vrsqrt.pop %v1680
        %v1689 = vrsqrt.pop %v1681
        %v1690 = vrsqrt.pop %v1682
        %v1691 = vrsqrt.pop %v1683
        %v1692 = vrsqrt.pop %v1684
        %1693 = vmatprep.subr.mxu0 0.0
        %1694 = vmatpush1.xpose.msra.mxu0 0.0
        %1695 = vmatprep.subr.mxu0 0.0
        %1696 = vmatpush1.xpose.msra.mxu0 0.0
        %1697 = vmatprep.subr.mxu0 0.0
        %1698 = vmatpush1.xpose.msra.mxu0 0.0
        %1699 = vmatprep.subr.mxu0 0.0
        %1700 = vmatpush1.xpose.msra.mxu0 0.0
        %1701 = vmatprep.subr.mxu0 0.0
        %1702 = vmatpush1.xpose.msra.mxu0 0.0
        %1703 = vmatprep.subr.mxu0 0.0
        %1704 = vmatpush1.xpose.msra.mxu0 0.0
        %1705 = vmatprep.subr.mxu0 0.0
        %1706 = vmatpush1.xpose.msra.mxu0 0.0
        %1707 = vmatprep.subr.mxu0 0.0
        %1708 = vmatpush1.xpose.msra.mxu0 0.0
        %1709 = vmatprep.subr.mxu0 0.0
        %1710 = vmatpush1.xpose.msra.mxu0 0.0
        %1711 = vmatprep.subr.mxu0 0.0
        %1712 = vmatpush1.xpose.msra.mxu0 0.0
        %1713 = vmatprep.subr.mxu0 0.0
        %1714 = vmatpush1.xpose.msra.mxu0 0.0
        %1715 = vmatprep.subr.mxu0 0.0
        %1716 = vmatpush1.xpose.msra.mxu0 0.0
        %1717 = vmatprep.subr.mxu0 0.0
        %1718 = vmatpush1.xpose.msra.mxu0 0.0
        %1719 = vmatprep.subr.mxu0 0.0
        %1720 = vmatpush1.xpose.msra.mxu0 0.0
        %1721 = vmatprep.subr.mxu0 0.0
        %1722 = vmatpush1.xpose.msra.mxu0 0.0
        %1723 = vmatprep.subr.mxu0 %v1317
        %1724 = vmatpush1.xpose.msra.mxu0 %v535
        %1725 = vmatprep.subr.mxu0 0.0
        %1726 = vmatpush2.xpose.msra.mxu0 0.0
        %1727 = vmatprep.subr.mxu0 0.0
        %1728 = vmatpush2.xpose.msra.mxu0 0.0
        %1729 = vmatprep.subr.mxu0 0.0
        %1730 = vmatpush2.xpose.msra.mxu0 0.0
        %1731 = vmatprep.subr.mxu0 0.0
        %1732 = vmatpush2.xpose.msra.mxu0 0.0
        %1733 = vmatprep.subr.mxu0 0.0
        %1734 = vmatpush2.xpose.msra.mxu0 0.0
        %1735 = vmatprep.subr.mxu0 0.0
        %1736 = vmatpush2.xpose.msra.mxu0 0.0
        %1737 = vmatprep.subr.mxu0 0.0
        %1738 = vmatpush2.xpose.msra.mxu0 0.0
        %1739 = vmatprep.subr.mxu0 0.0
        %1740 = vmatpush2.xpose.msra.mxu0 0.0
        %1741 = vmatprep.subr.mxu0 0.0
        %1742 = vmatpush2.xpose.msra.mxu0 0.0
        %1743 = vmatprep.subr.mxu0 0.0
        %1744 = vmatpush2.xpose.msra.mxu0 0.0
        %1745 = vmatprep.subr.mxu0 0.0
        %1746 = vmatpush2.xpose.msra.mxu0 0.0
        %1747 = vmatprep.subr.mxu0 0.0
        %1748 = vmatpush2.xpose.msra.mxu0 0.0
        %1749 = vmatprep.subr.mxu0 0.0
        %1750 = vmatpush2.xpose.msra.mxu0 0.0
        %1751 = vmatprep.subr.mxu0 0.0
        %1752 = vmatpush2.xpose.msra.mxu0 0.0
        %1753 = vmatprep.subr.mxu0 0.0
        %1754 = vmatpush2.xpose.msra.mxu0 0.0
        %1755 = vmatprep.subr.mxu0 0.0
        %1756 = vmatpush2.xpose.msra.mxu0 0.0
        %1757 = vmatprep.mubr.f32.mxu0 %v1574
        %1758 = vmatmul.mubr.f32.gmra.mxu0 %v1573
        %v1759 = vpop.f32.mrf.mxu0
        %v1760 = vadd.f32 0.0, %v1759
        %v1761 = vpop.f32.mrf.mxu0
        %1762 = vmatprep.mubr.f32.mxu0 %v1578
        %1763 = vmatmul.mubr.f32.gmra.mxu0 %v1577
        %v1764 = vpop.f32.mrf.mxu0
        %v1765 = vadd.f32 0.0, %v1764
        %v1766 = vpop.f32.mrf.mxu0
        %1767 = vmatprep.mubr.f32.mxu0 %v1582
        %1768 = vmatmul.mubr.f32.gmra.mxu0 %v1581
        %v1769 = vpop.f32.mrf.mxu0
        %v1770 = vadd.f32 0.0, %v1769
        %v1771 = vpop.f32.mrf.mxu0
        %1772 = vmatprep.mubr.f32.mxu0 %v1586
        %1773 = vmatmul.mubr.f32.gmra.mxu0 %v1585
        %v1774 = vpop.f32.mrf.mxu0
        %v1775 = vadd.f32 0.0, %v1774
        %v1776 = vpop.f32.mrf.mxu0
        %1777 = vmatprep.mubr.f32.mxu0 %v1590
        %1778 = vmatmul.mubr.f32.gmra.mxu0 %v1589
        %v1779 = vpop.f32.mrf.mxu0
        %v1780 = vadd.f32 0.0, %v1779
        %v1781 = vpop.f32.mrf.mxu0
        %1782 = vmatprep.mubr.f32.mxu0 %v1594
        %1783 = vmatmul.mubr.f32.gmra.mxu0 %v1593
        %v1784 = vpop.f32.mrf.mxu0
        %v1785 = vadd.f32 0.0, %v1784
        %v1786 = vpop.f32.mrf.mxu0
        %1787 = vmatprep.mubr.f32.mxu0 %v1598
        %1788 = vmatmul.mubr.f32.gmra.mxu0 %v1597
        %v1789 = vpop.f32.mrf.mxu0
        %v1790 = vadd.f32 0.0, %v1789
        %v1791 = vpop.f32.mrf.mxu0
        %1792 = vmatprep.mubr.f32.mxu0 %v1602
        %1793 = vmatmul.mubr.f32.gmra.mxu0 %v1601
        %v1794 = vpop.f32.mrf.mxu0
        %v1795 = vadd.f32 0.0, %v1794
        %v1796 = vpop.f32.mrf.mxu0
        %1797 = vdwg.mxu0
        %1798 = vmatprep.subr.mxu0 0.0
        %1799 = vmatpush1.xpose.msra.mxu0 0.0
        %1800 = vmatprep.subr.mxu0 0.0
        %1801 = vmatpush1.xpose.msra.mxu0 0.0
        %1802 = vmatprep.subr.mxu0 0.0
        %1803 = vmatpush1.xpose.msra.mxu0 0.0
        %1804 = vmatprep.subr.mxu0 0.0
        %1805 = vmatpush1.xpose.msra.mxu0 0.0
        %1806 = vmatprep.subr.mxu0 0.0
        %1807 = vmatpush1.xpose.msra.mxu0 0.0
        %1808 = vmatprep.subr.mxu0 0.0
        %1809 = vmatpush1.xpose.msra.mxu0 0.0
        %1810 = vmatprep.subr.mxu0 0.0
        %1811 = vmatpush1.xpose.msra.mxu0 0.0
        %1812 = vmatprep.subr.mxu0 0.0
        %1813 = vmatpush1.xpose.msra.mxu0 0.0
        %1814 = vmatprep.subr.mxu0 0.0
        %1815 = vmatpush1.xpose.msra.mxu0 0.0
        %1816 = vmatprep.subr.mxu0 0.0
        %1817 = vmatpush1.xpose.msra.mxu0 0.0
        %1818 = vmatprep.subr.mxu0 0.0
        %1819 = vmatpush1.xpose.msra.mxu0 0.0
        %1820 = vmatprep.subr.mxu0 0.0
        %1821 = vmatpush1.xpose.msra.mxu0 0.0
        %1822 = vmatprep.subr.mxu0 0.0
        %1823 = vmatpush1.xpose.msra.mxu0 0.0
        %1824 = vmatprep.subr.mxu0 0.0
        %1825 = vmatpush1.xpose.msra.mxu0 0.0
        %1826 = vmatprep.subr.mxu0 0.0
        %1827 = vmatpush1.xpose.msra.mxu0 0.0
        %1828 = vmatprep.subr.mxu0 %v1318
        %1829 = vmatpush1.xpose.msra.mxu0 %v536
        %1830 = vmatprep.subr.mxu0 0.0
        %1831 = vmatpush2.xpose.msra.mxu0 0.0
        %1832 = vmatprep.subr.mxu0 0.0
        %1833 = vmatpush2.xpose.msra.mxu0 0.0
        %1834 = vmatprep.subr.mxu0 0.0
        %1835 = vmatpush2.xpose.msra.mxu0 0.0
        %1836 = vmatprep.subr.mxu0 0.0
        %1837 = vmatpush2.xpose.msra.mxu0 0.0
        %1838 = vmatprep.subr.mxu0 0.0
        %1839 = vmatpush2.xpose.msra.mxu0 0.0
        %1840 = vmatprep.subr.mxu0 0.0
        %1841 = vmatpush2.xpose.msra.mxu0 0.0
        %1842 = vmatprep.subr.mxu0 0.0
        %1843 = vmatpush2.xpose.msra.mxu0 0.0
        %1844 = vmatprep.subr.mxu0 0.0
        %1845 = vmatpush2.xpose.msra.mxu0 0.0
        %1846 = vmatprep.subr.mxu0 0.0
        %1847 = vmatpush2.xpose.msra.mxu0 0.0
        %1848 = vmatprep.subr.mxu0 0.0
        %1849 = vmatpush2.xpose.msra.mxu0 0.0
        %1850 = vmatprep.subr.mxu0 0.0
        %1851 = vmatpush2.xpose.msra.mxu0 0.0
        %1852 = vmatprep.subr.mxu0 0.0
        %1853 = vmatpush2.xpose.msra.mxu0 0.0
        %1854 = vmatprep.subr.mxu0 0.0
        %1855 = vmatpush2.xpose.msra.mxu0 0.0
        %1856 = vmatprep.subr.mxu0 0.0
        %1857 = vmatpush2.xpose.msra.mxu0 0.0
        %1858 = vmatprep.subr.mxu0 0.0
        %1859 = vmatpush2.xpose.msra.mxu0 0.0
        %1860 = vmatprep.subr.mxu0 0.0
        %1861 = vmatpush2.xpose.msra.mxu0 0.0
        %1862 = vmatprep.mubr.f32.mxu0 %v1576
        %1863 = vmatmul.mubr.f32.gmra.mxu0 %v1575
        %v1864 = vpop.f32.mrf.mxu0
        %v1865 = vadd.f32 %v1760, %v1864
        %v1866 = vpop.f32.mrf.mxu0
        %1867 = vmatprep.mubr.f32.mxu0 %v1580
        %1868 = vmatmul.mubr.f32.gmra.mxu0 %v1579
        %v1869 = vpop.f32.mrf.mxu0
        %v1870 = vadd.f32 %v1765, %v1869
        %v1871 = vpop.f32.mrf.mxu0
        %1872 = vmatprep.mubr.f32.mxu0 %v1584
        %1873 = vmatmul.mubr.f32.gmra.mxu0 %v1583
        %v1874 = vpop.f32.mrf.mxu0
        %v1875 = vadd.f32 %v1770, %v1874
        %v1876 = vpop.f32.mrf.mxu0
        %1877 = vmatprep.mubr.f32.mxu0 %v1588
        %1878 = vmatmul.mubr.f32.gmra.mxu0 %v1587
        %v1879 = vpop.f32.mrf.mxu0
        %v1880 = vadd.f32 %v1775, %v1879
        %v1881 = vpop.f32.mrf.mxu0
        %1882 = vmatprep.mubr.f32.mxu0 %v1592
        %1883 = vmatmul.mubr.f32.gmra.mxu0 %v1591
        %v1884 = vpop.f32.mrf.mxu0
        %v1885 = vadd.f32 %v1780, %v1884
        %v1886 = vpop.f32.mrf.mxu0
        %1887 = vmatprep.mubr.f32.mxu0 %v1596
        %1888 = vmatmul.mubr.f32.gmra.mxu0 %v1595
        %v1889 = vpop.f32.mrf.mxu0
        %v1890 = vadd.f32 %v1785, %v1889
        %v1891 = vpop.f32.mrf.mxu0
        %1892 = vmatprep.mubr.f32.mxu0 %v1600
        %1893 = vmatmul.mubr.f32.gmra.mxu0 %v1599
        %v1894 = vpop.f32.mrf.mxu0
        %v1895 = vadd.f32 %v1790, %v1894
        %v1896 = vpop.f32.mrf.mxu0
        %1897 = vmatprep.mubr.f32.mxu0 %v1604
        %1898 = vmatmul.mubr.f32.gmra.mxu0 %v1603
        %v1899 = vpop.f32.mrf.mxu0
        %v1900 = vadd.f32 %v1795, %v1899
        %v1901 = vpop.f32.mrf.mxu0
        %1902 = vdwg.mxu0
        %v1903 = vmul.f32 %v1865, %v1685
        %v1904 = vmul.f32 %v1870, %v1686
        %v1905 = vmul.f32 %v1875, %v1687
        %v1906 = vmul.f32 %v1880, %v1688
        %v1907 = vmul.f32 %v1885, %v1689
        %v1908 = vmul.f32 %v1890, %v1690
        %v1909 = vmul.f32 %v1895, %v1691
        %v1910 = vmul.f32 %v1900, %v1692
        %1911 = vxpose.xlu0.b32.start [1/16] %v1903, 128
        %1912 = vxpose.xlu0.b32.cont [2/16] %v1904, 128
        %1913 = vxpose.xlu0.b32.cont [3/16] %v1905, 128
        %1914 = vxpose.xlu0.b32.cont [4/16] %v1906, 128
        %1915 = vxpose.xlu0.b32.cont [5/16] %v1907, 128
        %1916 = vxpose.xlu0.b32.cont [6/16] %v1908, 128
        %1917 = vxpose.xlu0.b32.cont [7/16] %v1909, 128
        %1918 = vxpose.xlu0.b32.cont [8/16] %v1910, 128
        %1919 = vxpose.xlu0.b32.cont [9/16] 0.0, 128
        %1920 = vxpose.xlu0.b32.cont [10/16] 0.0, 128
        %1921 = vxpose.xlu0.b32.cont [11/16] 0.0, 128
        %1922 = vxpose.xlu0.b32.cont [12/16] 0.0, 128
        %1923 = vxpose.xlu0.b32.cont [13/16] 0.0, 128
        %1924 = vxpose.xlu0.b32.cont [14/16] 0.0, 128
        %1925 = vxpose.xlu0.b32.cont [15/16] 0.0, 128
        %1926 = vxpose.xlu0.b32.end [16/16] 0.0, 128
        %v1927 = vpop.trf.xlu0
        %v1928 = vpop.trf.xlu0
        %v1929 = vpop.trf.xlu0
        %v1930 = vpop.trf.xlu0
        %v1931 = vpop.trf.xlu0
        %v1932 = vpop.trf.xlu0
        %v1933 = vpop.trf.xlu0
        %v1934 = vpop.trf.xlu0
        %v1935 = vpop.trf.xlu0
        %v1936 = vpop.trf.xlu0
        %v1937 = vpop.trf.xlu0
        %v1938 = vpop.trf.xlu0
        %v1939 = vpop.trf.xlu0
        %v1940 = vpop.trf.xlu0
        %v1941 = vpop.trf.xlu0
        %v1942 = vpop.trf.xlu0
        %1943 = vst.msk [vmem:[%s459] sm:$0xf] %vm1571, %v1927
        %p1944 = scmp.lt.s32.totalorder %s27, 1
        %s1945 = scalar_select %p1944, %s27, 1
        %s1946 = smul.addr %s1945, 4
        %s1947 = scalar_lea.vmem %s7, %s1946
        %p1948 = scmp.lt.s32.totalorder %s27, 1
        %s1949 = scalar_select %p1948, %s27, 1
        %s1950 = smul.addr %s1949, 4
        %s1951 = scalar_lea.vmem %s8, %s1950
        // Predicated region
        $region69: #{prompt_aux_selfa_forward.2} parent=47 // pred_check
          %p1952 = pneg %p212
        $region70: #{prompt_aux_selfa_forward.2} parent=47 // pred_check_branch
          %1954 = sbr.rel (%p1952) target = $region72
        $region71: #{prompt_aux_selfa_forward.2} parent=47 // pred_region
          _
        $region72: #{prompt_aux_selfa_forward.2} parent=47 // pred_fallthru
          _
        // Predicated region
        $region73: #{prompt_aux_selfa_forward.2} parent=47 // pred_check
          %p1955 = pneg %p238
        $region74: #{prompt_aux_selfa_forward.2} parent=47 // pred_check_branch
          %1957 = sbr.rel (%p1955) target = $region76
        $region75: #{prompt_aux_selfa_forward.2} parent=47 // pred_region
          _
        $region76: #{prompt_aux_selfa_forward.2} parent=47 // pred_fallthru
          _
      $region48: #{prompt_aux_selfa_forward.2} parent=5 // pred_fallthru
        _
      %p1958 = scmp.le.s32.totalorder 2, %s22
      // Predicated region
      $region77: #{prompt_aux_selfa_forward.2} parent=5 // pred_check
        %p1959 = pneg %p1958
      $region78: #{prompt_aux_selfa_forward.2} parent=5 // pred_check_branch
        %1961 = sbr.rel (%p1959) target = $region80
      $region79: #{prompt_aux_selfa_forward.2} parent=5 // pred_region
        %s1962 = ssub.s32 %s22, 2
        // Predicated region
        $region81: #{prompt_aux_selfa_forward.2} parent=79 // pred_check
          %p1963 = pneg %p218
        $region82: #{prompt_aux_selfa_forward.2} parent=79 // pred_check_branch
          %1965 = sbr.rel (%p1963) target = $region84
        $region83: #{prompt_aux_selfa_forward.2} parent=79 // pred_region
          %p1966 = scmp.lt.s32.totalorder %s28, 1
          %s1967 = scalar_select %p1966, %s28, 1
          %s1968 = smul.addr %s1967, 4
          %s1969 = scalar_lea.vmem %s7, %s1968
        $region84: #{prompt_aux_selfa_forward.2} parent=79 // pred_fallthru
          _
        // Predicated region
        $region85: #{prompt_aux_selfa_forward.2} parent=79 // pred_check
          %p1970 = pneg %p244
        $region86: #{prompt_aux_selfa_forward.2} parent=79 // pred_check_branch
          %1972 = sbr.rel (%p1970) target = $region88
        $region87: #{prompt_aux_selfa_forward.2} parent=79 // pred_region
          %p1973 = scmp.lt.s32.totalorder %s28, 1
          %s1974 = scalar_select %p1973, %s28, 1
          %s1975 = smul.addr %s1974, 4
          %s1976 = scalar_lea.vmem %s8, %s1975
        $region88: #{prompt_aux_selfa_forward.2} parent=79 // pred_fallthru
          _
      $region80: #{prompt_aux_selfa_forward.2} parent=5 // pred_fallthru
        _
    $region6: #{prompt_aux_selfa_forward.2} parent=1 // loop_footer
      %s26 = sadd.s32 1, %s22
    $region7: #{prompt_aux_selfa_forward.2} parent=1 // loop_footer_branch
      %21 = sbr.rel target = $region3
    $region8: #{prompt_aux_selfa_forward.2} parent=1 // loop_exit
      _
    %1977 = vsyncpa [#allocation3], 1
    %s1978 = scalar_lea.sflag [#allocation3], 1
    %1979 = vsyncpa %s1978, 1
    %1980 = vsyncpa [#allocation5], 1
    %s1981 = scalar_lea.sflag [#allocation5], 1
    %1982 = vsyncpa %s1981, 1
    %1983 = vsyncpa [#allocation8], 1

</llo_original>
